<compile_context>
chip_gen: v5e
topology: v5e:2x2
jax: 0.10.0
libtpu: 0.0.40
codegen_flags: <defaults>
</compile_context>

<pallas_src>
import functools

import jax
import jax.numpy as jnp
from jax.experimental import pallas as pl
from jax.experimental.pallas import tpu as pltpu


def _round_up(x, m):
    return ((x + m - 1) // m) * m


# ----------------------------------------------------------------------------
# Pallas kernels
# ----------------------------------------------------------------------------
def _matmul_bias_act_kernel(x_ref, w_ref, b_ref, o_ref, *, relu):
    # x_ref: [tm, K], w_ref: [K, N], b_ref: [1, N], o_ref: [tm, N]
    acc = jnp.dot(x_ref[...], w_ref[...], preferred_element_type=jnp.float32)
    acc = acc + b_ref[...]
    if relu:
        acc = jnp.maximum(acc, 0.0)
    o_ref[...] = acc.astype(o_ref.dtype)


def _row_tiling(M):
    """Row tile + grid length: big blocks to amortize per-step pipeline
    overhead, but >=2 steps when there is enough work (v7x megacore)."""
    if M <= 8:
        return 8, 1
    n_steps = max(2, -(-M // 512))            # aim for <=512-row blocks
    tm = _round_up(-(-M // n_steps), 8)
    grid = -(-M // tm)
    return tm, grid


def matmul_bias_act(x, w, b, *, relu):
    """out = act(x @ w + b); rows tiled over the grid, K and N kept whole."""
    M, K = x.shape
    Kw, N = w.shape
    assert Kw == K and b.shape == (N,)
    tm, grid = _row_tiling(M)
    Mp = tm * grid
    if Mp != M:
        x = jnp.pad(x, ((0, Mp - M), (0, 0)))
    out = pl.pallas_call(
        functools.partial(_matmul_bias_act_kernel, relu=relu),
        out_shape=jax.ShapeDtypeStruct((Mp, N), jnp.float32),
        grid=(grid,),
        in_specs=[
            pl.BlockSpec((tm, K), lambda i: (i, 0)),
            pl.BlockSpec((K, N), lambda i: (0, 0)),
            pl.BlockSpec((1, N), lambda i: (0, 0)),
        ],
        out_specs=pl.BlockSpec((tm, N), lambda i: (i, 0)),
        compiler_params=pltpu.CompilerParams(
            dimension_semantics=("parallel",)),
    )(x, w, b.reshape(1, N))
    return out[:M]


def _maxpool_kernel(x_ref, o_ref, *, C):
    # x_ref: [1, Ho, 2, Wo, 2*C]  ->  o_ref: [1, Ho, Wo, C]
    v = x_ref[...]
    vh = jnp.max(v, axis=2)                      # H-pair max (major axis)
    # W-pair max via 128-aligned lane slices of the 2*C minor dim.
    o_ref[...] = jnp.maximum(vh[..., :C], vh[..., C:])


def maxpool2x2(x):
    """MaxPool2d(2, 2) with floor semantics on NHWC input."""
    B, H, W, C = x.shape
    Ho, Wo = H // 2, W // 2
    xe = x[:, :2 * Ho, :2 * Wo, :]
    # Pure contiguous reshape: [B, 2Ho, 2Wo, C] -> [B, Ho, 2, Wo, 2C].
    xr = xe.reshape(B, Ho, 2, Wo, 2 * C)
    return pl.pallas_call(
        functools.partial(_maxpool_kernel, C=C),
        out_shape=jax.ShapeDtypeStruct((B, Ho, Wo, C), x.dtype),
        grid=(B,),
        in_specs=[pl.BlockSpec((1, Ho, 2, Wo, 2 * C),
                               lambda b: (b, 0, 0, 0, 0))],
        out_specs=pl.BlockSpec((1, Ho, Wo, C), lambda b: (b, 0, 0, 0)),
        compiler_params=pltpu.CompilerParams(
            dimension_semantics=("parallel",)),
    )(xr)


# ----------------------------------------------------------------------------
# Glue (pure data movement in plain JAX) + one-time parameter re-layout
# ----------------------------------------------------------------------------
def _im2col(x, k):
    """NHWC -> [B*Ho*Wo, k*k*Cin] patches (VALID conv, stride 1)."""
    B, H, W, C = x.shape
    Ho, Wo = H - k + 1, W - k + 1
    cols = [x[:, i:i + Ho, j:j + Wo, :] for i in range(k) for j in range(k)]
    patches = jnp.stack(cols, axis=3)               # [B, Ho, Wo, k*k, C]
    return patches.reshape(B * Ho * Wo, k * k * C), (B, Ho, Wo)


def conv2d_relu(x, w2, b):
    """VALID 3x3 conv + bias + ReLU on NHWC input.

    `w2` is the pre-reshaped (and K-padded) [Kp, Cout] weight from
    prepare_params, so no per-call weight transpose is needed."""
    Kp, Cout = w2.shape
    patches, (B, Ho, Wo) = _im2col(x, 3)
    K = patches.shape[1]
    if K != Kp:                                     # conv1: pad K 27 -> 32
        patches = jnp.pad(patches, ((0, 0), (0, Kp - K)))
    out = matmul_bias_act(patches, w2, b, relu=True)
    return out.reshape(B, Ho, Wo, Cout)


def prepare_params(p):
    """One-time host-side weight re-layout (hoisted out of the forward pass):
       - conv weights OIHW -> [ki*kj*cin, cout]; conv1 K zero-padded 27 -> 32
       - fc1 rows permuted from NCHW-flatten to NHWC-flatten order, transposed,
         and the class dim zero-padded to 128 for lane-dense stores."""
    out = {}
    for name in ("conv1", "conv2", "conv3"):
        w = p[name + "_w"]
        Cout, Cin, KH, KW = w.shape
        w2 = jnp.transpose(w, (2, 3, 1, 0)).reshape(KH * KW * Cin, Cout)
        Kp = _round_up(w2.shape[0], 8)
        if Kp != w2.shape[0]:
            w2 = jnp.pad(w2, ((0, Kp - w2.shape[0]), (0, 0)))
        out[name + "_w"] = w2
        out[name + "_b"] = p[name + "_b"]
    fw = p["fc1_w"]                                  # [num_classes, 128*4*4]
    n_cls, K = fw.shape
    # column index c*16 + h*4 + w  ->  row index h*512 + w*128 + c
    fw = fw.reshape(n_cls, 128, 4, 4).transpose(2, 3, 1, 0).reshape(K, n_cls)
    Np = _round_up(n_cls, 128)
    out["fc1_w"] = jnp.pad(fw, ((0, 0), (0, Np - n_cls)))
    out["fc1_b"] = jnp.pad(p["fc1_b"], (0, Np - n_cls))
    return out


def cnn_cifar_forward(x_nchw, params, return_features=False, num_classes=10):
    x = jnp.transpose(x_nchw, (0, 2, 3, 1))                      # NCHW -> NHWC
    x = conv2d_relu(x, params["conv1_w"], params["conv1_b"])     # [B,30,30,128]
    x = maxpool2x2(x)                                            # [B,15,15,128]
    x = conv2d_relu(x, params["conv2_w"], params["conv2_b"])     # [B,13,13,128]
    x = maxpool2x2(x)                                            # [B, 6, 6,128]
    x = conv2d_relu(x, params["conv3_w"], params["conv3_b"])     # [B, 4, 4,128]
    B = x.shape[0]
    # fc1 weights were permuted to NHWC flatten order, so no runtime transpose.
    feat_nhwc = x.reshape(B, -1)                                 # [B, 2048]
    logits = matmul_bias_act(feat_nhwc, params["fc1_w"], params["fc1_b"],
                             relu=False)[:, :num_classes]
    if return_features:
        # PyTorch's feature is the NCHW flatten (C, H, W order).
        feat = jnp.transpose(x, (0, 3, 1, 2)).reshape(B, -1)
        return logits, feat
    return logits


# ----------------------------------------------------------------------------
# Deterministic parameter init (mirrors PyTorch default uniform init)
# ----------------------------------------------------------------------------
def _conv_init(key, cin, cout, k):
    k1, k2 = jax.random.split(key)
    bound = 1.0 / float(jnp.sqrt(cin * k * k))
    w = jax.random.uniform(k1, (cout, cin, k, k), jnp.float32, -bound, bound)
    b = jax.random.uniform(k2, (cout,), jnp.float32, -bound, bound)
    return w, b


def _linear_init(key, fan_in, fan_out):
    k1, k2 = jax.random.split(key)
    bound = 1.0 / float(jnp.sqrt(fan_in))
    w = jax.random.uniform(k1, (fan_out, fan_in), jnp.float32, -bound, bound)
    b = jax.random.uniform(k2, (fan_out,), jnp.float32, -bound, bound)
    return w, b


# ----------------------------------------------------------------------------
# Pure-JAX reference (correctness check only; uses the raw PyTorch-style params)
# ----------------------------------------------------------------------------
def reference_forward(x_nchw, params):
    def conv(x, w, b):
        y = jax.lax.conv_general_dilated(
            x, w, (1, 1), "VALID",
            dimension_numbers=("NCHW", "OIHW", "NCHW"))
        return y + b[None, :, None, None]

    def pool(x):
        return jax.lax.reduce_window(x, -jnp.inf, jax.lax.max,
                                     (1, 1, 2, 2), (1, 1, 2, 2), "VALID")

    x = pool(jax.nn.relu(conv(x_nchw, params["conv1_w"], params["conv1_b"])))
    x = pool(jax.nn.relu(conv(x, params["conv2_w"], params["conv2_b"])))
    x = jax.nn.relu(conv(x, params["conv3_w"], params["conv3_b"]))
    feat = x.reshape(x.shape[0], -1)
    return feat @ params["fc1_w"].T + params["fc1_b"]


if __name__ == "__main__":
    key = jax.random.PRNGKey(0)
    kx, k1, k2, k3, k4 = jax.random.split(key, 5)

    raw = {}
    raw["conv1_w"], raw["conv1_b"] = _conv_init(k1, 3, 128, 3)
    raw["conv2_w"], raw["conv2_b"] = _conv_init(k2, 128, 128, 3)
    raw["conv3_w"], raw["conv3_b"] = _conv_init(k3, 128, 128, 3)
    raw["fc1_w"], raw["fc1_b"] = _linear_init(k4, 128 * 4 * 4, 10)

    params = prepare_params(raw)

    # CIFAR-like input: the fc1 shape (128*4*4) requires 32x32 spatial input.
    x = jax.random.normal(kx, (2, 3, 32, 32), jnp.float32)

    fwd = jax.jit(functools.partial(cnn_cifar_forward,
                                    return_features=True, num_classes=10))
    logits, feat = fwd(x, params)
    logits = jax.block_until_ready(logits)
    feat = jax.block_until_ready(feat)

    assert logits.shape == (2, 10), logits.shape
    assert feat.shape == (2, 128 * 4 * 4), feat.shape

    ref = reference_forward(x, raw)
    if not jnp.allclose(logits, ref, atol=1e-2, rtol=1e-2):
        raise AssertionError(
            f"mismatch vs reference, max abs diff = "
            f"{float(jnp.max(jnp.abs(logits - ref)))}")

    print("KERNEL_OK")
</pallas_src>

<mosaic_0001>
module attributes {stable_mosaic.version = 11 : i64} {
  func.func @_matmul_bias_act_kernel(%arg0: i32, %arg1: memref<456x32xf32, #tpu.memory_space<vmem>>, %arg2: memref<32x128xf32, #tpu.memory_space<vmem>>, %arg3: memref<1x128xf32, #tpu.memory_space<vmem>>, %arg4: memref<456x128xf32, #tpu.memory_space<vmem>>) attributes {dimension_semantics = [#tpu.dimension_semantics<parallel>], iteration_bounds = array<i64: 4>, scalar_prefetch = 0 : i64, scratch_operands = 0 : i64, tpu.core_type = #tpu.core_type<tc>, window_params = [{transform_indices = @transform_0, window_bounds = array<i64: 456, 32>}, {pipeline_mode = #tpu.pipeline_mode<synchronous>, transform_indices = @transform_1, window_bounds = array<i64: 32, 128>}, {pipeline_mode = #tpu.pipeline_mode<synchronous>, transform_indices = @transform_2, window_bounds = array<i64: 1, 128>}, {transform_indices = @transform_3, window_bounds = array<i64: 456, 128>}]} {
    %c0 = arith.constant 0 : index
    %c0_0 = arith.constant 0 : index
    %0 = vector.load %arg1[%c0, %c0_0] : memref<456x32xf32, #tpu.memory_space<vmem>>, vector<456x32xf32>
    %c0_1 = arith.constant 0 : index
    %c0_2 = arith.constant 0 : index
    %1 = vector.load %arg2[%c0_1, %c0_2] : memref<32x128xf32, #tpu.memory_space<vmem>>, vector<32x128xf32>
    %cst = arith.constant dense<0.000000e+00> : vector<456x128xf32>
    %2 = tpu.matmul %0, %1, %cst {dimension_numbers = #tpu.dot_dimension_numbers<[1], [0], [0], [1], [0, 0, 1, 1], [], []>} : vector<456x32xf32>, vector<32x128xf32>, vector<456x128xf32> -> vector<456x128xf32>
    %c0_3 = arith.constant 0 : index
    %c0_4 = arith.constant 0 : index
    %3 = vector.load %arg3[%c0_3, %c0_4] : memref<1x128xf32, #tpu.memory_space<vmem>>, vector<1x128xf32>
    %4 = vector.broadcast %3 : vector<1x128xf32> to vector<456x128xf32>
    %5 = arith.addf %2, %4 : vector<456x128xf32>
    %cst_5 = arith.constant 0.000000e+00 : f32
    %6 = vector.broadcast %cst_5 : f32 to vector<456x128xf32>
    %7 = arith.maximumf %5, %6 : vector<456x128xf32>
    %c0_6 = arith.constant 0 : index
    %c0_7 = arith.constant 0 : index
    %8 = vector.load %arg4[%c0_6, %c0_7] : memref<456x128xf32, #tpu.memory_space<vmem>>, vector<456x128xf32>
    tpu.vector_store %arg4[%c0_6, %c0_7], %7 {strides = array<i32>} : memref<456x128xf32, #tpu.memory_space<vmem>>, vector<456x128xf32>,
    return
  }
  func.func @transform_0(%arg0: i32) -> (i32, i32) {
    %c0_i32 = arith.constant 0 : i32
    %c0_i32_0 = arith.constant 0 : i32
    return %arg0, %c0_i32 : i32, i32
  }
  func.func @transform_1(%arg0: i32) -> (i32, i32) {
    %c0_i32 = arith.constant 0 : i32
    %c0_i32_0 = arith.constant 0 : i32
    %c0_i32_1 = arith.constant 0 : i32
    return %c0_i32, %c0_i32_0 : i32, i32
  }
  func.func @transform_2(%arg0: i32) -> (i32, i32) {
    %c0_i32 = arith.constant 0 : i32
    %c0_i32_0 = arith.constant 0 : i32
    %c0_i32_1 = arith.constant 0 : i32
    return %c0_i32, %c0_i32_0 : i32, i32
  }
  func.func @transform_3(%arg0: i32) -> (i32, i32) {
    %c0_i32 = arith.constant 0 : i32
    %c0_i32_0 = arith.constant 0 : i32
    return %arg0, %c0_i32 : i32, i32
  }
}

module attributes {stable_mosaic.version = 11 : i64} {
  func.func @_maxpool_kernel(%arg0: i32, %arg1: memref<1x15x2x15x256xf32, #tpu.memory_space<vmem>>, %arg2: memref<1x15x15x128xf32, #tpu.memory_space<vmem>>) attributes {dimension_semantics = [#tpu.dimension_semantics<parallel>], iteration_bounds = array<i64: 2>, scalar_prefetch = 0 : i64, scratch_operands = 0 : i64, tpu.core_type = #tpu.core_type<tc>, window_params = [{transform_indices = @transform_0, window_bounds = array<i64: 1, 15, 2, 15, 256>}, {transform_indices = @transform_1, window_bounds = array<i64: 1, 15, 15, 128>}]} {
    %c0 = arith.constant 0 : index
    %c0_0 = arith.constant 0 : index
    %c0_1 = arith.constant 0 : index
    %c0_2 = arith.constant 0 : index
    %c0_3 = arith.constant 0 : index
    %0 = vector.load %arg1[%c0, %c0_0, %c0_1, %c0_2, %c0_3] : memref<1x15x2x15x256xf32, #tpu.memory_space<vmem>>, vector<1x15x2x15x256xf32>
    %cst = arith.constant dense<0xFF800000> : vector<1x15x15x256xf32>
    %1 = vector.multi_reduction <maximumf>, %0, %cst [2] : vector<1x15x2x15x256xf32> to vector<1x15x15x256xf32>
    %2 = vector.extract_strided_slice %1 {offsets = [0, 0, 0, 0], sizes = [1, 15, 15, 128], strides = [1, 1, 1, 1]} : vector<1x15x15x256xf32> to vector<1x15x15x128xf32>
    %3 = vector.extract_strided_slice %1 {offsets = [0, 0, 0, 128], sizes = [1, 15, 15, 128], strides = [1, 1, 1, 1]} : vector<1x15x15x256xf32> to vector<1x15x15x128xf32>
    %4 = arith.maximumf %2, %3 : vector<1x15x15x128xf32>
    %c0_4 = arith.constant 0 : index
    %c0_5 = arith.constant 0 : index
    %c0_6 = arith.constant 0 : index
    %c0_7 = arith.constant 0 : index
    %5 = vector.load %arg2[%c0_4, %c0_5, %c0_6, %c0_7] : memref<1x15x15x128xf32, #tpu.memory_space<vmem>>, vector<1x15x15x128xf32>
    tpu.vector_store %arg2[%c0_4, %c0_5, %c0_6, %c0_7], %4 {strides = array<i32>} : memref<1x15x15x128xf32, #tpu.memory_space<vmem>>, vector<1x15x15x128xf32>,
    return
  }
  func.func @transform_0(%arg0: i32) -> (i32, i32, i32, i32, i32) {
    %c0_i32 = arith.constant 0 : i32
    %c0_i32_0 = arith.constant 0 : i32
    %c0_i32_1 = arith.constant 0 : i32
    %c0_i32_2 = arith.constant 0 : i32
    %c0_i32_3 = arith.constant 0 : i32
    return %arg0, %c0_i32, %c0_i32_0, %c0_i32_1, %c0_i32_2 : i32, i32, i32, i32, i32
  }
  func.func @transform_1(%arg0: i32) -> (i32, i32, i32, i32) {
    %c0_i32 = arith.constant 0 : i32
    %c0_i32_0 = arith.constant 0 : i32
    %c0_i32_1 = arith.constant 0 : i32
    %c0_i32_2 = arith.constant 0 : i32
    return %arg0, %c0_i32, %c0_i32_0, %c0_i32_1 : i32, i32, i32, i32
  }
}

module attributes {stable_mosaic.version = 11 : i64} {
  func.func @_matmul_bias_act_kernel(%arg0: i32, %arg1: memref<176x1152xf32, #tpu.memory_space<vmem>>, %arg2: memref<1152x128xf32, #tpu.memory_space<vmem>>, %arg3: memref<1x128xf32, #tpu.memory_space<vmem>>, %arg4: memref<176x128xf32, #tpu.memory_space<vmem>>) attributes {dimension_semantics = [#tpu.dimension_semantics<parallel>], iteration_bounds = array<i64: 2>, scalar_prefetch = 0 : i64, scratch_operands = 0 : i64, tpu.core_type = #tpu.core_type<tc>, window_params = [{transform_indices = @transform_0, window_bounds = array<i64: 176, 1152>}, {pipeline_mode = #tpu.pipeline_mode<synchronous>, transform_indices = @transform_1, window_bounds = array<i64: 1152, 128>}, {pipeline_mode = #tpu.pipeline_mode<synchronous>, transform_indices = @transform_2, window_bounds = array<i64: 1, 128>}, {transform_indices = @transform_3, window_bounds = array<i64: 176, 128>}]} {
    %c0 = arith.constant 0 : index
    %c0_0 = arith.constant 0 : index
    %0 = vector.load %arg1[%c0, %c0_0] : memref<176x1152xf32, #tpu.memory_space<vmem>>, vector<176x1152xf32>
    %c0_1 = arith.constant 0 : index
    %c0_2 = arith.constant 0 : index
    %1 = vector.load %arg2[%c0_1, %c0_2] : memref<1152x128xf32, #tpu.memory_space<vmem>>, vector<1152x128xf32>
    %cst = arith.constant dense<0.000000e+00> : vector<176x128xf32>
    %2 = tpu.matmul %0, %1, %cst {dimension_numbers = #tpu.dot_dimension_numbers<[1], [0], [0], [1], [0, 0, 1, 1], [], []>} : vector<176x1152xf32>, vector<1152x128xf32>, vector<176x128xf32> -> vector<176x128xf32>
    %c0_3 = arith.constant 0 : index
    %c0_4 = arith.constant 0 : index
    %3 = vector.load %arg3[%c0_3, %c0_4] : memref<1x128xf32, #tpu.memory_space<vmem>>, vector<1x128xf32>
    %4 = vector.broadcast %3 : vector<1x128xf32> to vector<176x128xf32>
    %5 = arith.addf %2, %4 : vector<176x128xf32>
    %cst_5 = arith.constant 0.000000e+00 : f32
    %6 = vector.broadcast %cst_5 : f32 to vector<176x128xf32>
    %7 = arith.maximumf %5, %6 : vector<176x128xf32>
    %c0_6 = arith.constant 0 : index
    %c0_7 = arith.constant 0 : index
    %8 = vector.load %arg4[%c0_6, %c0_7] : memref<176x128xf32, #tpu.memory_space<vmem>>, vector<176x128xf32>
    tpu.vector_store %arg4[%c0_6, %c0_7], %7 {strides = array<i32>} : memref<176x128xf32, #tpu.memory_space<vmem>>, vector<176x128xf32>,
    return
  }
  func.func @transform_0(%arg0: i32) -> (i32, i32) {
    %c0_i32 = arith.constant 0 : i32
    %c0_i32_0 = arith.constant 0 : i32
    return %arg0, %c0_i32 : i32, i32
  }
  func.func @transform_1(%arg0: i32) -> (i32, i32) {
    %c0_i32 = arith.constant 0 : i32
    %c0_i32_0 = arith.constant 0 : i32
    %c0_i32_1 = arith.constant 0 : i32
    return %c0_i32, %c0_i32_0 : i32, i32
  }
  func.func @transform_2(%arg0: i32) -> (i32, i32) {
    %c0_i32 = arith.constant 0 : i32
    %c0_i32_0 = arith.constant 0 : i32
    %c0_i32_1 = arith.constant 0 : i32
    return %c0_i32, %c0_i32_0 : i32, i32
  }
  func.func @transform_3(%arg0: i32) -> (i32, i32) {
    %c0_i32 = arith.constant 0 : i32
    %c0_i32_0 = arith.constant 0 : i32
    return %arg0, %c0_i32 : i32, i32
  }
}

module attributes {stable_mosaic.version = 11 : i64} {
  func.func @_maxpool_kernel(%arg0: i32, %arg1: memref<1x6x2x6x256xf32, #tpu.memory_space<vmem>>, %arg2: memref<1x6x6x128xf32, #tpu.memory_space<vmem>>) attributes {dimension_semantics = [#tpu.dimension_semantics<parallel>], iteration_bounds = array<i64: 2>, scalar_prefetch = 0 : i64, scratch_operands = 0 : i64, tpu.core_type = #tpu.core_type<tc>, window_params = [{transform_indices = @transform_0, window_bounds = array<i64: 1, 6, 2, 6, 256>}, {transform_indices = @transform_1, window_bounds = array<i64: 1, 6, 6, 128>}]} {
    %c0 = arith.constant 0 : index
    %c0_0 = arith.constant 0 : index
    %c0_1 = arith.constant 0 : index
    %c0_2 = arith.constant 0 : index
    %c0_3 = arith.constant 0 : index
    %0 = vector.load %arg1[%c0, %c0_0, %c0_1, %c0_2, %c0_3] : memref<1x6x2x6x256xf32, #tpu.memory_space<vmem>>, vector<1x6x2x6x256xf32>
    %cst = arith.constant dense<0xFF800000> : vector<1x6x6x256xf32>
    %1 = vector.multi_reduction <maximumf>, %0, %cst [2] : vector<1x6x2x6x256xf32> to vector<1x6x6x256xf32>
    %2 = vector.extract_strided_slice %1 {offsets = [0, 0, 0, 0], sizes = [1, 6, 6, 128], strides = [1, 1, 1, 1]} : vector<1x6x6x256xf32> to vector<1x6x6x128xf32>
    %3 = vector.extract_strided_slice %1 {offsets = [0, 0, 0, 128], sizes = [1, 6, 6, 128], strides = [1, 1, 1, 1]} : vector<1x6x6x256xf32> to vector<1x6x6x128xf32>
    %4 = arith.maximumf %2, %3 : vector<1x6x6x128xf32>
    %c0_4 = arith.constant 0 : index
    %c0_5 = arith.constant 0 : index
    %c0_6 = arith.constant 0 : index
    %c0_7 = arith.constant 0 : index
    %5 = vector.load %arg2[%c0_4, %c0_5, %c0_6, %c0_7] : memref<1x6x6x128xf32, #tpu.memory_space<vmem>>, vector<1x6x6x128xf32>
    tpu.vector_store %arg2[%c0_4, %c0_5, %c0_6, %c0_7], %4 {strides = array<i32>} : memref<1x6x6x128xf32, #tpu.memory_space<vmem>>, vector<1x6x6x128xf32>,
    return
  }
  func.func @transform_0(%arg0: i32) -> (i32, i32, i32, i32, i32) {
    %c0_i32 = arith.constant 0 : i32
    %c0_i32_0 = arith.constant 0 : i32
    %c0_i32_1 = arith.constant 0 : i32
    %c0_i32_2 = arith.constant 0 : i32
    %c0_i32_3 = arith.constant 0 : i32
    return %arg0, %c0_i32, %c0_i32_0, %c0_i32_1, %c0_i32_2 : i32, i32, i32, i32, i32
  }
  func.func @transform_1(%arg0: i32) -> (i32, i32, i32, i32) {
    %c0_i32 = arith.constant 0 : i32
    %c0_i32_0 = arith.constant 0 : i32
    %c0_i32_1 = arith.constant 0 : i32
    %c0_i32_2 = arith.constant 0 : i32
    return %arg0, %c0_i32, %c0_i32_0, %c0_i32_1 : i32, i32, i32, i32
  }
}

module attributes {stable_mosaic.version = 11 : i64} {
  func.func @_matmul_bias_act_kernel(%arg0: i32, %arg1: memref<16x1152xf32, #tpu.memory_space<vmem>>, %arg2: memref<1152x128xf32, #tpu.memory_space<vmem>>, %arg3: memref<1x128xf32, #tpu.memory_space<vmem>>, %arg4: memref<16x128xf32, #tpu.memory_space<vmem>>) attributes {dimension_semantics = [#tpu.dimension_semantics<parallel>], iteration_bounds = array<i64: 2>, scalar_prefetch = 0 : i64, scratch_operands = 0 : i64, tpu.core_type = #tpu.core_type<tc>, window_params = [{transform_indices = @transform_0, window_bounds = array<i64: 16, 1152>}, {pipeline_mode = #tpu.pipeline_mode<synchronous>, transform_indices = @transform_1, window_bounds = array<i64: 1152, 128>}, {pipeline_mode = #tpu.pipeline_mode<synchronous>, transform_indices = @transform_2, window_bounds = array<i64: 1, 128>}, {transform_indices = @transform_3, window_bounds = array<i64: 16, 128>}]} {
    %c0 = arith.constant 0 : index
    %c0_0 = arith.constant 0 : index
    %0 = vector.load %arg1[%c0, %c0_0] : memref<16x1152xf32, #tpu.memory_space<vmem>>, vector<16x1152xf32>
    %c0_1 = arith.constant 0 : index
    %c0_2 = arith.constant 0 : index
    %1 = vector.load %arg2[%c0_1, %c0_2] : memref<1152x128xf32, #tpu.memory_space<vmem>>, vector<1152x128xf32>
    %cst = arith.constant dense<0.000000e+00> : vector<16x128xf32>
    %2 = tpu.matmul %0, %1, %cst {dimension_numbers = #tpu.dot_dimension_numbers<[1], [0], [0], [1], [0, 0, 1, 1], [], []>} : vector<16x1152xf32>, vector<1152x128xf32>, vector<16x128xf32> -> vector<16x128xf32>
    %c0_3 = arith.constant 0 : index
    %c0_4 = arith.constant 0 : index
    %3 = vector.load %arg3[%c0_3, %c0_4] : memref<1x128xf32, #tpu.memory_space<vmem>>, vector<1x128xf32>
    %4 = vector.broadcast %3 : vector<1x128xf32> to vector<16x128xf32>
    %5 = arith.addf %2, %4 : vector<16x128xf32>
    %cst_5 = arith.constant 0.000000e+00 : f32
    %6 = vector.broadcast %cst_5 : f32 to vector<16x128xf32>
    %7 = arith.maximumf %5, %6 : vector<16x128xf32>
    %c0_6 = arith.constant 0 : index
    %c0_7 = arith.constant 0 : index
    %8 = vector.load %arg4[%c0_6, %c0_7] : memref<16x128xf32, #tpu.memory_space<vmem>>, vector<16x128xf32>
    tpu.vector_store %arg4[%c0_6, %c0_7], %7 {strides = array<i32>} : memref<16x128xf32, #tpu.memory_space<vmem>>, vector<16x128xf32>,
    return
  }
  func.func @transform_0(%arg0: i32) -> (i32, i32) {
    %c0_i32 = arith.constant 0 : i32
    %c0_i32_0 = arith.constant 0 : i32
    return %arg0, %c0_i32 : i32, i32
  }
  func.func @transform_1(%arg0: i32) -> (i32, i32) {
    %c0_i32 = arith.constant 0 : i32
    %c0_i32_0 = arith.constant 0 : i32
    %c0_i32_1 = arith.constant 0 : i32
    return %c0_i32, %c0_i32_0 : i32, i32
  }
  func.func @transform_2(%arg0: i32) -> (i32, i32) {
    %c0_i32 = arith.constant 0 : i32
    %c0_i32_0 = arith.constant 0 : i32
    %c0_i32_1 = arith.constant 0 : i32
    return %c0_i32, %c0_i32_0 : i32, i32
  }
  func.func @transform_3(%arg0: i32) -> (i32, i32) {
    %c0_i32 = arith.constant 0 : i32
    %c0_i32_0 = arith.constant 0 : i32
    return %arg0, %c0_i32 : i32, i32
  }
}

module attributes {stable_mosaic.version = 11 : i64} {
  func.func @_matmul_bias_act_kernel(%arg0: i32, %arg1: memref<8x2048xf32, #tpu.memory_space<vmem>>, %arg2: memref<2048x128xf32, #tpu.memory_space<vmem>>, %arg3: memref<1x128xf32, #tpu.memory_space<vmem>>, %arg4: memref<8x128xf32, #tpu.memory_space<vmem>>) attributes {dimension_semantics = [#tpu.dimension_semantics<parallel>], iteration_bounds = array<i64: 1>, scalar_prefetch = 0 : i64, scratch_operands = 0 : i64, tpu.core_type = #tpu.core_type<tc>, window_params = [{transform_indices = @transform_0, window_bounds = array<i64: 8, 2048>}, {pipeline_mode = #tpu.pipeline_mode<synchronous>, transform_indices = @transform_1, window_bounds = array<i64: 2048, 128>}, {pipeline_mode = #tpu.pipeline_mode<synchronous>, transform_indices = @transform_2, window_bounds = array<i64: 1, 128>}, {transform_indices = @transform_3, window_bounds = array<i64: 8, 128>}]} {
    %c0 = arith.constant 0 : index
    %c0_0 = arith.constant 0 : index
    %0 = vector.load %arg1[%c0, %c0_0] : memref<8x2048xf32, #tpu.memory_space<vmem>>, vector<8x2048xf32>
    %c0_1 = arith.constant 0 : index
    %c0_2 = arith.constant 0 : index
    %1 = vector.load %arg2[%c0_1, %c0_2] : memref<2048x128xf32, #tpu.memory_space<vmem>>, vector<2048x128xf32>
    %cst = arith.constant dense<0.000000e+00> : vector<8x128xf32>
    %2 = tpu.matmul %0, %1, %cst {dimension_numbers = #tpu.dot_dimension_numbers<[1], [0], [0], [1], [0, 0, 1, 1], [], []>} : vector<8x2048xf32>, vector<2048x128xf32>, vector<8x128xf32> -> vector<8x128xf32>
    %c0_3 = arith.constant 0 : index
    %c0_4 = arith.constant 0 : index
    %3 = vector.load %arg3[%c0_3, %c0_4] : memref<1x128xf32, #tpu.memory_space<vmem>>, vector<1x128xf32>
    %4 = vector.broadcast %3 : vector<1x128xf32> to vector<8x128xf32>
    %5 = arith.addf %2, %4 : vector<8x128xf32>
    %c0_5 = arith.constant 0 : index
    %c0_6 = arith.constant 0 : index
    %6 = vector.load %arg4[%c0_5, %c0_6] : memref<8x128xf32, #tpu.memory_space<vmem>>, vector<8x128xf32>
    tpu.vector_store %arg4[%c0_5, %c0_6], %5 {strides = array<i32>} : memref<8x128xf32, #tpu.memory_space<vmem>>, vector<8x128xf32>,
    return
  }
  func.func @transform_0(%arg0: i32) -> (i32, i32) {
    %c0_i32 = arith.constant 0 : i32
    %c0_i32_0 = arith.constant 0 : i32
    return %arg0, %c0_i32 : i32, i32
  }
  func.func @transform_1(%arg0: i32) -> (i32, i32) {
    %c0_i32 = arith.constant 0 : i32
    %c0_i32_0 = arith.constant 0 : i32
    %c0_i32_1 = arith.constant 0 : i32
    return %c0_i32, %c0_i32_0 : i32, i32
  }
  func.func @transform_2(%arg0: i32) -> (i32, i32) {
    %c0_i32 = arith.constant 0 : i32
    %c0_i32_0 = arith.constant 0 : i32
    %c0_i32_1 = arith.constant 0 : i32
    return %c0_i32, %c0_i32_0 : i32, i32
  }
  func.func @transform_3(%arg0: i32) -> (i32, i32) {
    %c0_i32 = arith.constant 0 : i32
    %c0_i32_0 = arith.constant 0 : i32
    return %arg0, %c0_i32 : i32, i32
  }
}

</mosaic_0001>

<llo_original>
// kernel: cnn_cifar_forward.6
$region0: #{cnn_cifar_forward.6}
  #allocation0 [shape = 'u32[]', space=smem, size = 0x4, offset = 0x4, fixed_abs, tag = 'smem constant byte address 0x4 - core index']
  #allocation1 [shape = 'u32[72,128]{1,0:T(1,128)}', space=vmem, size = 0x9000, scoped, tag = 'internal scratch']
  %s0 = inlined_call_operand.vmem [shape: f32[1824,32], index: 0, kind: input, shape index: {}]
  %s1 = inlined_call_operand.vmem [shape: f32[32,128], index: 1, kind: input, shape index: {}]
  %s2 = inlined_call_operand.vmem [shape: f32[1,128], index: 2, kind: input, shape index: {}]
  %s3 = inlined_call_operand.vmem [shape: f32[1824,128], index: 3, kind: output, shape index: {}]
  %s4 = sld [smem:[#allocation0]]
  $region45: #{cnn_cifar_forward.6} parent=0
    _
  %s6 = ssub.s32 1, %s4
  %s7 = scalar_select 0, %s6, %s4
  loop: start=0, step=1, limit=6
  $region2: #{cnn_cifar_forward.6} parent=0 // loop_pre_header
    _
  $region3: #{cnn_cifar_forward.6} parent=0 // loop_header
    %s9 = sphi 0, %s13
    %p10 = scmp.ge.s32.totalorder %s9, 6
    %s19 = sphi 0, %s21
    %s22 = sphi 0, %s19
    %s23 = sphi 0, %s22
    %s39 = sphi 0, %s23
    %s43 = sphi 0, %s43
    %s45 = sphi 0, %s43
    %s46 = sphi 0, %s45
    %s60 = sphi 0, %s46
    %s64 = sphi 0, %s64
    %s66 = sphi 0, %s64
    %s67 = sphi 0, %s66
    %s81 = sphi 0, %s67
    %s87 = sphi 0, %s89
    %s90 = sphi 0, %s87
    %s91 = sphi 0, %s90
    %s107 = sphi 0, %s91
  $region4: #{cnn_cifar_forward.6} parent=0 // loop_header_branch
    %12 = sbr.rel (%p10) target = $region8
  $region5: #{cnn_cifar_forward.6} parent=0 // loop_body
    %s14 = ssub.s32 %s9, 1
    %s15 = ssub.s32 %s9, 2
    %s16 = sadd.s32 %s9, 1
    %s17 = ssub.s32 %s9, %s16
    %p18 = scmp.eq.s32.totalorder %s17, 0
    %s20 = sadd.s32 %s19, 1
    %s21 = scalar_select %p18, %s19, %s20
    %p24 = pneg %p18
    %p25 = scmp.eq.s32.totalorder %s9, 3
    %p26 = por %p24, %p25
    %p27 = scmp.ne.s32.totalorder %s19, %s22
    %p28 = scmp.eq.s32.totalorder %s9, 0
    %p29 = por %p27, %p28
    %p30 = scmp.ne.s32.totalorder %s19, %s22
    %p31 = scmp.eq.s32.totalorder %s14, 3
    %p32 = por %p30, %p31
    %p33 = scmp.ne.s32.totalorder %s22, %s23
    %p34 = scmp.eq.s32.totalorder %s14, 0
    %p35 = por %p33, %p34
    %p36 = scmp.ne.s32.totalorder %s22, %s23
    %p37 = scmp.eq.s32.totalorder %s15, 3
    %p38 = por %p36, %p37
    %p40 = scmp.ne.s32.totalorder %s23, %s39
    %p41 = scmp.eq.s32.totalorder %s15, 0
    %p42 = por %p40, %p41
    %s44 = sadd.s32 %s43, 1
    %p47 = scmp.eq.s32.totalorder %s9, 3
    %p48 = scmp.ne.s32.totalorder %s43, %s45
    %p49 = scmp.eq.s32.totalorder %s9, 0
    %p50 = por %p48, %p49
    %p51 = scmp.ne.s32.totalorder %s43, %s45
    %p52 = scmp.eq.s32.totalorder %s14, 3
    %p53 = por %p51, %p52
    %p54 = scmp.ne.s32.totalorder %s45, %s46
    %p55 = scmp.eq.s32.totalorder %s14, 0
    %p56 = por %p54, %p55
    %p57 = scmp.ne.s32.totalorder %s45, %s46
    %p58 = scmp.eq.s32.totalorder %s15, 3
    %p59 = por %p57, %p58
    %p61 = scmp.ne.s32.totalorder %s46, %s60
    %p62 = scmp.eq.s32.totalorder %s15, 0
    %p63 = por %p61, %p62
    %s65 = sadd.s32 %s64, 1
    %p68 = scmp.eq.s32.totalorder %s9, 3
    %p69 = scmp.ne.s32.totalorder %s64, %s66
    %p70 = scmp.eq.s32.totalorder %s9, 0
    %p71 = por %p69, %p70
    %p72 = scmp.ne.s32.totalorder %s64, %s66
    %p73 = scmp.eq.s32.totalorder %s14, 3
    %p74 = por %p72, %p73
    %p75 = scmp.ne.s32.totalorder %s66, %s67
    %p76 = scmp.eq.s32.totalorder %s14, 0
    %p77 = por %p75, %p76
    %p78 = scmp.ne.s32.totalorder %s66, %s67
    %p79 = scmp.eq.s32.totalorder %s15, 3
    %p80 = por %p78, %p79
    %p82 = scmp.ne.s32.totalorder %s67, %s81
    %p83 = scmp.eq.s32.totalorder %s15, 0
    %p84 = por %p82, %p83
    %s85 = ssub.s32 %s9, %s16
    %p86 = scmp.eq.s32.totalorder %s85, 0
    %s88 = sadd.s32 %s87, 1
    %s89 = scalar_select %p86, %s87, %s88
    %p92 = pneg %p86
    %p93 = scmp.eq.s32.totalorder %s9, 3
    %p94 = por %p92, %p93
    %p95 = scmp.ne.s32.totalorder %s87, %s90
    %p96 = scmp.eq.s32.totalorder %s9, 0
    %p97 = por %p95, %p96
    %p98 = scmp.ne.s32.totalorder %s87, %s90
    %p99 = scmp.eq.s32.totalorder %s14, 3
    %p100 = por %p98, %p99
    %p101 = scmp.ne.s32.totalorder %s90, %s91
    %p102 = scmp.eq.s32.totalorder %s14, 0
    %p103 = por %p101, %p102
    %p104 = scmp.ne.s32.totalorder %s90, %s91
    %p105 = scmp.eq.s32.totalorder %s15, 3
    %p106 = por %p104, %p105
    %p108 = scmp.ne.s32.totalorder %s91, %s107
    %p109 = scmp.eq.s32.totalorder %s15, 0
    %p110 = por %p108, %p109
    %p111 = scmp.le.s32.totalorder 1, %s9
    %p112 = scmp.lt.s32.totalorder %s9, 5
    %p113 = pnand %p111, %p112
    %p114 = pneg %p113
    // Predicated region
    $region9: #{cnn_cifar_forward.6} parent=5 // pred_check
      _
    $region10: #{cnn_cifar_forward.6} parent=5 // pred_check_branch
      %116 = sbr.rel (%p113) target = $region12
    $region11: #{cnn_cifar_forward.6} parent=5 // pred_region
      %s117 = ssub.s32 %s9, 1
      // Predicated region
      $region13: #{cnn_cifar_forward.6} parent=11 // pred_check
        %p118 = pneg %p56
      $region14: #{cnn_cifar_forward.6} parent=11 // pred_check_branch
        %120 = sbr.rel (%p118) target = $region16
      $region15: #{cnn_cifar_forward.6} parent=11 // pred_region
        _
      $region16: #{cnn_cifar_forward.6} parent=11 // pred_fallthru
        _
      // Predicated region
      $region17: #{cnn_cifar_forward.6} parent=11 // pred_check
        %p121 = pneg %p77
      $region18: #{cnn_cifar_forward.6} parent=11 // pred_check_branch
        %123 = sbr.rel (%p121) target = $region20
      $region19: #{cnn_cifar_forward.6} parent=11 // pred_region
        _
      $region20: #{cnn_cifar_forward.6} parent=11 // pred_fallthru
        _
    $region12: #{cnn_cifar_forward.6} parent=5 // pred_fallthru
      _
    %p124 = scmp.lt.s32.totalorder %s9, 4
    // Predicated region
    $region21: #{cnn_cifar_forward.6} parent=5 // pred_check
      %p125 = pneg %p124
    $region22: #{cnn_cifar_forward.6} parent=5 // pred_check_branch
      %127 = sbr.rel (%p125) target = $region24
    $region23: #{cnn_cifar_forward.6} parent=5 // pred_region
      // Predicated region
      $region25: #{cnn_cifar_forward.6} parent=23 // pred_check
        %p128 = pneg %p29
      $region26: #{cnn_cifar_forward.6} parent=23 // pred_check_branch
        %130 = sbr.rel (%p128) target = $region28
      $region27: #{cnn_cifar_forward.6} parent=23 // pred_region
        %s131 = smul.u32 57, %s9
        %p132 = scmp.lt.s32.totalorder %s131, 227
        %s133 = scalar_select %p132, %s131, 227
        %s134 = smul.addr %s133, 8
        %s135 = scalar_lea.vmem %s0, %s134
        %s136 = smul.u32 57, %s9
      $region28: #{cnn_cifar_forward.6} parent=23 // pred_fallthru
        _
    $region24: #{cnn_cifar_forward.6} parent=5 // pred_fallthru
      _
    %p137 = scmp.le.s32.totalorder 1, %s9
    %p138 = scmp.lt.s32.totalorder %s9, 5
    %p139 = pnand %p137, %p138
    %p140 = pneg %p139
    // Predicated region
    $region29: #{cnn_cifar_forward.6} parent=5 // pred_check
      _
    $region30: #{cnn_cifar_forward.6} parent=5 // pred_check_branch
      %142 = sbr.rel (%p139) target = $region32
    $region31: #{cnn_cifar_forward.6} parent=5 // pred_region
      %s143 = ssub.s32 %s9, 1
      %s144 = smul.u32 57, %s14
      %p145 = scmp.lt.s32.totalorder %s144, 227
      %s146 = scalar_select %p145, %s144, 227
      %s147 = smul.addr %s146, 8
      %s148 = scalar_lea.vmem %s0, %s147
      %p149 = pneg %p35
      %p150 = pneg %p32
      %p151 = pneg %p56
      %p152 = pneg %p53
      %p153 = pneg %p77
      %p154 = pneg %p74
      %p155 = pneg %p103
      %p156 = pneg %p100
      %s157 = smul.u32 57, %s14
      %p158 = scmp.lt.s32.totalorder %s157, 227
      %s159 = scalar_select %p158, %s157, 227
      %s160 = smul.addr %s159, 8
      %s161 = scalar_lea.vmem %s3, %s160
      %s162 = smul.u32 57, %s14
      %p163 = scmp.lt.s32.totalorder %s162, 227
      %s164 = scalar_select %p163, %s162, 227
      %s165 = smul.addr %s164, 8
      %s166 = scalar_lea.vmem %s0, %s165
      %s167 = smul.u32 57, %s14
      %s168 = smul.u32 57, %s14
      %p169 = scmp.lt.s32.totalorder %s168, 227
      %s170 = scalar_select %p169, %s168, 227
      %s171 = smul.addr %s170, 8
      %s172 = scalar_lea.vmem %s3, %s171
      %s173 = smul.u32 57, %s14
      %v174 = vld [vmem:[%s166] sm:$0xff]
      %v175 = vld [vmem:[%s166 + $0x8] sm:$0xff]
      %v176 = vld [vmem:[%s166 + $0x10] sm:$0xff]
      %v177 = vld [vmem:[%s166 + $0x18] sm:$0xff]
      %v178 = vld [vmem:[%s166 + $0x20] sm:$0xff]
      %v179 = vld [vmem:[%s166 + $0x28] sm:$0xff]
      %v180 = vld [vmem:[%s166 + $0x30] sm:$0xff]
      %v181 = vld [vmem:[%s166 + $0x38] sm:$0xff]
      %v182 = vld [vmem:[%s166 + $0x40] sm:$0xff]
      %v183 = vld [vmem:[%s166 + $0x48] sm:$0xff]
      %v184 = vld [vmem:[%s166 + $0x50] sm:$0xff]
      %v185 = vld [vmem:[%s166 + $0x58] sm:$0xff]
      %v186 = vld [vmem:[%s166 + $0x60] sm:$0xff]
      %v187 = vld [vmem:[%s166 + $0x68] sm:$0xff]
      %v188 = vld [vmem:[%s166 + $0x70] sm:$0xff]
      %v189 = vld [vmem:[%s166 + $0x78] sm:$0xff]
      %v190 = vld [vmem:[%s166 + $0x80] sm:$0xff]
      %v191 = vld [vmem:[%s166 + $0x88] sm:$0xff]
      %v192 = vld [vmem:[%s166 + $0x90] sm:$0xff]
      %v193 = vld [vmem:[%s166 + $0x98] sm:$0xff]
      %v194 = vld [vmem:[%s166 + $0xa0] sm:$0xff]
      %v195 = vld [vmem:[%s166 + $0xa8] sm:$0xff]
      %v196 = vld [vmem:[%s166 + $0xb0] sm:$0xff]
      %v197 = vld [vmem:[%s166 + $0xb8] sm:$0xff]
      %v198 = vld [vmem:[%s166 + $0xc0] sm:$0xff]
      %v199 = vld [vmem:[%s166 + $0xc8] sm:$0xff]
      %v200 = vld [vmem:[%s166 + $0xd0] sm:$0xff]
      %v201 = vld [vmem:[%s166 + $0xd8] sm:$0xff]
      %v202 = vld [vmem:[%s166 + $0xe0] sm:$0xff]
      %v203 = vld [vmem:[%s166 + $0xe8] sm:$0xff]
      %v204 = vld [vmem:[%s166 + $0xf0] sm:$0xff]
      %v205 = vld [vmem:[%s166 + $0xf8] sm:$0xff]
      %v206 = vld [vmem:[%s166 + $0x100] sm:$0xff]
      %v207 = vld [vmem:[%s166 + $0x108] sm:$0xff]
      %v208 = vld [vmem:[%s166 + $0x110] sm:$0xff]
      %v209 = vld [vmem:[%s166 + $0x118] sm:$0xff]
      %v210 = vld [vmem:[%s166 + $0x120] sm:$0xff]
      %v211 = vld [vmem:[%s166 + $0x128] sm:$0xff]
      %v212 = vld [vmem:[%s166 + $0x130] sm:$0xff]
      %v213 = vld [vmem:[%s166 + $0x138] sm:$0xff]
      %v214 = vld [vmem:[%s166 + $0x140] sm:$0xff]
      %v215 = vld [vmem:[%s166 + $0x148] sm:$0xff]
      %v216 = vld [vmem:[%s166 + $0x150] sm:$0xff]
      %v217 = vld [vmem:[%s166 + $0x158] sm:$0xff]
      %v218 = vld [vmem:[%s166 + $0x160] sm:$0xff]
      %v219 = vld [vmem:[%s166 + $0x168] sm:$0xff]
      %v220 = vld [vmem:[%s166 + $0x170] sm:$0xff]
      %v221 = vld [vmem:[%s166 + $0x178] sm:$0xff]
      %v222 = vld [vmem:[%s166 + $0x180] sm:$0xff]
      %v223 = vld [vmem:[%s166 + $0x188] sm:$0xff]
      %v224 = vld [vmem:[%s166 + $0x190] sm:$0xff]
      %v225 = vld [vmem:[%s166 + $0x198] sm:$0xff]
      %v226 = vld [vmem:[%s166 + $0x1a0] sm:$0xff]
      %v227 = vld [vmem:[%s166 + $0x1a8] sm:$0xff]
      %v228 = vld [vmem:[%s166 + $0x1b0] sm:$0xff]
      %v229 = vld [vmem:[%s166 + $0x1b8] sm:$0xff]
      %v230 = vld [vmem:[%s166 + $0x1c0] sm:$0xff]
      %v231 = vld [vmem:[%s1] sm:$0xff]
      %v232 = vld [vmem:[%s1 + $0x8] sm:$0xff]
      %v233 = vld [vmem:[%s1 + $0x10] sm:$0xff]
      %v234 = vld [vmem:[%s1 + $0x18] sm:$0xff]
      %v235 = vld [vmem:[%s2] sm:$0x1]
      %v237 = vperm.slane %v235, 0
      %vm239 = vcmask 261120
      %v241 = vsel %vm239, %v174, 0
      %v244 = vsel %vm239, %v175, 0
      %v247 = vsel %vm239, %v176, 0
      %v250 = vsel %vm239, %v177, 0
      %v253 = vsel %vm239, %v178, 0
      %v256 = vsel %vm239, %v179, 0
      %v259 = vsel %vm239, %v180, 0
      %v262 = vsel %vm239, %v181, 0
      %v265 = vsel %vm239, %v182, 0
      %v268 = vsel %vm239, %v183, 0
      %v271 = vsel %vm239, %v184, 0
      %v274 = vsel %vm239, %v185, 0
      %v277 = vsel %vm239, %v186, 0
      %v280 = vsel %vm239, %v187, 0
      %v283 = vsel %vm239, %v188, 0
      %v286 = vsel %vm239, %v189, 0
      %v289 = vsel %vm239, %v190, 0
      %v292 = vsel %vm239, %v191, 0
      %v295 = vsel %vm239, %v192, 0
      %v298 = vsel %vm239, %v193, 0
      %v301 = vsel %vm239, %v194, 0
      %v304 = vsel %vm239, %v195, 0
      %v307 = vsel %vm239, %v196, 0
      %v310 = vsel %vm239, %v197, 0
      %v313 = vsel %vm239, %v198, 0
      %v316 = vsel %vm239, %v199, 0
      %v319 = vsel %vm239, %v200, 0
      %v322 = vsel %vm239, %v201, 0
      %v325 = vsel %vm239, %v202, 0
      %v328 = vsel %vm239, %v203, 0
      %v331 = vsel %vm239, %v204, 0
      %v334 = vsel %vm239, %v205, 0
      %v337 = vsel %vm239, %v206, 0
      %v340 = vsel %vm239, %v207, 0
      %v343 = vsel %vm239, %v208, 0
      %v346 = vsel %vm239, %v209, 0
      %v349 = vsel %vm239, %v210, 0
      %v352 = vsel %vm239, %v211, 0
      %v355 = vsel %vm239, %v212, 0
      %v358 = vsel %vm239, %v213, 0
      %v361 = vsel %vm239, %v214, 0
      %v364 = vsel %vm239, %v215, 0
      %v367 = vsel %vm239, %v216, 0
      %v370 = vsel %vm239, %v217, 0
      %v373 = vsel %vm239, %v218, 0
      %v376 = vsel %vm239, %v219, 0
      %v379 = vsel %vm239, %v220, 0
      %v382 = vsel %vm239, %v221, 0
      %v385 = vsel %vm239, %v222, 0
      %v388 = vsel %vm239, %v223, 0
      %v391 = vsel %vm239, %v224, 0
      %v394 = vsel %vm239, %v225, 0
      %v397 = vsel %vm239, %v226, 0
      %v400 = vsel %vm239, %v227, 0
      %v403 = vsel %vm239, %v228, 0
      %v406 = vsel %vm239, %v229, 0
      %v409 = vsel %vm239, %v230, 0
      %411 = vmatpush.msra.mxu0 0.0
      %412 = vmatpush.msra.mxu0 0.0
      %413 = vmatpush.msra.mxu0 0.0
      %414 = vmatpush.msra.mxu0 0.0
      %415 = vmatpush.msra.mxu0 0.0
      %416 = vmatpush.msra.mxu0 0.0
      %417 = vmatpush.msra.mxu0 0.0
      %418 = vmatpush.msra.mxu0 0.0
      %419 = vmatpush.msra.mxu0 0.0
      %420 = vmatpush.msra.mxu0 0.0
      %421 = vmatpush.msra.mxu0 0.0
      %422 = vmatpush.msra.mxu0 0.0
      %423 = vmatpush.msra.mxu0 %v234
      %424 = vmatpush.msra.mxu0 %v233
      %425 = vmatpush.msra.mxu0 %v232
      %426 = vmatpush.msra.mxu0 %v231
      %427 = vmatmul.f32.gmra.mxu0 %v241
      %v428 = vpop.f32.mrf.mxu0
      %v429 = vadd.f32 %v237, %v428
      %430 = vmatmul.f32.gmra.mxu0 %v244
      %v431 = vpop.f32.mrf.mxu0
      %v432 = vadd.f32 %v237, %v431
      %433 = vmatmul.f32.gmra.mxu0 %v247
      %v434 = vpop.f32.mrf.mxu0
      %v435 = vadd.f32 %v237, %v434
      %436 = vmatmul.f32.gmra.mxu0 %v250
      %v437 = vpop.f32.mrf.mxu0
      %v438 = vadd.f32 %v237, %v437
      %439 = vmatmul.f32.gmra.mxu0 %v253
      %v440 = vpop.f32.mrf.mxu0
      %v441 = vadd.f32 %v237, %v440
      %442 = vmatmul.f32.gmra.mxu0 %v256
      %v443 = vpop.f32.mrf.mxu0
      %v444 = vadd.f32 %v237, %v443
      %445 = vmatmul.f32.gmra.mxu0 %v259
      %v446 = vpop.f32.mrf.mxu0
      %v447 = vadd.f32 %v237, %v446
      %448 = vmatmul.f32.gmra.mxu0 %v262
      %v449 = vpop.f32.mrf.mxu0
      %v450 = vadd.f32 %v237, %v449
      %451 = vmatmul.f32.gmra.mxu0 %v265
      %v452 = vpop.f32.mrf.mxu0
      %v453 = vadd.f32 %v237, %v452
      %454 = vmatmul.f32.gmra.mxu0 %v268
      %v455 = vpop.f32.mrf.mxu0
      %v456 = vadd.f32 %v237, %v455
      %457 = vmatmul.f32.gmra.mxu0 %v271
      %v458 = vpop.f32.mrf.mxu0
      %v459 = vadd.f32 %v237, %v458
      %460 = vmatmul.f32.gmra.mxu0 %v274
      %v461 = vpop.f32.mrf.mxu0
      %v462 = vadd.f32 %v237, %v461
      %463 = vmatmul.f32.gmra.mxu0 %v277
      %v464 = vpop.f32.mrf.mxu0
      %v465 = vadd.f32 %v237, %v464
      %466 = vmatmul.f32.gmra.mxu0 %v280
      %v467 = vpop.f32.mrf.mxu0
      %v468 = vadd.f32 %v237, %v467
      %469 = vmatmul.f32.gmra.mxu0 %v283
      %v470 = vpop.f32.mrf.mxu0
      %v471 = vadd.f32 %v237, %v470
      %472 = vmatmul.f32.gmra.mxu0 %v286
      %v473 = vpop.f32.mrf.mxu0
      %v474 = vadd.f32 %v237, %v473
      %475 = vmatmul.f32.gmra.mxu0 %v289
      %v476 = vpop.f32.mrf.mxu0
      %v477 = vadd.f32 %v237, %v476
      %478 = vmatmul.f32.gmra.mxu0 %v292
      %v479 = vpop.f32.mrf.mxu0
      %v480 = vadd.f32 %v237, %v479
      %481 = vmatmul.f32.gmra.mxu0 %v295
      %v482 = vpop.f32.mrf.mxu0
      %v483 = vadd.f32 %v237, %v482
      %484 = vmatmul.f32.gmra.mxu0 %v298
      %v485 = vpop.f32.mrf.mxu0
      %v486 = vadd.f32 %v237, %v485
      %487 = vmatmul.f32.gmra.mxu0 %v301
      %v488 = vpop.f32.mrf.mxu0
      %v489 = vadd.f32 %v237, %v488
      %490 = vmatmul.f32.gmra.mxu0 %v304
      %v491 = vpop.f32.mrf.mxu0
      %v492 = vadd.f32 %v237, %v491
      %493 = vmatmul.f32.gmra.mxu0 %v307
      %v494 = vpop.f32.mrf.mxu0
      %v495 = vadd.f32 %v237, %v494
      %496 = vmatmul.f32.gmra.mxu0 %v310
      %v497 = vpop.f32.mrf.mxu0
      %v498 = vadd.f32 %v237, %v497
      %499 = vmatmul.f32.gmra.mxu0 %v313
      %v500 = vpop.f32.mrf.mxu0
      %v501 = vadd.f32 %v237, %v500
      %502 = vmatmul.f32.gmra.mxu0 %v316
      %v503 = vpop.f32.mrf.mxu0
      %v504 = vadd.f32 %v237, %v503
      %505 = vmatmul.f32.gmra.mxu0 %v319
      %v506 = vpop.f32.mrf.mxu0
      %v507 = vadd.f32 %v237, %v506
      %508 = vmatmul.f32.gmra.mxu0 %v322
      %v509 = vpop.f32.mrf.mxu0
      %v510 = vadd.f32 %v237, %v509
      %511 = vmatmul.f32.gmra.mxu0 %v325
      %v512 = vpop.f32.mrf.mxu0
      %v513 = vadd.f32 %v237, %v512
      %514 = vmatmul.f32.gmra.mxu0 %v328
      %v515 = vpop.f32.mrf.mxu0
      %v516 = vadd.f32 %v237, %v515
      %517 = vmatmul.f32.gmra.mxu0 %v331
      %v518 = vpop.f32.mrf.mxu0
      %v519 = vadd.f32 %v237, %v518
      %520 = vmatmul.f32.gmra.mxu0 %v334
      %v521 = vpop.f32.mrf.mxu0
      %v522 = vadd.f32 %v237, %v521
      %523 = vmatmul.f32.gmra.mxu0 %v337
      %v524 = vpop.f32.mrf.mxu0
      %v525 = vadd.f32 %v237, %v524
      %526 = vmatmul.f32.gmra.mxu0 %v340
      %v527 = vpop.f32.mrf.mxu0
      %v528 = vadd.f32 %v237, %v527
      %529 = vmatmul.f32.gmra.mxu0 %v343
      %v530 = vpop.f32.mrf.mxu0
      %v531 = vadd.f32 %v237, %v530
      %532 = vmatmul.f32.gmra.mxu0 %v346
      %v533 = vpop.f32.mrf.mxu0
      %v534 = vadd.f32 %v237, %v533
      %535 = vmatmul.f32.gmra.mxu0 %v349
      %v536 = vpop.f32.mrf.mxu0
      %v537 = vadd.f32 %v237, %v536
      %538 = vmatmul.f32.gmra.mxu0 %v352
      %v539 = vpop.f32.mrf.mxu0
      %v540 = vadd.f32 %v237, %v539
      %541 = vmatmul.f32.gmra.mxu0 %v355
      %v542 = vpop.f32.mrf.mxu0
      %v543 = vadd.f32 %v237, %v542
      %544 = vmatmul.f32.gmra.mxu0 %v358
      %v545 = vpop.f32.mrf.mxu0
      %v546 = vadd.f32 %v237, %v545
      %547 = vmatmul.f32.gmra.mxu0 %v361
      %v548 = vpop.f32.mrf.mxu0
      %v549 = vadd.f32 %v237, %v548
      %550 = vmatmul.f32.gmra.mxu0 %v364
      %v551 = vpop.f32.mrf.mxu0
      %v552 = vadd.f32 %v237, %v551
      %553 = vmatmul.f32.gmra.mxu0 %v367
      %v554 = vpop.f32.mrf.mxu0
      %v555 = vadd.f32 %v237, %v554
      %556 = vmatmul.f32.gmra.mxu0 %v370
      %v557 = vpop.f32.mrf.mxu0
      %v558 = vadd.f32 %v237, %v557
      %559 = vmatmul.f32.gmra.mxu0 %v373
      %v560 = vpop.f32.mrf.mxu0
      %v561 = vadd.f32 %v237, %v560
      %562 = vmatmul.f32.gmra.mxu0 %v376
      %v563 = vpop.f32.mrf.mxu0
      %v564 = vadd.f32 %v237, %v563
      %565 = vmatmul.f32.gmra.mxu0 %v379
      %v566 = vpop.f32.mrf.mxu0
      %v567 = vadd.f32 %v237, %v566
      %568 = vmatmul.f32.gmra.mxu0 %v382
      %v569 = vpop.f32.mrf.mxu0
      %v570 = vadd.f32 %v237, %v569
      %571 = vmatmul.f32.gmra.mxu0 %v385
      %v572 = vpop.f32.mrf.mxu0
      %v573 = vadd.f32 %v237, %v572
      %574 = vmatmul.f32.gmra.mxu0 %v388
      %v575 = vpop.f32.mrf.mxu0
      %v576 = vadd.f32 %v237, %v575
      %577 = vmatmul.f32.gmra.mxu0 %v391
      %v578 = vpop.f32.mrf.mxu0
      %v579 = vadd.f32 %v237, %v578
      %580 = vmatmul.f32.gmra.mxu0 %v394
      %v581 = vpop.f32.mrf.mxu0
      %v582 = vadd.f32 %v237, %v581
      %583 = vmatmul.f32.gmra.mxu0 %v397
      %v584 = vpop.f32.mrf.mxu0
      %v585 = vadd.f32 %v237, %v584
      %586 = vmatmul.f32.gmra.mxu0 %v400
      %v587 = vpop.f32.mrf.mxu0
      %v588 = vadd.f32 %v237, %v587
      %589 = vmatmul.f32.gmra.mxu0 %v403
      %v590 = vpop.f32.mrf.mxu0
      %v591 = vadd.f32 %v237, %v590
      %592 = vmatmul.f32.gmra.mxu0 %v406
      %v593 = vpop.f32.mrf.mxu0
      %v594 = vadd.f32 %v237, %v593
      %595 = vmatmul.f32.gmra.mxu0 %v409
      %v596 = vpop.f32.mrf.mxu0
      %v597 = vadd.f32 %v237, %v596
      %598 = vdwg.mxu0
      %v599 = vmax.f32 %v429, 0.0
      %v600 = vmax.f32 %v432, 0.0
      %v601 = vmax.f32 %v435, 0.0
      %v602 = vmax.f32 %v438, 0.0
      %v603 = vmax.f32 %v441, 0.0
      %v604 = vmax.f32 %v444, 0.0
      %v605 = vmax.f32 %v447, 0.0
      %v606 = vmax.f32 %v450, 0.0
      %v607 = vmax.f32 %v453, 0.0
      %v608 = vmax.f32 %v456, 0.0
      %v609 = vmax.f32 %v459, 0.0
      %v610 = vmax.f32 %v462, 0.0
      %v611 = vmax.f32 %v465, 0.0
      %v612 = vmax.f32 %v468, 0.0
      %v613 = vmax.f32 %v471, 0.0
      %v614 = vmax.f32 %v474, 0.0
      %v615 = vmax.f32 %v477, 0.0
      %v616 = vmax.f32 %v480, 0.0
      %v617 = vmax.f32 %v483, 0.0
      %v618 = vmax.f32 %v486, 0.0
      %v619 = vmax.f32 %v489, 0.0
      %v620 = vmax.f32 %v492, 0.0
      %v621 = vmax.f32 %v495, 0.0
      %v622 = vmax.f32 %v498, 0.0
      %v623 = vmax.f32 %v501, 0.0
      %v624 = vmax.f32 %v504, 0.0
      %v625 = vmax.f32 %v507, 0.0
      %v626 = vmax.f32 %v510, 0.0
      %v627 = vmax.f32 %v513, 0.0
      %v628 = vmax.f32 %v516, 0.0
      %v629 = vmax.f32 %v519, 0.0
      %v630 = vmax.f32 %v522, 0.0
      %v631 = vmax.f32 %v525, 0.0
      %v632 = vmax.f32 %v528, 0.0
      %v633 = vmax.f32 %v531, 0.0
      %v634 = vmax.f32 %v534, 0.0
      %v635 = vmax.f32 %v537, 0.0
      %v636 = vmax.f32 %v540, 0.0
      %v637 = vmax.f32 %v543, 0.0
      %v638 = vmax.f32 %v546, 0.0
      %v639 = vmax.f32 %v549, 0.0
      %v640 = vmax.f32 %v552, 0.0
      %v641 = vmax.f32 %v555, 0.0
      %v642 = vmax.f32 %v558, 0.0
      %v643 = vmax.f32 %v561, 0.0
      %v644 = vmax.f32 %v564, 0.0
      %v645 = vmax.f32 %v567, 0.0
      %v646 = vmax.f32 %v570, 0.0
      %v647 = vmax.f32 %v573, 0.0
      %v648 = vmax.f32 %v576, 0.0
      %v649 = vmax.f32 %v579, 0.0
      %v650 = vmax.f32 %v582, 0.0
      %v651 = vmax.f32 %v585, 0.0
      %v652 = vmax.f32 %v588, 0.0
      %v653 = vmax.f32 %v591, 0.0
      %v654 = vmax.f32 %v594, 0.0
      %v655 = vmax.f32 %v597, 0.0
      %656 = vst [vmem:[%s172] sm:$0xff] %v599
      %657 = vst [vmem:[%s172 + $0x8] sm:$0xff] %v600
      %658 = vst [vmem:[%s172 + $0x10] sm:$0xff] %v601
      %659 = vst [vmem:[%s172 + $0x18] sm:$0xff] %v602
      %660 = vst [vmem:[%s172 + $0x20] sm:$0xff] %v603
      %661 = vst [vmem:[%s172 + $0x28] sm:$0xff] %v604
      %662 = vst [vmem:[%s172 + $0x30] sm:$0xff] %v605
      %663 = vst [vmem:[%s172 + $0x38] sm:$0xff] %v606
      %664 = vst [vmem:[%s172 + $0x40] sm:$0xff] %v607
      %665 = vst [vmem:[%s172 + $0x48] sm:$0xff] %v608
      %666 = vst [vmem:[%s172 + $0x50] sm:$0xff] %v609
      %667 = vst [vmem:[%s172 + $0x58] sm:$0xff] %v610
      %668 = vst [vmem:[%s172 + $0x60] sm:$0xff] %v611
      %669 = vst [vmem:[%s172 + $0x68] sm:$0xff] %v612
      %670 = vst [vmem:[%s172 + $0x70] sm:$0xff] %v613
      %671 = vst [vmem:[%s172 + $0x78] sm:$0xff] %v614
      %672 = vst [vmem:[%s172 + $0x80] sm:$0xff] %v615
      %673 = vst [vmem:[%s172 + $0x88] sm:$0xff] %v616
      %674 = vst [vmem:[%s172 + $0x90] sm:$0xff] %v617
      %675 = vst [vmem:[%s172 + $0x98] sm:$0xff] %v618
      %676 = vst [vmem:[%s172 + $0xa0] sm:$0xff] %v619
      %677 = vst [vmem:[%s172 + $0xa8] sm:$0xff] %v620
      %678 = vst [vmem:[%s172 + $0xb0] sm:$0xff] %v621
      %679 = vst [vmem:[%s172 + $0xb8] sm:$0xff] %v622
      %680 = vst [vmem:[%s172 + $0xc0] sm:$0xff] %v623
      %681 = vst [vmem:[%s172 + $0xc8] sm:$0xff] %v624
      %682 = vst [vmem:[%s172 + $0xd0] sm:$0xff] %v625
      %683 = vst [vmem:[%s172 + $0xd8] sm:$0xff] %v626
      %684 = vst [vmem:[%s172 + $0xe0] sm:$0xff] %v627
      %685 = vst [vmem:[%s172 + $0xe8] sm:$0xff] %v628
      %686 = vst [vmem:[%s172 + $0xf0] sm:$0xff] %v629
      %687 = vst [vmem:[%s172 + $0xf8] sm:$0xff] %v630
      %688 = vst [vmem:[%s172 + $0x100] sm:$0xff] %v631
      %689 = vst [vmem:[%s172 + $0x108] sm:$0xff] %v632
      %690 = vst [vmem:[%s172 + $0x110] sm:$0xff] %v633
      %691 = vst [vmem:[%s172 + $0x118] sm:$0xff] %v634
      %692 = vst [vmem:[%s172 + $0x120] sm:$0xff] %v635
      %693 = vst [vmem:[%s172 + $0x128] sm:$0xff] %v636
      %694 = vst [vmem:[%s172 + $0x130] sm:$0xff] %v637
      %695 = vst [vmem:[%s172 + $0x138] sm:$0xff] %v638
      %696 = vst [vmem:[%s172 + $0x140] sm:$0xff] %v639
      %697 = vst [vmem:[%s172 + $0x148] sm:$0xff] %v640
      %698 = vst [vmem:[%s172 + $0x150] sm:$0xff] %v641
      %699 = vst [vmem:[%s172 + $0x158] sm:$0xff] %v642
      %700 = vst [vmem:[%s172 + $0x160] sm:$0xff] %v643
      %701 = vst [vmem:[%s172 + $0x168] sm:$0xff] %v644
      %702 = vst [vmem:[%s172 + $0x170] sm:$0xff] %v645
      %703 = vst [vmem:[%s172 + $0x178] sm:$0xff] %v646
      %704 = vst [vmem:[%s172 + $0x180] sm:$0xff] %v647
      %705 = vst [vmem:[%s172 + $0x188] sm:$0xff] %v648
      %706 = vst [vmem:[%s172 + $0x190] sm:$0xff] %v649
      %707 = vst [vmem:[%s172 + $0x198] sm:$0xff] %v650
      %708 = vst [vmem:[%s172 + $0x1a0] sm:$0xff] %v651
      %709 = vst [vmem:[%s172 + $0x1a8] sm:$0xff] %v652
      %710 = vst [vmem:[%s172 + $0x1b0] sm:$0xff] %v653
      %711 = vst [vmem:[%s172 + $0x1b8] sm:$0xff] %v654
      %712 = vst [vmem:[%s172 + $0x1c0] sm:$0xff] %v655
      %s713 = smul.u32 57, %s14
      %p714 = scmp.lt.s32.totalorder %s713, 227
      %s715 = scalar_select %p714, %s713, 227
      %s716 = smul.addr %s715, 8
      %s717 = scalar_lea.vmem %s3, %s716
      // Predicated region
      $region33: #{cnn_cifar_forward.6} parent=31 // pred_check
        %p718 = pneg %p100
      $region34: #{cnn_cifar_forward.6} parent=31 // pred_check_branch
        %720 = sbr.rel (%p718) target = $region36
      $region35: #{cnn_cifar_forward.6} parent=31 // pred_region
        %s721 = smul.u32 57, %s14
      $region36: #{cnn_cifar_forward.6} parent=31 // pred_fallthru
        _
    $region32: #{cnn_cifar_forward.6} parent=5 // pred_fallthru
      _
    %p722 = scmp.le.s32.totalorder 2, %s9
    // Predicated region
    $region37: #{cnn_cifar_forward.6} parent=5 // pred_check
      %p723 = pneg %p722
    $region38: #{cnn_cifar_forward.6} parent=5 // pred_check_branch
      %725 = sbr.rel (%p723) target = $region40
    $region39: #{cnn_cifar_forward.6} parent=5 // pred_region
      %s726 = ssub.s32 %s9, 2
      // Predicated region
      $region41: #{cnn_cifar_forward.6} parent=39 // pred_check
        %p727 = pneg %p106
      $region42: #{cnn_cifar_forward.6} parent=39 // pred_check_branch
        %729 = sbr.rel (%p727) target = $region44
      $region43: #{cnn_cifar_forward.6} parent=39 // pred_region
        %s730 = smul.u32 57, %s15
        %p731 = scmp.lt.s32.totalorder %s730, 227
        %s732 = scalar_select %p731, %s730, 227
        %s733 = smul.addr %s732, 8
        %s734 = scalar_lea.vmem %s3, %s733
      $region44: #{cnn_cifar_forward.6} parent=39 // pred_fallthru
        _
    $region40: #{cnn_cifar_forward.6} parent=5 // pred_fallthru
      _
  $region6: #{cnn_cifar_forward.6} parent=0 // loop_footer
    %s13 = sadd.s32 1, %s9
  $region7: #{cnn_cifar_forward.6} parent=0 // loop_footer_branch
    %8 = sbr.rel target = $region3
  $region8: #{cnn_cifar_forward.6} parent=0 // loop_exit
    _

// kernel: cnn_cifar_forward.7
$region0: #{cnn_cifar_forward.7}
  #allocation0 [shape = 'u32[]', space=smem, size = 0x4, offset = 0x4, fixed_abs, tag = 'smem constant byte address 0x4 - core index']
  #allocation1 [shape = 'u32[72,128]{1,0:T(1,128)}', space=vmem, size = 0x9000, scoped, tag = 'internal scratch']
  %s0 = inlined_call_operand.vmem [shape: f32[2,15,2,15,256], index: 0, kind: input, shape index: {}]
  %s1 = inlined_call_operand.vmem [shape: f32[2,15,15,128], index: 1, kind: output, shape index: {}]
  %s2 = sld [smem:[#allocation0]]
  $region37: #{cnn_cifar_forward.7} parent=0
    _
  %s4 = ssub.s32 1, %s2
  %s5 = scalar_select 0, %s4, %s2
  loop: start=0, step=1, limit=4
  $region2: #{cnn_cifar_forward.7} parent=0 // loop_pre_header
    _
  $region3: #{cnn_cifar_forward.7} parent=0 // loop_header
    %s7 = sphi 0, %s11
    %p8 = scmp.ge.s32.totalorder %s7, 4
    %s17 = sphi 0, %s19
    %s20 = sphi 0, %s17
    %s21 = sphi 0, %s20
    %s37 = sphi 0, %s21
    %s43 = sphi 0, %s45
    %s46 = sphi 0, %s43
    %s47 = sphi 0, %s46
    %s63 = sphi 0, %s47
  $region4: #{cnn_cifar_forward.7} parent=0 // loop_header_branch
    %10 = sbr.rel (%p8) target = $region8
  $region5: #{cnn_cifar_forward.7} parent=0 // loop_body
    %s12 = ssub.s32 %s7, 1
    %s13 = ssub.s32 %s7, 2
    %s14 = sadd.s32 %s7, 1
    %s15 = ssub.s32 %s7, %s14
    %p16 = scmp.eq.s32.totalorder %s15, 0
    %s18 = sadd.s32 %s17, 1
    %s19 = scalar_select %p16, %s17, %s18
    %p22 = pneg %p16
    %p23 = scmp.eq.s32.totalorder %s7, 1
    %p24 = por %p22, %p23
    %p25 = scmp.ne.s32.totalorder %s17, %s20
    %p26 = scmp.eq.s32.totalorder %s7, 0
    %p27 = por %p25, %p26
    %p28 = scmp.ne.s32.totalorder %s17, %s20
    %p29 = scmp.eq.s32.totalorder %s12, 1
    %p30 = por %p28, %p29
    %p31 = scmp.ne.s32.totalorder %s20, %s21
    %p32 = scmp.eq.s32.totalorder %s12, 0
    %p33 = por %p31, %p32
    %p34 = scmp.ne.s32.totalorder %s20, %s21
    %p35 = scmp.eq.s32.totalorder %s13, 1
    %p36 = por %p34, %p35
    %p38 = scmp.ne.s32.totalorder %s21, %s37
    %p39 = scmp.eq.s32.totalorder %s13, 0
    %p40 = por %p38, %p39
    %s41 = ssub.s32 %s7, %s14
    %p42 = scmp.eq.s32.totalorder %s41, 0
    %s44 = sadd.s32 %s43, 1
    %s45 = scalar_select %p42, %s43, %s44
    %p48 = pneg %p42
    %p49 = scmp.eq.s32.totalorder %s7, 1
    %p50 = por %p48, %p49
    %p51 = scmp.ne.s32.totalorder %s43, %s46
    %p52 = scmp.eq.s32.totalorder %s7, 0
    %p53 = por %p51, %p52
    %p54 = scmp.ne.s32.totalorder %s43, %s46
    %p55 = scmp.eq.s32.totalorder %s12, 1
    %p56 = por %p54, %p55
    %p57 = scmp.ne.s32.totalorder %s46, %s47
    %p58 = scmp.eq.s32.totalorder %s12, 0
    %p59 = por %p57, %p58
    %p60 = scmp.ne.s32.totalorder %s46, %s47
    %p61 = scmp.eq.s32.totalorder %s13, 1
    %p62 = por %p60, %p61
    %p64 = scmp.ne.s32.totalorder %s47, %s63
    %p65 = scmp.eq.s32.totalorder %s13, 0
    %p66 = por %p64, %p65
    %p67 = scmp.le.s32.totalorder 1, %s7
    %p68 = scmp.lt.s32.totalorder %s7, 3
    %p69 = pnand %p67, %p68
    %p70 = pneg %p69
    // Predicated region
    $region9: #{cnn_cifar_forward.7} parent=5 // pred_check
      _
    $region10: #{cnn_cifar_forward.7} parent=5 // pred_check_branch
      %72 = sbr.rel (%p69) target = $region12
    $region11: #{cnn_cifar_forward.7} parent=5 // pred_region
      %s73 = ssub.s32 %s7, 1
    $region12: #{cnn_cifar_forward.7} parent=5 // pred_fallthru
      _
    %p74 = scmp.lt.s32.totalorder %s7, 2
    // Predicated region
    $region13: #{cnn_cifar_forward.7} parent=5 // pred_check
      %p75 = pneg %p74
    $region14: #{cnn_cifar_forward.7} parent=5 // pred_check_branch
      %77 = sbr.rel (%p75) target = $region16
    $region15: #{cnn_cifar_forward.7} parent=5 // pred_region
      // Predicated region
      $region17: #{cnn_cifar_forward.7} parent=15 // pred_check
        %p78 = pneg %p27
      $region18: #{cnn_cifar_forward.7} parent=15 // pred_check_branch
        %80 = sbr.rel (%p78) target = $region20
      $region19: #{cnn_cifar_forward.7} parent=15 // pred_region
        %p81 = scmp.lt.s32.totalorder %s7, 1
        %s82 = scalar_select %p81, %s7, 1
        %s83 = smul.addr %s82, 120
        %s84 = smul.addr %s83, 8
        %s85 = scalar_lea.vmem %s0, %s84
      $region20: #{cnn_cifar_forward.7} parent=15 // pred_fallthru
        _
    $region16: #{cnn_cifar_forward.7} parent=5 // pred_fallthru
      _
    %p86 = scmp.le.s32.totalorder 1, %s7
    %p87 = scmp.lt.s32.totalorder %s7, 3
    %p88 = pnand %p86, %p87
    %p89 = pneg %p88
    // Predicated region
    $region21: #{cnn_cifar_forward.7} parent=5 // pred_check
      _
    $region22: #{cnn_cifar_forward.7} parent=5 // pred_check_branch
      %91 = sbr.rel (%p88) target = $region24
    $region23: #{cnn_cifar_forward.7} parent=5 // pred_region
      %s92 = ssub.s32 %s7, 1
      %p93 = scmp.lt.s32.totalorder %s12, 1
      %s94 = scalar_select %p93, %s12, 1
      %s95 = smul.addr %s94, 120
      %s96 = smul.addr %s95, 8
      %s97 = scalar_lea.vmem %s0, %s96
      %p98 = pneg %p33
      %p99 = pneg %p30
      %p100 = pneg %p59
      %p101 = pneg %p56
      %p102 = scmp.lt.s32.totalorder %s12, 1
      %s103 = scalar_select %p102, %s12, 1
      %s104 = smul.addr %s103, 30
      %s105 = smul.addr %s104, 8
      %s106 = scalar_lea.vmem %s1, %s105
      %p107 = scmp.lt.s32.totalorder %s12, 1
      %s108 = scalar_select %p107, %s12, 1
      %s109 = smul.addr %s108, 120
      %s110 = smul.addr %s109, 8
      %s111 = scalar_lea.vmem %s0, %s110
      %p112 = scmp.lt.s32.totalorder %s12, 1
      %s113 = scalar_select %p112, %s12, 1
      %s114 = smul.addr %s113, 30
      %s115 = smul.addr %s114, 8
      %s116 = scalar_lea.vmem %s1, %s115
      %v117 = vld [vmem:[%s111] sm:$0xff]
      %v118 = vld [vmem:[%s111 + $0x8] sm:$0xff]
      %v119 = vld [vmem:[%s111 + $0x10] sm:$0x7f]
      %v120 = vld [vmem:[%s111 + $0x18] sm:$0x7f]
      %v121 = vld [vmem:[%s111 + $0x20] sm:$0xff]
      %v122 = vld [vmem:[%s111 + $0x28] sm:$0xff]
      %v123 = vld [vmem:[%s111 + $0x30] sm:$0x7f]
      %v124 = vld [vmem:[%s111 + $0x38] sm:$0x7f]
      %v125 = vld [vmem:[%s111 + $0x40] sm:$0xff]
      %v126 = vld [vmem:[%s111 + $0x48] sm:$0xff]
      %v127 = vld [vmem:[%s111 + $0x50] sm:$0x7f]
      %v128 = vld [vmem:[%s111 + $0x58] sm:$0x7f]
      %v129 = vld [vmem:[%s111 + $0x60] sm:$0xff]
      %v130 = vld [vmem:[%s111 + $0x68] sm:$0xff]
      %v131 = vld [vmem:[%s111 + $0x70] sm:$0x7f]
      %v132 = vld [vmem:[%s111 + $0x78] sm:$0x7f]
      %v133 = vld [vmem:[%s111 + $0x80] sm:$0xff]
      %v134 = vld [vmem:[%s111 + $0x88] sm:$0xff]
      %v135 = vld [vmem:[%s111 + $0x90] sm:$0x7f]
      %v136 = vld [vmem:[%s111 + $0x98] sm:$0x7f]
      %v137 = vld [vmem:[%s111 + $0xa0] sm:$0xff]
      %v138 = vld [vmem:[%s111 + $0xa8] sm:$0xff]
      %v139 = vld [vmem:[%s111 + $0xb0] sm:$0x7f]
      %v140 = vld [vmem:[%s111 + $0xb8] sm:$0x7f]
      %v141 = vld [vmem:[%s111 + $0xc0] sm:$0xff]
      %v142 = vld [vmem:[%s111 + $0xc8] sm:$0xff]
      %v143 = vld [vmem:[%s111 + $0xd0] sm:$0x7f]
      %v144 = vld [vmem:[%s111 + $0xd8] sm:$0x7f]
      %v145 = vld [vmem:[%s111 + $0xe0] sm:$0xff]
      %v146 = vld [vmem:[%s111 + $0xe8] sm:$0xff]
      %v147 = vld [vmem:[%s111 + $0xf0] sm:$0x7f]
      %v148 = vld [vmem:[%s111 + $0xf8] sm:$0x7f]
      %v149 = vld [vmem:[%s111 + $0x100] sm:$0xff]
      %v150 = vld [vmem:[%s111 + $0x108] sm:$0xff]
      %v151 = vld [vmem:[%s111 + $0x110] sm:$0x7f]
      %v152 = vld [vmem:[%s111 + $0x118] sm:$0x7f]
      %v153 = vld [vmem:[%s111 + $0x120] sm:$0xff]
      %v154 = vld [vmem:[%s111 + $0x128] sm:$0xff]
      %v155 = vld [vmem:[%s111 + $0x130] sm:$0x7f]
      %v156 = vld [vmem:[%s111 + $0x138] sm:$0x7f]
      %v157 = vld [vmem:[%s111 + $0x140] sm:$0xff]
      %v158 = vld [vmem:[%s111 + $0x148] sm:$0xff]
      %v159 = vld [vmem:[%s111 + $0x150] sm:$0x7f]
      %v160 = vld [vmem:[%s111 + $0x158] sm:$0x7f]
      %v161 = vld [vmem:[%s111 + $0x160] sm:$0xff]
      %v162 = vld [vmem:[%s111 + $0x168] sm:$0xff]
      %v163 = vld [vmem:[%s111 + $0x170] sm:$0x7f]
      %v164 = vld [vmem:[%s111 + $0x178] sm:$0x7f]
      %v165 = vld [vmem:[%s111 + $0x180] sm:$0xff]
      %v166 = vld [vmem:[%s111 + $0x188] sm:$0xff]
      %v167 = vld [vmem:[%s111 + $0x190] sm:$0x7f]
      %v168 = vld [vmem:[%s111 + $0x198] sm:$0x7f]
      %v169 = vld [vmem:[%s111 + $0x1a0] sm:$0xff]
      %v170 = vld [vmem:[%s111 + $0x1a8] sm:$0xff]
      %v171 = vld [vmem:[%s111 + $0x1b0] sm:$0x7f]
      %v172 = vld [vmem:[%s111 + $0x1b8] sm:$0x7f]
      %v173 = vld [vmem:[%s111 + $0x1c0] sm:$0xff]
      %v174 = vld [vmem:[%s111 + $0x1c8] sm:$0xff]
      %v175 = vld [vmem:[%s111 + $0x1d0] sm:$0x7f]
      %v176 = vld [vmem:[%s111 + $0x1d8] sm:$0x7f]
      %v177 = vld [vmem:[%s111 + $0x1e0] sm:$0xff]
      %v178 = vld [vmem:[%s111 + $0x1e8] sm:$0xff]
      %v179 = vld [vmem:[%s111 + $0x1f0] sm:$0x7f]
      %v180 = vld [vmem:[%s111 + $0x1f8] sm:$0x7f]
      %v181 = vld [vmem:[%s111 + $0x200] sm:$0xff]
      %v182 = vld [vmem:[%s111 + $0x208] sm:$0xff]
      %v183 = vld [vmem:[%s111 + $0x210] sm:$0x7f]
      %v184 = vld [vmem:[%s111 + $0x218] sm:$0x7f]
      %v185 = vld [vmem:[%s111 + $0x220] sm:$0xff]
      %v186 = vld [vmem:[%s111 + $0x228] sm:$0xff]
      %v187 = vld [vmem:[%s111 + $0x230] sm:$0x7f]
      %v188 = vld [vmem:[%s111 + $0x238] sm:$0x7f]
      %v189 = vld [vmem:[%s111 + $0x240] sm:$0xff]
      %v190 = vld [vmem:[%s111 + $0x248] sm:$0xff]
      %v191 = vld [vmem:[%s111 + $0x250] sm:$0x7f]
      %v192 = vld [vmem:[%s111 + $0x258] sm:$0x7f]
      %v193 = vld [vmem:[%s111 + $0x260] sm:$0xff]
      %v194 = vld [vmem:[%s111 + $0x268] sm:$0xff]
      %v195 = vld [vmem:[%s111 + $0x270] sm:$0x7f]
      %v196 = vld [vmem:[%s111 + $0x278] sm:$0x7f]
      %v197 = vld [vmem:[%s111 + $0x280] sm:$0xff]
      %v198 = vld [vmem:[%s111 + $0x288] sm:$0xff]
      %v199 = vld [vmem:[%s111 + $0x290] sm:$0x7f]
      %v200 = vld [vmem:[%s111 + $0x298] sm:$0x7f]
      %v201 = vld [vmem:[%s111 + $0x2a0] sm:$0xff]
      %v202 = vld [vmem:[%s111 + $0x2a8] sm:$0xff]
      %v203 = vld [vmem:[%s111 + $0x2b0] sm:$0x7f]
      %v204 = vld [vmem:[%s111 + $0x2b8] sm:$0x7f]
      %v205 = vld [vmem:[%s111 + $0x2c0] sm:$0xff]
      %v206 = vld [vmem:[%s111 + $0x2c8] sm:$0xff]
      %v207 = vld [vmem:[%s111 + $0x2d0] sm:$0x7f]
      %v208 = vld [vmem:[%s111 + $0x2d8] sm:$0x7f]
      %v209 = vld [vmem:[%s111 + $0x2e0] sm:$0xff]
      %v210 = vld [vmem:[%s111 + $0x2e8] sm:$0xff]
      %v211 = vld [vmem:[%s111 + $0x2f0] sm:$0x7f]
      %v212 = vld [vmem:[%s111 + $0x2f8] sm:$0x7f]
      %v213 = vld [vmem:[%s111 + $0x300] sm:$0xff]
      %v214 = vld [vmem:[%s111 + $0x308] sm:$0xff]
      %v215 = vld [vmem:[%s111 + $0x310] sm:$0x7f]
      %v216 = vld [vmem:[%s111 + $0x318] sm:$0x7f]
      %v217 = vld [vmem:[%s111 + $0x320] sm:$0xff]
      %v218 = vld [vmem:[%s111 + $0x328] sm:$0xff]
      %v219 = vld [vmem:[%s111 + $0x330] sm:$0x7f]
      %v220 = vld [vmem:[%s111 + $0x338] sm:$0x7f]
      %v221 = vld [vmem:[%s111 + $0x340] sm:$0xff]
      %v222 = vld [vmem:[%s111 + $0x348] sm:$0xff]
      %v223 = vld [vmem:[%s111 + $0x350] sm:$0x7f]
      %v224 = vld [vmem:[%s111 + $0x358] sm:$0x7f]
      %v225 = vld [vmem:[%s111 + $0x360] sm:$0xff]
      %v226 = vld [vmem:[%s111 + $0x368] sm:$0xff]
      %v227 = vld [vmem:[%s111 + $0x370] sm:$0x7f]
      %v228 = vld [vmem:[%s111 + $0x378] sm:$0x7f]
      %v229 = vld [vmem:[%s111 + $0x380] sm:$0xff]
      %v230 = vld [vmem:[%s111 + $0x388] sm:$0xff]
      %v231 = vld [vmem:[%s111 + $0x390] sm:$0x7f]
      %v232 = vld [vmem:[%s111 + $0x398] sm:$0x7f]
      %v233 = vld [vmem:[%s111 + $0x3a0] sm:$0xff]
      %v234 = vld [vmem:[%s111 + $0x3a8] sm:$0xff]
      %v235 = vld [vmem:[%s111 + $0x3b0] sm:$0x7f]
      %v236 = vld [vmem:[%s111 + $0x3b8] sm:$0x7f]
      %v237 = vmax.f32 %v117, %v121
      %v238 = vmax.f32 %v118, %v122
      %vm239 = vcmask 1046528
      %v240 = vsel %vm239, %v119, -inf
      %v241 = vsel %vm239, %v123, -inf
      %v242 = vmax.f32 %v240, %v241
      %v243 = vsel %vm239, %v120, -inf
      %v244 = vsel %vm239, %v124, -inf
      %v245 = vmax.f32 %v243, %v244
      %v246 = vmax.f32 %v125, %v129
      %v247 = vmax.f32 %v126, %v130
      %v248 = vsel %vm239, %v127, -inf
      %v249 = vsel %vm239, %v131, -inf
      %v250 = vmax.f32 %v248, %v249
      %v251 = vsel %vm239, %v128, -inf
      %v252 = vsel %vm239, %v132, -inf
      %v253 = vmax.f32 %v251, %v252
      %v254 = vmax.f32 %v133, %v137
      %v255 = vmax.f32 %v134, %v138
      %v256 = vsel %vm239, %v135, -inf
      %v257 = vsel %vm239, %v139, -inf
      %v258 = vmax.f32 %v256, %v257
      %v259 = vsel %vm239, %v136, -inf
      %v260 = vsel %vm239, %v140, -inf
      %v261 = vmax.f32 %v259, %v260
      %v262 = vmax.f32 %v141, %v145
      %v263 = vmax.f32 %v142, %v146
      %v264 = vsel %vm239, %v143, -inf
      %v265 = vsel %vm239, %v147, -inf
      %v266 = vmax.f32 %v264, %v265
      %v267 = vsel %vm239, %v144, -inf
      %v268 = vsel %vm239, %v148, -inf
      %v269 = vmax.f32 %v267, %v268
      %v270 = vmax.f32 %v149, %v153
      %v271 = vmax.f32 %v150, %v154
      %v272 = vsel %vm239, %v151, -inf
      %v273 = vsel %vm239, %v155, -inf
      %v274 = vmax.f32 %v272, %v273
      %v275 = vsel %vm239, %v152, -inf
      %v276 = vsel %vm239, %v156, -inf
      %v277 = vmax.f32 %v275, %v276
      %v278 = vmax.f32 %v157, %v161
      %v279 = vmax.f32 %v158, %v162
      %v280 = vsel %vm239, %v159, -inf
      %v281 = vsel %vm239, %v163, -inf
      %v282 = vmax.f32 %v280, %v281
      %v283 = vsel %vm239, %v160, -inf
      %v284 = vsel %vm239, %v164, -inf
      %v285 = vmax.f32 %v283, %v284
      %v286 = vmax.f32 %v165, %v169
      %v287 = vmax.f32 %v166, %v170
      %v288 = vsel %vm239, %v167, -inf
      %v289 = vsel %vm239, %v171, -inf
      %v290 = vmax.f32 %v288, %v289
      %v291 = vsel %vm239, %v168, -inf
      %v292 = vsel %vm239, %v172, -inf
      %v293 = vmax.f32 %v291, %v292
      %v294 = vmax.f32 %v173, %v177
      %v295 = vmax.f32 %v174, %v178
      %v296 = vsel %vm239, %v175, -inf
      %v297 = vsel %vm239, %v179, -inf
      %v298 = vmax.f32 %v296, %v297
      %v299 = vsel %vm239, %v176, -inf
      %v300 = vsel %vm239, %v180, -inf
      %v301 = vmax.f32 %v299, %v300
      %v302 = vmax.f32 %v181, %v185
      %v303 = vmax.f32 %v182, %v186
      %v304 = vsel %vm239, %v183, -inf
      %v305 = vsel %vm239, %v187, -inf
      %v306 = vmax.f32 %v304, %v305
      %v307 = vsel %vm239, %v184, -inf
      %v308 = vsel %vm239, %v188, -inf
      %v309 = vmax.f32 %v307, %v308
      %v310 = vmax.f32 %v189, %v193
      %v311 = vmax.f32 %v190, %v194
      %v312 = vsel %vm239, %v191, -inf
      %v313 = vsel %vm239, %v195, -inf
      %v314 = vmax.f32 %v312, %v313
      %v315 = vsel %vm239, %v192, -inf
      %v316 = vsel %vm239, %v196, -inf
      %v317 = vmax.f32 %v315, %v316
      %v318 = vmax.f32 %v197, %v201
      %v319 = vmax.f32 %v198, %v202
      %v320 = vsel %vm239, %v199, -inf
      %v321 = vsel %vm239, %v203, -inf
      %v322 = vmax.f32 %v320, %v321
      %v323 = vsel %vm239, %v200, -inf
      %v324 = vsel %vm239, %v204, -inf
      %v325 = vmax.f32 %v323, %v324
      %v326 = vmax.f32 %v205, %v209
      %v327 = vmax.f32 %v206, %v210
      %v328 = vsel %vm239, %v207, -inf
      %v329 = vsel %vm239, %v211, -inf
      %v330 = vmax.f32 %v328, %v329
      %v331 = vsel %vm239, %v208, -inf
      %v332 = vsel %vm239, %v212, -inf
      %v333 = vmax.f32 %v331, %v332
      %v334 = vmax.f32 %v213, %v217
      %v335 = vmax.f32 %v214, %v218
      %v336 = vsel %vm239, %v215, -inf
      %v337 = vsel %vm239, %v219, -inf
      %v338 = vmax.f32 %v336, %v337
      %v339 = vsel %vm239, %v216, -inf
      %v340 = vsel %vm239, %v220, -inf
      %v341 = vmax.f32 %v339, %v340
      %v342 = vmax.f32 %v221, %v225
      %v343 = vmax.f32 %v222, %v226
      %v344 = vsel %vm239, %v223, -inf
      %v345 = vsel %vm239, %v227, -inf
      %v346 = vmax.f32 %v344, %v345
      %v347 = vsel %vm239, %v224, -inf
      %v348 = vsel %vm239, %v228, -inf
      %v349 = vmax.f32 %v347, %v348
      %v350 = vmax.f32 %v229, %v233
      %v351 = vmax.f32 %v230, %v234
      %v352 = vsel %vm239, %v231, -inf
      %v353 = vsel %vm239, %v235, -inf
      %v354 = vmax.f32 %v352, %v353
      %v355 = vsel %vm239, %v232, -inf
      %v356 = vsel %vm239, %v236, -inf
      %v357 = vmax.f32 %v355, %v356
      %v358 = vmax.f32 %v237, %v238
      %v359 = vmax.f32 %v242, %v245
      %v360 = vmax.f32 %v246, %v247
      %v361 = vmax.f32 %v250, %v253
      %v362 = vmax.f32 %v254, %v255
      %v363 = vmax.f32 %v258, %v261
      %v364 = vmax.f32 %v262, %v263
      %v365 = vmax.f32 %v266, %v269
      %v366 = vmax.f32 %v270, %v271
      %v367 = vmax.f32 %v274, %v277
      %v368 = vmax.f32 %v278, %v279
      %v369 = vmax.f32 %v282, %v285
      %v370 = vmax.f32 %v286, %v287
      %v371 = vmax.f32 %v290, %v293
      %v372 = vmax.f32 %v294, %v295
      %v373 = vmax.f32 %v298, %v301
      %v374 = vmax.f32 %v302, %v303
      %v375 = vmax.f32 %v306, %v309
      %v376 = vmax.f32 %v310, %v311
      %v377 = vmax.f32 %v314, %v317
      %v378 = vmax.f32 %v318, %v319
      %v379 = vmax.f32 %v322, %v325
      %v380 = vmax.f32 %v326, %v327
      %v381 = vmax.f32 %v330, %v333
      %v382 = vmax.f32 %v334, %v335
      %v383 = vmax.f32 %v338, %v341
      %v384 = vmax.f32 %v342, %v343
      %v385 = vmax.f32 %v346, %v349
      %v386 = vmax.f32 %v350, %v351
      %v387 = vmax.f32 %v354, %v357
      %388 = vst [vmem:[%s116] sm:$0xff] %v358
      %389 = vst [vmem:[%s116 + $0x8] sm:$0x7f] %v359
      %390 = vst [vmem:[%s116 + $0x10] sm:$0xff] %v360
      %391 = vst [vmem:[%s116 + $0x18] sm:$0x7f] %v361
      %392 = vst [vmem:[%s116 + $0x20] sm:$0xff] %v362
      %393 = vst [vmem:[%s116 + $0x28] sm:$0x7f] %v363
      %394 = vst [vmem:[%s116 + $0x30] sm:$0xff] %v364
      %395 = vst [vmem:[%s116 + $0x38] sm:$0x7f] %v365
      %396 = vst [vmem:[%s116 + $0x40] sm:$0xff] %v366
      %397 = vst [vmem:[%s116 + $0x48] sm:$0x7f] %v367
      %398 = vst [vmem:[%s116 + $0x50] sm:$0xff] %v368
      %399 = vst [vmem:[%s116 + $0x58] sm:$0x7f] %v369
      %400 = vst [vmem:[%s116 + $0x60] sm:$0xff] %v370
      %401 = vst [vmem:[%s116 + $0x68] sm:$0x7f] %v371
      %402 = vst [vmem:[%s116 + $0x70] sm:$0xff] %v372
      %403 = vst [vmem:[%s116 + $0x78] sm:$0x7f] %v373
      %404 = vst [vmem:[%s116 + $0x80] sm:$0xff] %v374
      %405 = vst [vmem:[%s116 + $0x88] sm:$0x7f] %v375
      %406 = vst [vmem:[%s116 + $0x90] sm:$0xff] %v376
      %407 = vst [vmem:[%s116 + $0x98] sm:$0x7f] %v377
      %408 = vst [vmem:[%s116 + $0xa0] sm:$0xff] %v378
      %409 = vst [vmem:[%s116 + $0xa8] sm:$0x7f] %v379
      %410 = vst [vmem:[%s116 + $0xb0] sm:$0xff] %v380
      %411 = vst [vmem:[%s116 + $0xb8] sm:$0x7f] %v381
      %412 = vst [vmem:[%s116 + $0xc0] sm:$0xff] %v382
      %413 = vst [vmem:[%s116 + $0xc8] sm:$0x7f] %v383
      %414 = vst [vmem:[%s116 + $0xd0] sm:$0xff] %v384
      %415 = vst [vmem:[%s116 + $0xd8] sm:$0x7f] %v385
      %416 = vst [vmem:[%s116 + $0xe0] sm:$0xff] %v386
      %417 = vst [vmem:[%s116 + $0xe8] sm:$0x7f] %v387
      %p418 = scmp.lt.s32.totalorder %s12, 1
      %s419 = scalar_select %p418, %s12, 1
      %s420 = smul.addr %s419, 30
      %s421 = smul.addr %s420, 8
      %s422 = scalar_lea.vmem %s1, %s421
      // Predicated region
      $region25: #{cnn_cifar_forward.7} parent=23 // pred_check
        %p423 = pneg %p56
      $region26: #{cnn_cifar_forward.7} parent=23 // pred_check_branch
        %425 = sbr.rel (%p423) target = $region28
      $region27: #{cnn_cifar_forward.7} parent=23 // pred_region
        _
      $region28: #{cnn_cifar_forward.7} parent=23 // pred_fallthru
        _
    $region24: #{cnn_cifar_forward.7} parent=5 // pred_fallthru
      _
    %p426 = scmp.le.s32.totalorder 2, %s7
    // Predicated region
    $region29: #{cnn_cifar_forward.7} parent=5 // pred_check
      %p427 = pneg %p426
    $region30: #{cnn_cifar_forward.7} parent=5 // pred_check_branch
      %429 = sbr.rel (%p427) target = $region32
    $region31: #{cnn_cifar_forward.7} parent=5 // pred_region
      %s430 = ssub.s32 %s7, 2
      // Predicated region
      $region33: #{cnn_cifar_forward.7} parent=31 // pred_check
        %p431 = pneg %p62
      $region34: #{cnn_cifar_forward.7} parent=31 // pred_check_branch
        %433 = sbr.rel (%p431) target = $region36
      $region35: #{cnn_cifar_forward.7} parent=31 // pred_region
        %p434 = scmp.lt.s32.totalorder %s13, 1
        %s435 = scalar_select %p434, %s13, 1
        %s436 = smul.addr %s435, 30
        %s437 = smul.addr %s436, 8
        %s438 = scalar_lea.vmem %s1, %s437
      $region36: #{cnn_cifar_forward.7} parent=31 // pred_fallthru
        _
    $region32: #{cnn_cifar_forward.7} parent=5 // pred_fallthru
      _
  $region6: #{cnn_cifar_forward.7} parent=0 // loop_footer
    %s11 = sadd.s32 1, %s7
  $region7: #{cnn_cifar_forward.7} parent=0 // loop_footer_branch
    %6 = sbr.rel target = $region3
  $region8: #{cnn_cifar_forward.7} parent=0 // loop_exit
    _

// kernel: cnn_cifar_forward.8
$region0: #{cnn_cifar_forward.8}
  #allocation0 [shape = 'u32[]', space=smem, size = 0x4, offset = 0x4, fixed_abs, tag = 'smem constant byte address 0x4 - core index']
  #allocation1 [shape = 'u32[72,128]{1,0:T(1,128)}', space=vmem, size = 0x9000, scoped, tag = 'internal scratch']
  %s0 = inlined_call_operand.vmem [shape: f32[352,1152], index: 0, kind: input, shape index: {}]
  %s1 = inlined_call_operand.vmem [shape: f32[1152,128], index: 1, kind: input, shape index: {}]
  %s2 = inlined_call_operand.vmem [shape: f32[1,128], index: 2, kind: input, shape index: {}]
  %s3 = inlined_call_operand.vmem [shape: f32[352,128], index: 3, kind: output, shape index: {}]
  %s4 = sld [smem:[#allocation0]]
  $region45: #{cnn_cifar_forward.8} parent=0
    _
  %s6 = ssub.s32 1, %s4
  %s7 = scalar_select 0, %s6, %s4
  loop: start=0, step=1, limit=4
  $region2: #{cnn_cifar_forward.8} parent=0 // loop_pre_header
    _
  $region3: #{cnn_cifar_forward.8} parent=0 // loop_header
    %s9 = sphi 0, %s13
    %p10 = scmp.ge.s32.totalorder %s9, 4
    %s19 = sphi 0, %s21
    %s22 = sphi 0, %s19
    %s23 = sphi 0, %s22
    %s39 = sphi 0, %s23
    %s43 = sphi 0, %s43
    %s45 = sphi 0, %s43
    %s46 = sphi 0, %s45
    %s60 = sphi 0, %s46
    %s64 = sphi 0, %s64
    %s66 = sphi 0, %s64
    %s67 = sphi 0, %s66
    %s81 = sphi 0, %s67
    %s87 = sphi 0, %s89
    %s90 = sphi 0, %s87
    %s91 = sphi 0, %s90
    %s107 = sphi 0, %s91
  $region4: #{cnn_cifar_forward.8} parent=0 // loop_header_branch
    %12 = sbr.rel (%p10) target = $region8
  $region5: #{cnn_cifar_forward.8} parent=0 // loop_body
    %s14 = ssub.s32 %s9, 1
    %s15 = ssub.s32 %s9, 2
    %s16 = sadd.s32 %s9, 1
    %s17 = ssub.s32 %s9, %s16
    %p18 = scmp.eq.s32.totalorder %s17, 0
    %s20 = sadd.s32 %s19, 1
    %s21 = scalar_select %p18, %s19, %s20
    %p24 = pneg %p18
    %p25 = scmp.eq.s32.totalorder %s9, 1
    %p26 = por %p24, %p25
    %p27 = scmp.ne.s32.totalorder %s19, %s22
    %p28 = scmp.eq.s32.totalorder %s9, 0
    %p29 = por %p27, %p28
    %p30 = scmp.ne.s32.totalorder %s19, %s22
    %p31 = scmp.eq.s32.totalorder %s14, 1
    %p32 = por %p30, %p31
    %p33 = scmp.ne.s32.totalorder %s22, %s23
    %p34 = scmp.eq.s32.totalorder %s14, 0
    %p35 = por %p33, %p34
    %p36 = scmp.ne.s32.totalorder %s22, %s23
    %p37 = scmp.eq.s32.totalorder %s15, 1
    %p38 = por %p36, %p37
    %p40 = scmp.ne.s32.totalorder %s23, %s39
    %p41 = scmp.eq.s32.totalorder %s15, 0
    %p42 = por %p40, %p41
    %s44 = sadd.s32 %s43, 1
    %p47 = scmp.eq.s32.totalorder %s9, 1
    %p48 = scmp.ne.s32.totalorder %s43, %s45
    %p49 = scmp.eq.s32.totalorder %s9, 0
    %p50 = por %p48, %p49
    %p51 = scmp.ne.s32.totalorder %s43, %s45
    %p52 = scmp.eq.s32.totalorder %s14, 1
    %p53 = por %p51, %p52
    %p54 = scmp.ne.s32.totalorder %s45, %s46
    %p55 = scmp.eq.s32.totalorder %s14, 0
    %p56 = por %p54, %p55
    %p57 = scmp.ne.s32.totalorder %s45, %s46
    %p58 = scmp.eq.s32.totalorder %s15, 1
    %p59 = por %p57, %p58
    %p61 = scmp.ne.s32.totalorder %s46, %s60
    %p62 = scmp.eq.s32.totalorder %s15, 0
    %p63 = por %p61, %p62
    %s65 = sadd.s32 %s64, 1
    %p68 = scmp.eq.s32.totalorder %s9, 1
    %p69 = scmp.ne.s32.totalorder %s64, %s66
    %p70 = scmp.eq.s32.totalorder %s9, 0
    %p71 = por %p69, %p70
    %p72 = scmp.ne.s32.totalorder %s64, %s66
    %p73 = scmp.eq.s32.totalorder %s14, 1
    %p74 = por %p72, %p73
    %p75 = scmp.ne.s32.totalorder %s66, %s67
    %p76 = scmp.eq.s32.totalorder %s14, 0
    %p77 = por %p75, %p76
    %p78 = scmp.ne.s32.totalorder %s66, %s67
    %p79 = scmp.eq.s32.totalorder %s15, 1
    %p80 = por %p78, %p79
    %p82 = scmp.ne.s32.totalorder %s67, %s81
    %p83 = scmp.eq.s32.totalorder %s15, 0
    %p84 = por %p82, %p83
    %s85 = ssub.s32 %s9, %s16
    %p86 = scmp.eq.s32.totalorder %s85, 0
    %s88 = sadd.s32 %s87, 1
    %s89 = scalar_select %p86, %s87, %s88
    %p92 = pneg %p86
    %p93 = scmp.eq.s32.totalorder %s9, 1
    %p94 = por %p92, %p93
    %p95 = scmp.ne.s32.totalorder %s87, %s90
    %p96 = scmp.eq.s32.totalorder %s9, 0
    %p97 = por %p95, %p96
    %p98 = scmp.ne.s32.totalorder %s87, %s90
    %p99 = scmp.eq.s32.totalorder %s14, 1
    %p100 = por %p98, %p99
    %p101 = scmp.ne.s32.totalorder %s90, %s91
    %p102 = scmp.eq.s32.totalorder %s14, 0
    %p103 = por %p101, %p102
    %p104 = scmp.ne.s32.totalorder %s90, %s91
    %p105 = scmp.eq.s32.totalorder %s15, 1
    %p106 = por %p104, %p105
    %p108 = scmp.ne.s32.totalorder %s91, %s107
    %p109 = scmp.eq.s32.totalorder %s15, 0
    %p110 = por %p108, %p109
    %p111 = scmp.le.s32.totalorder 1, %s9
    %p112 = scmp.lt.s32.totalorder %s9, 3
    %p113 = pnand %p111, %p112
    %p114 = pneg %p113
    // Predicated region
    $region9: #{cnn_cifar_forward.8} parent=5 // pred_check
      _
    $region10: #{cnn_cifar_forward.8} parent=5 // pred_check_branch
      %116 = sbr.rel (%p113) target = $region12
    $region11: #{cnn_cifar_forward.8} parent=5 // pred_region
      %s117 = ssub.s32 %s9, 1
      // Predicated region
      $region13: #{cnn_cifar_forward.8} parent=11 // pred_check
        %p118 = pneg %p56
      $region14: #{cnn_cifar_forward.8} parent=11 // pred_check_branch
        %120 = sbr.rel (%p118) target = $region16
      $region15: #{cnn_cifar_forward.8} parent=11 // pred_region
        _
      $region16: #{cnn_cifar_forward.8} parent=11 // pred_fallthru
        _
      // Predicated region
      $region17: #{cnn_cifar_forward.8} parent=11 // pred_check
        %p121 = pneg %p77
      $region18: #{cnn_cifar_forward.8} parent=11 // pred_check_branch
        %123 = sbr.rel (%p121) target = $region20
      $region19: #{cnn_cifar_forward.8} parent=11 // pred_region
        _
      $region20: #{cnn_cifar_forward.8} parent=11 // pred_fallthru
        _
    $region12: #{cnn_cifar_forward.8} parent=5 // pred_fallthru
      _
    %p124 = scmp.lt.s32.totalorder %s9, 2
    // Predicated region
    $region21: #{cnn_cifar_forward.8} parent=5 // pred_check
      %p125 = pneg %p124
    $region22: #{cnn_cifar_forward.8} parent=5 // pred_check_branch
      %127 = sbr.rel (%p125) target = $region24
    $region23: #{cnn_cifar_forward.8} parent=5 // pred_region
      // Predicated region
      $region25: #{cnn_cifar_forward.8} parent=23 // pred_check
        %p128 = pneg %p29
      $region26: #{cnn_cifar_forward.8} parent=23 // pred_check_branch
        %130 = sbr.rel (%p128) target = $region28
      $region27: #{cnn_cifar_forward.8} parent=23 // pred_region
        %s131 = smul.u32 22, %s9
        %p132 = scmp.lt.s32.totalorder %s131, 43
        %s133 = scalar_select %p132, %s131, 43
        %s134 = smul.addr %s133, 9
        %s135 = smul.addr %s134, 8
        %s136 = scalar_lea.vmem %s0, %s135
        %s137 = smul.u32 22, %s9
      $region28: #{cnn_cifar_forward.8} parent=23 // pred_fallthru
        _
    $region24: #{cnn_cifar_forward.8} parent=5 // pred_fallthru
      _
    %p138 = scmp.le.s32.totalorder 1, %s9
    %p139 = scmp.lt.s32.totalorder %s9, 3
    %p140 = pnand %p138, %p139
    %p141 = pneg %p140
    // Predicated region
    $region29: #{cnn_cifar_forward.8} parent=5 // pred_check
      _
    $region30: #{cnn_cifar_forward.8} parent=5 // pred_check_branch
      %143 = sbr.rel (%p140) target = $region32
    $region31: #{cnn_cifar_forward.8} parent=5 // pred_region
      %s144 = ssub.s32 %s9, 1
      %s145 = smul.u32 22, %s14
      %p146 = scmp.lt.s32.totalorder %s145, 43
      %s147 = scalar_select %p146, %s145, 43
      %s148 = smul.addr %s147, 9
      %s149 = smul.addr %s148, 8
      %s150 = scalar_lea.vmem %s0, %s149
      %p151 = pneg %p35
      %p152 = pneg %p32
      %p153 = pneg %p56
      %p154 = pneg %p53
      %p155 = pneg %p77
      %p156 = pneg %p74
      %p157 = pneg %p103
      %p158 = pneg %p100
      %s159 = smul.u32 22, %s14
      %p160 = scmp.lt.s32.totalorder %s159, 43
      %s161 = scalar_select %p160, %s159, 43
      %s162 = smul.addr %s161, 8
      %s163 = scalar_lea.vmem %s3, %s162
      %s164 = smul.u32 22, %s14
      %p165 = scmp.lt.s32.totalorder %s164, 43
      %s166 = scalar_select %p165, %s164, 43
      %s167 = smul.addr %s166, 9
      %s168 = smul.addr %s167, 8
      %s169 = scalar_lea.vmem %s0, %s168
      %s170 = smul.u32 22, %s14
      %s171 = smul.u32 22, %s14
      %p172 = scmp.lt.s32.totalorder %s171, 43
      %s173 = scalar_select %p172, %s171, 43
      %s174 = smul.addr %s173, 8
      %s175 = scalar_lea.vmem %s3, %s174
      %s176 = smul.u32 22, %s14
      %v177 = vld [vmem:[%s169] sm:$0xff]
      %v178 = vld [vmem:[%s169 + $0x8] sm:$0xff]
      %v179 = vld [vmem:[%s169 + $0x10] sm:$0xff]
      %v180 = vld [vmem:[%s169 + $0x18] sm:$0xff]
      %v181 = vld [vmem:[%s169 + $0x20] sm:$0xff]
      %v182 = vld [vmem:[%s169 + $0x28] sm:$0xff]
      %v183 = vld [vmem:[%s169 + $0x30] sm:$0xff]
      %v184 = vld [vmem:[%s169 + $0x38] sm:$0xff]
      %v185 = vld [vmem:[%s169 + $0x40] sm:$0xff]
      %v186 = vld [vmem:[%s169 + $0x48] sm:$0xff]
      %v187 = vld [vmem:[%s169 + $0x50] sm:$0xff]
      %v188 = vld [vmem:[%s169 + $0x58] sm:$0xff]
      %v189 = vld [vmem:[%s169 + $0x60] sm:$0xff]
      %v190 = vld [vmem:[%s169 + $0x68] sm:$0xff]
      %v191 = vld [vmem:[%s169 + $0x70] sm:$0xff]
      %v192 = vld [vmem:[%s169 + $0x78] sm:$0xff]
      %v193 = vld [vmem:[%s169 + $0x80] sm:$0xff]
      %v194 = vld [vmem:[%s169 + $0x88] sm:$0xff]
      %v195 = vld [vmem:[%s169 + $0x90] sm:$0xff]
      %v196 = vld [vmem:[%s169 + $0x98] sm:$0xff]
      %v197 = vld [vmem:[%s169 + $0xa0] sm:$0xff]
      %v198 = vld [vmem:[%s169 + $0xa8] sm:$0xff]
      %v199 = vld [vmem:[%s169 + $0xb0] sm:$0xff]
      %v200 = vld [vmem:[%s169 + $0xb8] sm:$0xff]
      %v201 = vld [vmem:[%s169 + $0xc0] sm:$0xff]
      %v202 = vld [vmem:[%s169 + $0xc8] sm:$0xff]
      %v203 = vld [vmem:[%s169 + $0xd0] sm:$0xff]
      %v204 = vld [vmem:[%s169 + $0xd8] sm:$0xff]
      %v205 = vld [vmem:[%s169 + $0xe0] sm:$0xff]
      %v206 = vld [vmem:[%s169 + $0xe8] sm:$0xff]
      %v207 = vld [vmem:[%s169 + $0xf0] sm:$0xff]
      %v208 = vld [vmem:[%s169 + $0xf8] sm:$0xff]
      %v209 = vld [vmem:[%s169 + $0x100] sm:$0xff]
      %v210 = vld [vmem:[%s169 + $0x108] sm:$0xff]
      %v211 = vld [vmem:[%s169 + $0x110] sm:$0xff]
      %v212 = vld [vmem:[%s169 + $0x118] sm:$0xff]
      %v213 = vld [vmem:[%s169 + $0x120] sm:$0xff]
      %v214 = vld [vmem:[%s169 + $0x128] sm:$0xff]
      %v215 = vld [vmem:[%s169 + $0x130] sm:$0xff]
      %v216 = vld [vmem:[%s169 + $0x138] sm:$0xff]
      %v217 = vld [vmem:[%s169 + $0x140] sm:$0xff]
      %v218 = vld [vmem:[%s169 + $0x148] sm:$0xff]
      %v219 = vld [vmem:[%s169 + $0x150] sm:$0xff]
      %v220 = vld [vmem:[%s169 + $0x158] sm:$0xff]
      %v221 = vld [vmem:[%s169 + $0x160] sm:$0xff]
      %v222 = vld [vmem:[%s169 + $0x168] sm:$0xff]
      %v223 = vld [vmem:[%s169 + $0x170] sm:$0xff]
      %v224 = vld [vmem:[%s169 + $0x178] sm:$0xff]
      %v225 = vld [vmem:[%s169 + $0x180] sm:$0xff]
      %v226 = vld [vmem:[%s169 + $0x188] sm:$0xff]
      %v227 = vld [vmem:[%s169 + $0x190] sm:$0xff]
      %v228 = vld [vmem:[%s169 + $0x198] sm:$0xff]
      %v229 = vld [vmem:[%s169 + $0x1a0] sm:$0xff]
      %v230 = vld [vmem:[%s169 + $0x1a8] sm:$0xff]
      %v231 = vld [vmem:[%s169 + $0x1b0] sm:$0xff]
      %v232 = vld [vmem:[%s169 + $0x1b8] sm:$0xff]
      %v233 = vld [vmem:[%s169 + $0x1c0] sm:$0xff]
      %v234 = vld [vmem:[%s169 + $0x1c8] sm:$0xff]
      %v235 = vld [vmem:[%s169 + $0x1d0] sm:$0xff]
      %v236 = vld [vmem:[%s169 + $0x1d8] sm:$0xff]
      %v237 = vld [vmem:[%s169 + $0x1e0] sm:$0xff]
      %v238 = vld [vmem:[%s169 + $0x1e8] sm:$0xff]
      %v239 = vld [vmem:[%s169 + $0x1f0] sm:$0xff]
      %v240 = vld [vmem:[%s169 + $0x1f8] sm:$0xff]
      %v241 = vld [vmem:[%s169 + $0x200] sm:$0xff]
      %v242 = vld [vmem:[%s169 + $0x208] sm:$0xff]
      %v243 = vld [vmem:[%s169 + $0x210] sm:$0xff]
      %v244 = vld [vmem:[%s169 + $0x218] sm:$0xff]
      %v245 = vld [vmem:[%s169 + $0x220] sm:$0xff]
      %v246 = vld [vmem:[%s169 + $0x228] sm:$0xff]
      %v247 = vld [vmem:[%s169 + $0x230] sm:$0xff]
      %v248 = vld [vmem:[%s169 + $0x238] sm:$0xff]
      %v249 = vld [vmem:[%s169 + $0x240] sm:$0xff]
      %v250 = vld [vmem:[%s169 + $0x248] sm:$0xff]
      %v251 = vld [vmem:[%s169 + $0x250] sm:$0xff]
      %v252 = vld [vmem:[%s169 + $0x258] sm:$0xff]
      %v253 = vld [vmem:[%s169 + $0x260] sm:$0xff]
      %v254 = vld [vmem:[%s169 + $0x268] sm:$0xff]
      %v255 = vld [vmem:[%s169 + $0x270] sm:$0xff]
      %v256 = vld [vmem:[%s169 + $0x278] sm:$0xff]
      %v257 = vld [vmem:[%s169 + $0x280] sm:$0xff]
      %v258 = vld [vmem:[%s169 + $0x288] sm:$0xff]
      %v259 = vld [vmem:[%s169 + $0x290] sm:$0xff]
      %v260 = vld [vmem:[%s169 + $0x298] sm:$0xff]
      %v261 = vld [vmem:[%s169 + $0x2a0] sm:$0xff]
      %v262 = vld [vmem:[%s169 + $0x2a8] sm:$0xff]
      %v263 = vld [vmem:[%s169 + $0x2b0] sm:$0xff]
      %v264 = vld [vmem:[%s169 + $0x2b8] sm:$0xff]
      %v265 = vld [vmem:[%s169 + $0x2c0] sm:$0xff]
      %v266 = vld [vmem:[%s169 + $0x2c8] sm:$0xff]
      %v267 = vld [vmem:[%s169 + $0x2d0] sm:$0xff]
      %v268 = vld [vmem:[%s169 + $0x2d8] sm:$0xff]
      %v269 = vld [vmem:[%s169 + $0x2e0] sm:$0xff]
      %v270 = vld [vmem:[%s169 + $0x2e8] sm:$0xff]
      %v271 = vld [vmem:[%s169 + $0x2f0] sm:$0xff]
      %v272 = vld [vmem:[%s169 + $0x2f8] sm:$0xff]
      %v273 = vld [vmem:[%s169 + $0x300] sm:$0xff]
      %v274 = vld [vmem:[%s169 + $0x308] sm:$0xff]
      %v275 = vld [vmem:[%s169 + $0x310] sm:$0xff]
      %v276 = vld [vmem:[%s169 + $0x318] sm:$0xff]
      %v277 = vld [vmem:[%s169 + $0x320] sm:$0xff]
      %v278 = vld [vmem:[%s169 + $0x328] sm:$0xff]
      %v279 = vld [vmem:[%s169 + $0x330] sm:$0xff]
      %v280 = vld [vmem:[%s169 + $0x338] sm:$0xff]
      %v281 = vld [vmem:[%s169 + $0x340] sm:$0xff]
      %v282 = vld [vmem:[%s169 + $0x348] sm:$0xff]
      %v283 = vld [vmem:[%s169 + $0x350] sm:$0xff]
      %v284 = vld [vmem:[%s169 + $0x358] sm:$0xff]
      %v285 = vld [vmem:[%s169 + $0x360] sm:$0xff]
      %v286 = vld [vmem:[%s169 + $0x368] sm:$0xff]
      %v287 = vld [vmem:[%s169 + $0x370] sm:$0xff]
      %v288 = vld [vmem:[%s169 + $0x378] sm:$0xff]
      %v289 = vld [vmem:[%s169 + $0x380] sm:$0xff]
      %v290 = vld [vmem:[%s169 + $0x388] sm:$0xff]
      %v291 = vld [vmem:[%s169 + $0x390] sm:$0xff]
      %v292 = vld [vmem:[%s169 + $0x398] sm:$0xff]
      %v293 = vld [vmem:[%s169 + $0x3a0] sm:$0xff]
      %v294 = vld [vmem:[%s169 + $0x3a8] sm:$0xff]
      %v295 = vld [vmem:[%s169 + $0x3b0] sm:$0xff]
      %v296 = vld [vmem:[%s169 + $0x3b8] sm:$0xff]
      %v297 = vld [vmem:[%s169 + $0x3c0] sm:$0xff]
      %v298 = vld [vmem:[%s169 + $0x3c8] sm:$0xff]
      %v299 = vld [vmem:[%s169 + $0x3d0] sm:$0xff]
      %v300 = vld [vmem:[%s169 + $0x3d8] sm:$0xff]
      %v301 = vld [vmem:[%s169 + $0x3e0] sm:$0xff]
      %v302 = vld [vmem:[%s169 + $0x3e8] sm:$0xff]
      %v303 = vld [vmem:[%s169 + $0x3f0] sm:$0xff]
      %v304 = vld [vmem:[%s169 + $0x3f8] sm:$0xff]
      %v305 = vld [vmem:[%s169 + $0x400] sm:$0xff]
      %v306 = vld [vmem:[%s169 + $0x408] sm:$0xff]
      %v307 = vld [vmem:[%s169 + $0x410] sm:$0xff]
      %v308 = vld [vmem:[%s169 + $0x418] sm:$0xff]
      %v309 = vld [vmem:[%s169 + $0x420] sm:$0xff]
      %v310 = vld [vmem:[%s169 + $0x428] sm:$0xff]
      %v311 = vld [vmem:[%s169 + $0x430] sm:$0xff]
      %v312 = vld [vmem:[%s169 + $0x438] sm:$0xff]
      %v313 = vld [vmem:[%s169 + $0x440] sm:$0xff]
      %v314 = vld [vmem:[%s169 + $0x448] sm:$0xff]
      %v315 = vld [vmem:[%s169 + $0x450] sm:$0xff]
      %v316 = vld [vmem:[%s169 + $0x458] sm:$0xff]
      %v317 = vld [vmem:[%s169 + $0x460] sm:$0xff]
      %v318 = vld [vmem:[%s169 + $0x468] sm:$0xff]
      %v319 = vld [vmem:[%s169 + $0x470] sm:$0xff]
      %v320 = vld [vmem:[%s169 + $0x478] sm:$0xff]
      %v321 = vld [vmem:[%s169 + $0x480] sm:$0xff]
      %v322 = vld [vmem:[%s169 + $0x488] sm:$0xff]
      %v323 = vld [vmem:[%s169 + $0x490] sm:$0xff]
      %v324 = vld [vmem:[%s169 + $0x498] sm:$0xff]
      %v325 = vld [vmem:[%s169 + $0x4a0] sm:$0xff]
      %v326 = vld [vmem:[%s169 + $0x4a8] sm:$0xff]
      %v327 = vld [vmem:[%s169 + $0x4b0] sm:$0xff]
      %v328 = vld [vmem:[%s169 + $0x4b8] sm:$0xff]
      %v329 = vld [vmem:[%s169 + $0x4c0] sm:$0xff]
      %v330 = vld [vmem:[%s169 + $0x4c8] sm:$0xff]
      %v331 = vld [vmem:[%s169 + $0x4d0] sm:$0xff]
      %v332 = vld [vmem:[%s169 + $0x4d8] sm:$0xff]
      %v333 = vld [vmem:[%s169 + $0x4e0] sm:$0xff]
      %v334 = vld [vmem:[%s169 + $0x4e8] sm:$0xff]
      %v335 = vld [vmem:[%s169 + $0x4f0] sm:$0xff]
      %v336 = vld [vmem:[%s169 + $0x4f8] sm:$0xff]
      %v337 = vld [vmem:[%s169 + $0x500] sm:$0xff]
      %v338 = vld [vmem:[%s169 + $0x508] sm:$0xff]
      %v339 = vld [vmem:[%s169 + $0x510] sm:$0xff]
      %v340 = vld [vmem:[%s169 + $0x518] sm:$0xff]
      %v341 = vld [vmem:[%s169 + $0x520] sm:$0xff]
      %v342 = vld [vmem:[%s169 + $0x528] sm:$0xff]
      %v343 = vld [vmem:[%s169 + $0x530] sm:$0xff]
      %v344 = vld [vmem:[%s169 + $0x538] sm:$0xff]
      %v345 = vld [vmem:[%s169 + $0x540] sm:$0xff]
      %v346 = vld [vmem:[%s169 + $0x548] sm:$0xff]
      %v347 = vld [vmem:[%s169 + $0x550] sm:$0xff]
      %v348 = vld [vmem:[%s169 + $0x558] sm:$0xff]
      %v349 = vld [vmem:[%s169 + $0x560] sm:$0xff]
      %v350 = vld [vmem:[%s169 + $0x568] sm:$0xff]
      %v351 = vld [vmem:[%s169 + $0x570] sm:$0xff]
      %v352 = vld [vmem:[%s169 + $0x578] sm:$0xff]
      %v353 = vld [vmem:[%s169 + $0x580] sm:$0xff]
      %v354 = vld [vmem:[%s169 + $0x588] sm:$0xff]
      %v355 = vld [vmem:[%s169 + $0x590] sm:$0xff]
      %v356 = vld [vmem:[%s169 + $0x598] sm:$0xff]
      %v357 = vld [vmem:[%s169 + $0x5a0] sm:$0xff]
      %v358 = vld [vmem:[%s169 + $0x5a8] sm:$0xff]
      %v359 = vld [vmem:[%s169 + $0x5b0] sm:$0xff]
      %v360 = vld [vmem:[%s169 + $0x5b8] sm:$0xff]
      %v361 = vld [vmem:[%s169 + $0x5c0] sm:$0xff]
      %v362 = vld [vmem:[%s169 + $0x5c8] sm:$0xff]
      %v363 = vld [vmem:[%s169 + $0x5d0] sm:$0xff]
      %v364 = vld [vmem:[%s169 + $0x5d8] sm:$0xff]
      %v365 = vld [vmem:[%s169 + $0x5e0] sm:$0xff]
      %v366 = vld [vmem:[%s169 + $0x5e8] sm:$0xff]
      %v367 = vld [vmem:[%s169 + $0x5f0] sm:$0xff]
      %v368 = vld [vmem:[%s169 + $0x5f8] sm:$0xff]
      %v369 = vld [vmem:[%s169 + $0x600] sm:$0xff]
      %v370 = vld [vmem:[%s169 + $0x608] sm:$0xff]
      %v371 = vld [vmem:[%s169 + $0x610] sm:$0xff]
      %v372 = vld [vmem:[%s169 + $0x618] sm:$0xff]
      %v373 = vld [vmem:[%s169 + $0x620] sm:$0xff]
      %v374 = vld [vmem:[%s169 + $0x628] sm:$0xff]
      %v375 = vld [vmem:[%s1] sm:$0xff]
      %v376 = vld [vmem:[%s1 + $0x8] sm:$0xff]
      %v377 = vld [vmem:[%s1 + $0x10] sm:$0xff]
      %v378 = vld [vmem:[%s1 + $0x18] sm:$0xff]
      %v379 = vld [vmem:[%s1 + $0x20] sm:$0xff]
      %v380 = vld [vmem:[%s1 + $0x28] sm:$0xff]
      %v381 = vld [vmem:[%s1 + $0x30] sm:$0xff]
      %v382 = vld [vmem:[%s1 + $0x38] sm:$0xff]
      %v383 = vld [vmem:[%s1 + $0x40] sm:$0xff]
      %v384 = vld [vmem:[%s1 + $0x48] sm:$0xff]
      %v385 = vld [vmem:[%s1 + $0x50] sm:$0xff]
      %v386 = vld [vmem:[%s1 + $0x58] sm:$0xff]
      %v387 = vld [vmem:[%s1 + $0x60] sm:$0xff]
      %v388 = vld [vmem:[%s1 + $0x68] sm:$0xff]
      %v389 = vld [vmem:[%s1 + $0x70] sm:$0xff]
      %v390 = vld [vmem:[%s1 + $0x78] sm:$0xff]
      %v391 = vld [vmem:[%s1 + $0x80] sm:$0xff]
      %v392 = vld [vmem:[%s1 + $0x88] sm:$0xff]
      %v393 = vld [vmem:[%s1 + $0x90] sm:$0xff]
      %v394 = vld [vmem:[%s1 + $0x98] sm:$0xff]
      %v395 = vld [vmem:[%s1 + $0xa0] sm:$0xff]
      %v396 = vld [vmem:[%s1 + $0xa8] sm:$0xff]
      %v397 = vld [vmem:[%s1 + $0xb0] sm:$0xff]
      %v398 = vld [vmem:[%s1 + $0xb8] sm:$0xff]
      %v399 = vld [vmem:[%s1 + $0xc0] sm:$0xff]
      %v400 = vld [vmem:[%s1 + $0xc8] sm:$0xff]
      %v401 = vld [vmem:[%s1 + $0xd0] sm:$0xff]
      %v402 = vld [vmem:[%s1 + $0xd8] sm:$0xff]
      %v403 = vld [vmem:[%s1 + $0xe0] sm:$0xff]
      %v404 = vld [vmem:[%s1 + $0xe8] sm:$0xff]
      %v405 = vld [vmem:[%s1 + $0xf0] sm:$0xff]
      %v406 = vld [vmem:[%s1 + $0xf8] sm:$0xff]
      %v407 = vld [vmem:[%s1 + $0x100] sm:$0xff]
      %v408 = vld [vmem:[%s1 + $0x108] sm:$0xff]
      %v409 = vld [vmem:[%s1 + $0x110] sm:$0xff]
      %v410 = vld [vmem:[%s1 + $0x118] sm:$0xff]
      %v411 = vld [vmem:[%s1 + $0x120] sm:$0xff]
      %v412 = vld [vmem:[%s1 + $0x128] sm:$0xff]
      %v413 = vld [vmem:[%s1 + $0x130] sm:$0xff]
      %v414 = vld [vmem:[%s1 + $0x138] sm:$0xff]
      %v415 = vld [vmem:[%s1 + $0x140] sm:$0xff]
      %v416 = vld [vmem:[%s1 + $0x148] sm:$0xff]
      %v417 = vld [vmem:[%s1 + $0x150] sm:$0xff]
      %v418 = vld [vmem:[%s1 + $0x158] sm:$0xff]
      %v419 = vld [vmem:[%s1 + $0x160] sm:$0xff]
      %v420 = vld [vmem:[%s1 + $0x168] sm:$0xff]
      %v421 = vld [vmem:[%s1 + $0x170] sm:$0xff]
      %v422 = vld [vmem:[%s1 + $0x178] sm:$0xff]
      %v423 = vld [vmem:[%s1 + $0x180] sm:$0xff]
      %v424 = vld [vmem:[%s1 + $0x188] sm:$0xff]
      %v425 = vld [vmem:[%s1 + $0x190] sm:$0xff]
      %v426 = vld [vmem:[%s1 + $0x198] sm:$0xff]
      %v427 = vld [vmem:[%s1 + $0x1a0] sm:$0xff]
      %v428 = vld [vmem:[%s1 + $0x1a8] sm:$0xff]
      %v429 = vld [vmem:[%s1 + $0x1b0] sm:$0xff]
      %v430 = vld [vmem:[%s1 + $0x1b8] sm:$0xff]
      %v431 = vld [vmem:[%s1 + $0x1c0] sm:$0xff]
      %v432 = vld [vmem:[%s1 + $0x1c8] sm:$0xff]
      %v433 = vld [vmem:[%s1 + $0x1d0] sm:$0xff]
      %v434 = vld [vmem:[%s1 + $0x1d8] sm:$0xff]
      %v435 = vld [vmem:[%s1 + $0x1e0] sm:$0xff]
      %v436 = vld [vmem:[%s1 + $0x1e8] sm:$0xff]
      %v437 = vld [vmem:[%s1 + $0x1f0] sm:$0xff]
      %v438 = vld [vmem:[%s1 + $0x1f8] sm:$0xff]
      %v439 = vld [vmem:[%s1 + $0x200] sm:$0xff]
      %v440 = vld [vmem:[%s1 + $0x208] sm:$0xff]
      %v441 = vld [vmem:[%s1 + $0x210] sm:$0xff]
      %v442 = vld [vmem:[%s1 + $0x218] sm:$0xff]
      %v443 = vld [vmem:[%s1 + $0x220] sm:$0xff]
      %v444 = vld [vmem:[%s1 + $0x228] sm:$0xff]
      %v445 = vld [vmem:[%s1 + $0x230] sm:$0xff]
      %v446 = vld [vmem:[%s1 + $0x238] sm:$0xff]
      %v447 = vld [vmem:[%s1 + $0x240] sm:$0xff]
      %v448 = vld [vmem:[%s1 + $0x248] sm:$0xff]
      %v449 = vld [vmem:[%s1 + $0x250] sm:$0xff]
      %v450 = vld [vmem:[%s1 + $0x258] sm:$0xff]
      %v451 = vld [vmem:[%s1 + $0x260] sm:$0xff]
      %v452 = vld [vmem:[%s1 + $0x268] sm:$0xff]
      %v453 = vld [vmem:[%s1 + $0x270] sm:$0xff]
      %v454 = vld [vmem:[%s1 + $0x278] sm:$0xff]
      %v455 = vld [vmem:[%s1 + $0x280] sm:$0xff]
      %v456 = vld [vmem:[%s1 + $0x288] sm:$0xff]
      %v457 = vld [vmem:[%s1 + $0x290] sm:$0xff]
      %v458 = vld [vmem:[%s1 + $0x298] sm:$0xff]
      %v459 = vld [vmem:[%s1 + $0x2a0] sm:$0xff]
      %v460 = vld [vmem:[%s1 + $0x2a8] sm:$0xff]
      %v461 = vld [vmem:[%s1 + $0x2b0] sm:$0xff]
      %v462 = vld [vmem:[%s1 + $0x2b8] sm:$0xff]
      %v463 = vld [vmem:[%s1 + $0x2c0] sm:$0xff]
      %v464 = vld [vmem:[%s1 + $0x2c8] sm:$0xff]
      %v465 = vld [vmem:[%s1 + $0x2d0] sm:$0xff]
      %v466 = vld [vmem:[%s1 + $0x2d8] sm:$0xff]
      %v467 = vld [vmem:[%s1 + $0x2e0] sm:$0xff]
      %v468 = vld [vmem:[%s1 + $0x2e8] sm:$0xff]
      %v469 = vld [vmem:[%s1 + $0x2f0] sm:$0xff]
      %v470 = vld [vmem:[%s1 + $0x2f8] sm:$0xff]
      %v471 = vld [vmem:[%s1 + $0x300] sm:$0xff]
      %v472 = vld [vmem:[%s1 + $0x308] sm:$0xff]
      %v473 = vld [vmem:[%s1 + $0x310] sm:$0xff]
      %v474 = vld [vmem:[%s1 + $0x318] sm:$0xff]
      %v475 = vld [vmem:[%s1 + $0x320] sm:$0xff]
      %v476 = vld [vmem:[%s1 + $0x328] sm:$0xff]
      %v477 = vld [vmem:[%s1 + $0x330] sm:$0xff]
      %v478 = vld [vmem:[%s1 + $0x338] sm:$0xff]
      %v479 = vld [vmem:[%s1 + $0x340] sm:$0xff]
      %v480 = vld [vmem:[%s1 + $0x348] sm:$0xff]
      %v481 = vld [vmem:[%s1 + $0x350] sm:$0xff]
      %v482 = vld [vmem:[%s1 + $0x358] sm:$0xff]
      %v483 = vld [vmem:[%s1 + $0x360] sm:$0xff]
      %v484 = vld [vmem:[%s1 + $0x368] sm:$0xff]
      %v485 = vld [vmem:[%s1 + $0x370] sm:$0xff]
      %v486 = vld [vmem:[%s1 + $0x378] sm:$0xff]
      %v487 = vld [vmem:[%s1 + $0x380] sm:$0xff]
      %v488 = vld [vmem:[%s1 + $0x388] sm:$0xff]
      %v489 = vld [vmem:[%s1 + $0x390] sm:$0xff]
      %v490 = vld [vmem:[%s1 + $0x398] sm:$0xff]
      %v491 = vld [vmem:[%s1 + $0x3a0] sm:$0xff]
      %v492 = vld [vmem:[%s1 + $0x3a8] sm:$0xff]
      %v493 = vld [vmem:[%s1 + $0x3b0] sm:$0xff]
      %v494 = vld [vmem:[%s1 + $0x3b8] sm:$0xff]
      %v495 = vld [vmem:[%s1 + $0x3c0] sm:$0xff]
      %v496 = vld [vmem:[%s1 + $0x3c8] sm:$0xff]
      %v497 = vld [vmem:[%s1 + $0x3d0] sm:$0xff]
      %v498 = vld [vmem:[%s1 + $0x3d8] sm:$0xff]
      %v499 = vld [vmem:[%s1 + $0x3e0] sm:$0xff]
      %v500 = vld [vmem:[%s1 + $0x3e8] sm:$0xff]
      %v501 = vld [vmem:[%s1 + $0x3f0] sm:$0xff]
      %v502 = vld [vmem:[%s1 + $0x3f8] sm:$0xff]
      %v503 = vld [vmem:[%s1 + $0x400] sm:$0xff]
      %v504 = vld [vmem:[%s1 + $0x408] sm:$0xff]
      %v505 = vld [vmem:[%s1 + $0x410] sm:$0xff]
      %v506 = vld [vmem:[%s1 + $0x418] sm:$0xff]
      %v507 = vld [vmem:[%s1 + $0x420] sm:$0xff]
      %v508 = vld [vmem:[%s1 + $0x428] sm:$0xff]
      %v509 = vld [vmem:[%s1 + $0x430] sm:$0xff]
      %v510 = vld [vmem:[%s1 + $0x438] sm:$0xff]
      %v511 = vld [vmem:[%s1 + $0x440] sm:$0xff]
      %v512 = vld [vmem:[%s1 + $0x448] sm:$0xff]
      %v513 = vld [vmem:[%s1 + $0x450] sm:$0xff]
      %v514 = vld [vmem:[%s1 + $0x458] sm:$0xff]
      %v515 = vld [vmem:[%s1 + $0x460] sm:$0xff]
      %v516 = vld [vmem:[%s1 + $0x468] sm:$0xff]
      %v517 = vld [vmem:[%s1 + $0x470] sm:$0xff]
      %v518 = vld [vmem:[%s1 + $0x478] sm:$0xff]
      %v519 = vld [vmem:[%s2] sm:$0x1]
      %v521 = vperm.slane %v519, 0
      %523 = vmatpush.msra.mxu0 %v390
      %524 = vmatpush.msra.mxu0 %v389
      %525 = vmatpush.msra.mxu0 %v388
      %526 = vmatpush.msra.mxu0 %v387
      %527 = vmatpush.msra.mxu0 %v386
      %528 = vmatpush.msra.mxu0 %v385
      %529 = vmatpush.msra.mxu0 %v384
      %530 = vmatpush.msra.mxu0 %v383
      %531 = vmatpush.msra.mxu0 %v382
      %532 = vmatpush.msra.mxu0 %v381
      %533 = vmatpush.msra.mxu0 %v380
      %534 = vmatpush.msra.mxu0 %v379
      %535 = vmatpush.msra.mxu0 %v378
      %536 = vmatpush.msra.mxu0 %v377
      %537 = vmatpush.msra.mxu0 %v376
      %538 = vmatpush.msra.mxu0 %v375
      %539 = vmatmul.f32.gmra.mxu0 %v177
      %v540 = vpop.f32.mrf.mxu0
      %v541 = vadd.f32 %v521, %v540
      %542 = vmatmul.f32.gmra.mxu0 %v186
      %v543 = vpop.f32.mrf.mxu0
      %v544 = vadd.f32 %v521, %v543
      %545 = vmatmul.f32.gmra.mxu0 %v195
      %v546 = vpop.f32.mrf.mxu0
      %v547 = vadd.f32 %v521, %v546
      %548 = vmatmul.f32.gmra.mxu0 %v204
      %v549 = vpop.f32.mrf.mxu0
      %v550 = vadd.f32 %v521, %v549
      %551 = vmatmul.f32.gmra.mxu0 %v213
      %v552 = vpop.f32.mrf.mxu0
      %v553 = vadd.f32 %v521, %v552
      %554 = vmatmul.f32.gmra.mxu0 %v222
      %v555 = vpop.f32.mrf.mxu0
      %v556 = vadd.f32 %v521, %v555
      %557 = vmatmul.f32.gmra.mxu0 %v231
      %v558 = vpop.f32.mrf.mxu0
      %v559 = vadd.f32 %v521, %v558
      %560 = vmatmul.f32.gmra.mxu0 %v240
      %v561 = vpop.f32.mrf.mxu0
      %v562 = vadd.f32 %v521, %v561
      %563 = vmatmul.f32.gmra.mxu0 %v249
      %v564 = vpop.f32.mrf.mxu0
      %v565 = vadd.f32 %v521, %v564
      %566 = vmatmul.f32.gmra.mxu0 %v258
      %v567 = vpop.f32.mrf.mxu0
      %v568 = vadd.f32 %v521, %v567
      %569 = vmatmul.f32.gmra.mxu0 %v267
      %v570 = vpop.f32.mrf.mxu0
      %v571 = vadd.f32 %v521, %v570
      %572 = vmatmul.f32.gmra.mxu0 %v276
      %v573 = vpop.f32.mrf.mxu0
      %v574 = vadd.f32 %v521, %v573
      %575 = vmatmul.f32.gmra.mxu0 %v285
      %v576 = vpop.f32.mrf.mxu0
      %v577 = vadd.f32 %v521, %v576
      %578 = vmatmul.f32.gmra.mxu0 %v294
      %v579 = vpop.f32.mrf.mxu0
      %v580 = vadd.f32 %v521, %v579
      %581 = vmatmul.f32.gmra.mxu0 %v303
      %v582 = vpop.f32.mrf.mxu0
      %v583 = vadd.f32 %v521, %v582
      %584 = vmatmul.f32.gmra.mxu0 %v312
      %v585 = vpop.f32.mrf.mxu0
      %v586 = vadd.f32 %v521, %v585
      %587 = vmatmul.f32.gmra.mxu0 %v321
      %v588 = vpop.f32.mrf.mxu0
      %v589 = vadd.f32 %v521, %v588
      %590 = vmatmul.f32.gmra.mxu0 %v330
      %v591 = vpop.f32.mrf.mxu0
      %v592 = vadd.f32 %v521, %v591
      %593 = vmatmul.f32.gmra.mxu0 %v339
      %v594 = vpop.f32.mrf.mxu0
      %v595 = vadd.f32 %v521, %v594
      %596 = vmatmul.f32.gmra.mxu0 %v348
      %v597 = vpop.f32.mrf.mxu0
      %v598 = vadd.f32 %v521, %v597
      %599 = vmatmul.f32.gmra.mxu0 %v357
      %v600 = vpop.f32.mrf.mxu0
      %v601 = vadd.f32 %v521, %v600
      %602 = vmatmul.f32.gmra.mxu0 %v366
      %v603 = vpop.f32.mrf.mxu0
      %v604 = vadd.f32 %v521, %v603
      %605 = vdwg.mxu0
      %606 = vmatpush.msra.mxu0 %v406
      %607 = vmatpush.msra.mxu0 %v405
      %608 = vmatpush.msra.mxu0 %v404
      %609 = vmatpush.msra.mxu0 %v403
      %610 = vmatpush.msra.mxu0 %v402
      %611 = vmatpush.msra.mxu0 %v401
      %612 = vmatpush.msra.mxu0 %v400
      %613 = vmatpush.msra.mxu0 %v399
      %614 = vmatpush.msra.mxu0 %v398
      %615 = vmatpush.msra.mxu0 %v397
      %616 = vmatpush.msra.mxu0 %v396
      %617 = vmatpush.msra.mxu0 %v395
      %618 = vmatpush.msra.mxu0 %v394
      %619 = vmatpush.msra.mxu0 %v393
      %620 = vmatpush.msra.mxu0 %v392
      %621 = vmatpush.msra.mxu0 %v391
      %622 = vmatmul.f32.gmra.mxu0 %v178
      %v623 = vpop.f32.mrf.mxu0
      %v624 = vadd.f32 %v541, %v623
      %625 = vmatmul.f32.gmra.mxu0 %v187
      %v626 = vpop.f32.mrf.mxu0
      %v627 = vadd.f32 %v544, %v626
      %628 = vmatmul.f32.gmra.mxu0 %v196
      %v629 = vpop.f32.mrf.mxu0
      %v630 = vadd.f32 %v547, %v629
      %631 = vmatmul.f32.gmra.mxu0 %v205
      %v632 = vpop.f32.mrf.mxu0
      %v633 = vadd.f32 %v550, %v632
      %634 = vmatmul.f32.gmra.mxu0 %v214
      %v635 = vpop.f32.mrf.mxu0
      %v636 = vadd.f32 %v553, %v635
      %637 = vmatmul.f32.gmra.mxu0 %v223
      %v638 = vpop.f32.mrf.mxu0
      %v639 = vadd.f32 %v556, %v638
      %640 = vmatmul.f32.gmra.mxu0 %v232
      %v641 = vpop.f32.mrf.mxu0
      %v642 = vadd.f32 %v559, %v641
      %643 = vmatmul.f32.gmra.mxu0 %v241
      %v644 = vpop.f32.mrf.mxu0
      %v645 = vadd.f32 %v562, %v644
      %646 = vmatmul.f32.gmra.mxu0 %v250
      %v647 = vpop.f32.mrf.mxu0
      %v648 = vadd.f32 %v565, %v647
      %649 = vmatmul.f32.gmra.mxu0 %v259
      %v650 = vpop.f32.mrf.mxu0
      %v651 = vadd.f32 %v568, %v650
      %652 = vmatmul.f32.gmra.mxu0 %v268
      %v653 = vpop.f32.mrf.mxu0
      %v654 = vadd.f32 %v571, %v653
      %655 = vmatmul.f32.gmra.mxu0 %v277
      %v656 = vpop.f32.mrf.mxu0
      %v657 = vadd.f32 %v574, %v656
      %658 = vmatmul.f32.gmra.mxu0 %v286
      %v659 = vpop.f32.mrf.mxu0
      %v660 = vadd.f32 %v577, %v659
      %661 = vmatmul.f32.gmra.mxu0 %v295
      %v662 = vpop.f32.mrf.mxu0
      %v663 = vadd.f32 %v580, %v662
      %664 = vmatmul.f32.gmra.mxu0 %v304
      %v665 = vpop.f32.mrf.mxu0
      %v666 = vadd.f32 %v583, %v665
      %667 = vmatmul.f32.gmra.mxu0 %v313
      %v668 = vpop.f32.mrf.mxu0
      %v669 = vadd.f32 %v586, %v668
      %670 = vmatmul.f32.gmra.mxu0 %v322
      %v671 = vpop.f32.mrf.mxu0
      %v672 = vadd.f32 %v589, %v671
      %673 = vmatmul.f32.gmra.mxu0 %v331
      %v674 = vpop.f32.mrf.mxu0
      %v675 = vadd.f32 %v592, %v674
      %676 = vmatmul.f32.gmra.mxu0 %v340
      %v677 = vpop.f32.mrf.mxu0
      %v678 = vadd.f32 %v595, %v677
      %679 = vmatmul.f32.gmra.mxu0 %v349
      %v680 = vpop.f32.mrf.mxu0
      %v681 = vadd.f32 %v598, %v680
      %682 = vmatmul.f32.gmra.mxu0 %v358
      %v683 = vpop.f32.mrf.mxu0
      %v684 = vadd.f32 %v601, %v683
      %685 = vmatmul.f32.gmra.mxu0 %v367
      %v686 = vpop.f32.mrf.mxu0
      %v687 = vadd.f32 %v604, %v686
      %688 = vdwg.mxu0
      %689 = vmatpush.msra.mxu0 %v422
      %690 = vmatpush.msra.mxu0 %v421
      %691 = vmatpush.msra.mxu0 %v420
      %692 = vmatpush.msra.mxu0 %v419
      %693 = vmatpush.msra.mxu0 %v418
      %694 = vmatpush.msra.mxu0 %v417
      %695 = vmatpush.msra.mxu0 %v416
      %696 = vmatpush.msra.mxu0 %v415
      %697 = vmatpush.msra.mxu0 %v414
      %698 = vmatpush.msra.mxu0 %v413
      %699 = vmatpush.msra.mxu0 %v412
      %700 = vmatpush.msra.mxu0 %v411
      %701 = vmatpush.msra.mxu0 %v410
      %702 = vmatpush.msra.mxu0 %v409
      %703 = vmatpush.msra.mxu0 %v408
      %704 = vmatpush.msra.mxu0 %v407
      %705 = vmatmul.f32.gmra.mxu0 %v179
      %v706 = vpop.f32.mrf.mxu0
      %v707 = vadd.f32 %v624, %v706
      %708 = vmatmul.f32.gmra.mxu0 %v188
      %v709 = vpop.f32.mrf.mxu0
      %v710 = vadd.f32 %v627, %v709
      %711 = vmatmul.f32.gmra.mxu0 %v197
      %v712 = vpop.f32.mrf.mxu0
      %v713 = vadd.f32 %v630, %v712
      %714 = vmatmul.f32.gmra.mxu0 %v206
      %v715 = vpop.f32.mrf.mxu0
      %v716 = vadd.f32 %v633, %v715
      %717 = vmatmul.f32.gmra.mxu0 %v215
      %v718 = vpop.f32.mrf.mxu0
      %v719 = vadd.f32 %v636, %v718
      %720 = vmatmul.f32.gmra.mxu0 %v224
      %v721 = vpop.f32.mrf.mxu0
      %v722 = vadd.f32 %v639, %v721
      %723 = vmatmul.f32.gmra.mxu0 %v233
      %v724 = vpop.f32.mrf.mxu0
      %v725 = vadd.f32 %v642, %v724
      %726 = vmatmul.f32.gmra.mxu0 %v242
      %v727 = vpop.f32.mrf.mxu0
      %v728 = vadd.f32 %v645, %v727
      %729 = vmatmul.f32.gmra.mxu0 %v251
      %v730 = vpop.f32.mrf.mxu0
      %v731 = vadd.f32 %v648, %v730
      %732 = vmatmul.f32.gmra.mxu0 %v260
      %v733 = vpop.f32.mrf.mxu0
      %v734 = vadd.f32 %v651, %v733
      %735 = vmatmul.f32.gmra.mxu0 %v269
      %v736 = vpop.f32.mrf.mxu0
      %v737 = vadd.f32 %v654, %v736
      %738 = vmatmul.f32.gmra.mxu0 %v278
      %v739 = vpop.f32.mrf.mxu0
      %v740 = vadd.f32 %v657, %v739
      %741 = vmatmul.f32.gmra.mxu0 %v287
      %v742 = vpop.f32.mrf.mxu0
      %v743 = vadd.f32 %v660, %v742
      %744 = vmatmul.f32.gmra.mxu0 %v296
      %v745 = vpop.f32.mrf.mxu0
      %v746 = vadd.f32 %v663, %v745
      %747 = vmatmul.f32.gmra.mxu0 %v305
      %v748 = vpop.f32.mrf.mxu0
      %v749 = vadd.f32 %v666, %v748
      %750 = vmatmul.f32.gmra.mxu0 %v314
      %v751 = vpop.f32.mrf.mxu0
      %v752 = vadd.f32 %v669, %v751
      %753 = vmatmul.f32.gmra.mxu0 %v323
      %v754 = vpop.f32.mrf.mxu0
      %v755 = vadd.f32 %v672, %v754
      %756 = vmatmul.f32.gmra.mxu0 %v332
      %v757 = vpop.f32.mrf.mxu0
      %v758 = vadd.f32 %v675, %v757
      %759 = vmatmul.f32.gmra.mxu0 %v341
      %v760 = vpop.f32.mrf.mxu0
      %v761 = vadd.f32 %v678, %v760
      %762 = vmatmul.f32.gmra.mxu0 %v350
      %v763 = vpop.f32.mrf.mxu0
      %v764 = vadd.f32 %v681, %v763
      %765 = vmatmul.f32.gmra.mxu0 %v359
      %v766 = vpop.f32.mrf.mxu0
      %v767 = vadd.f32 %v684, %v766
      %768 = vmatmul.f32.gmra.mxu0 %v368
      %v769 = vpop.f32.mrf.mxu0
      %v770 = vadd.f32 %v687, %v769
      %771 = vdwg.mxu0
      %772 = vmatpush.msra.mxu0 %v438
      %773 = vmatpush.msra.mxu0 %v437
      %774 = vmatpush.msra.mxu0 %v436
      %775 = vmatpush.msra.mxu0 %v435
      %776 = vmatpush.msra.mxu0 %v434
      %777 = vmatpush.msra.mxu0 %v433
      %778 = vmatpush.msra.mxu0 %v432
      %779 = vmatpush.msra.mxu0 %v431
      %780 = vmatpush.msra.mxu0 %v430
      %781 = vmatpush.msra.mxu0 %v429
      %782 = vmatpush.msra.mxu0 %v428
      %783 = vmatpush.msra.mxu0 %v427
      %784 = vmatpush.msra.mxu0 %v426
      %785 = vmatpush.msra.mxu0 %v425
      %786 = vmatpush.msra.mxu0 %v424
      %787 = vmatpush.msra.mxu0 %v423
      %788 = vmatmul.f32.gmra.mxu0 %v180
      %v789 = vpop.f32.mrf.mxu0
      %v790 = vadd.f32 %v707, %v789
      %791 = vmatmul.f32.gmra.mxu0 %v189
      %v792 = vpop.f32.mrf.mxu0
      %v793 = vadd.f32 %v710, %v792
      %794 = vmatmul.f32.gmra.mxu0 %v198
      %v795 = vpop.f32.mrf.mxu0
      %v796 = vadd.f32 %v713, %v795
      %797 = vmatmul.f32.gmra.mxu0 %v207
      %v798 = vpop.f32.mrf.mxu0
      %v799 = vadd.f32 %v716, %v798
      %800 = vmatmul.f32.gmra.mxu0 %v216
      %v801 = vpop.f32.mrf.mxu0
      %v802 = vadd.f32 %v719, %v801
      %803 = vmatmul.f32.gmra.mxu0 %v225
      %v804 = vpop.f32.mrf.mxu0
      %v805 = vadd.f32 %v722, %v804
      %806 = vmatmul.f32.gmra.mxu0 %v234
      %v807 = vpop.f32.mrf.mxu0
      %v808 = vadd.f32 %v725, %v807
      %809 = vmatmul.f32.gmra.mxu0 %v243
      %v810 = vpop.f32.mrf.mxu0
      %v811 = vadd.f32 %v728, %v810
      %812 = vmatmul.f32.gmra.mxu0 %v252
      %v813 = vpop.f32.mrf.mxu0
      %v814 = vadd.f32 %v731, %v813
      %815 = vmatmul.f32.gmra.mxu0 %v261
      %v816 = vpop.f32.mrf.mxu0
      %v817 = vadd.f32 %v734, %v816
      %818 = vmatmul.f32.gmra.mxu0 %v270
      %v819 = vpop.f32.mrf.mxu0
      %v820 = vadd.f32 %v737, %v819
      %821 = vmatmul.f32.gmra.mxu0 %v279
      %v822 = vpop.f32.mrf.mxu0
      %v823 = vadd.f32 %v740, %v822
      %824 = vmatmul.f32.gmra.mxu0 %v288
      %v825 = vpop.f32.mrf.mxu0
      %v826 = vadd.f32 %v743, %v825
      %827 = vmatmul.f32.gmra.mxu0 %v297
      %v828 = vpop.f32.mrf.mxu0
      %v829 = vadd.f32 %v746, %v828
      %830 = vmatmul.f32.gmra.mxu0 %v306
      %v831 = vpop.f32.mrf.mxu0
      %v832 = vadd.f32 %v749, %v831
      %833 = vmatmul.f32.gmra.mxu0 %v315
      %v834 = vpop.f32.mrf.mxu0
      %v835 = vadd.f32 %v752, %v834
      %836 = vmatmul.f32.gmra.mxu0 %v324
      %v837 = vpop.f32.mrf.mxu0
      %v838 = vadd.f32 %v755, %v837
      %839 = vmatmul.f32.gmra.mxu0 %v333
      %v840 = vpop.f32.mrf.mxu0
      %v841 = vadd.f32 %v758, %v840
      %842 = vmatmul.f32.gmra.mxu0 %v342
      %v843 = vpop.f32.mrf.mxu0
      %v844 = vadd.f32 %v761, %v843
      %845 = vmatmul.f32.gmra.mxu0 %v351
      %v846 = vpop.f32.mrf.mxu0
      %v847 = vadd.f32 %v764, %v846
      %848 = vmatmul.f32.gmra.mxu0 %v360
      %v849 = vpop.f32.mrf.mxu0
      %v850 = vadd.f32 %v767, %v849
      %851 = vmatmul.f32.gmra.mxu0 %v369
      %v852 = vpop.f32.mrf.mxu0
      %v853 = vadd.f32 %v770, %v852
      %854 = vdwg.mxu0
      %855 = vmatpush.msra.mxu0 %v454
      %856 = vmatpush.msra.mxu0 %v453
      %857 = vmatpush.msra.mxu0 %v452
      %858 = vmatpush.msra.mxu0 %v451
      %859 = vmatpush.msra.mxu0 %v450
      %860 = vmatpush.msra.mxu0 %v449
      %861 = vmatpush.msra.mxu0 %v448
      %862 = vmatpush.msra.mxu0 %v447
      %863 = vmatpush.msra.mxu0 %v446
      %864 = vmatpush.msra.mxu0 %v445
      %865 = vmatpush.msra.mxu0 %v444
      %866 = vmatpush.msra.mxu0 %v443
      %867 = vmatpush.msra.mxu0 %v442
      %868 = vmatpush.msra.mxu0 %v441
      %869 = vmatpush.msra.mxu0 %v440
      %870 = vmatpush.msra.mxu0 %v439
      %871 = vmatmul.f32.gmra.mxu0 %v181
      %v872 = vpop.f32.mrf.mxu0
      %v873 = vadd.f32 %v790, %v872
      %874 = vmatmul.f32.gmra.mxu0 %v190
      %v875 = vpop.f32.mrf.mxu0
      %v876 = vadd.f32 %v793, %v875
      %877 = vmatmul.f32.gmra.mxu0 %v199
      %v878 = vpop.f32.mrf.mxu0
      %v879 = vadd.f32 %v796, %v878
      %880 = vmatmul.f32.gmra.mxu0 %v208
      %v881 = vpop.f32.mrf.mxu0
      %v882 = vadd.f32 %v799, %v881
      %883 = vmatmul.f32.gmra.mxu0 %v217
      %v884 = vpop.f32.mrf.mxu0
      %v885 = vadd.f32 %v802, %v884
      %886 = vmatmul.f32.gmra.mxu0 %v226
      %v887 = vpop.f32.mrf.mxu0
      %v888 = vadd.f32 %v805, %v887
      %889 = vmatmul.f32.gmra.mxu0 %v235
      %v890 = vpop.f32.mrf.mxu0
      %v891 = vadd.f32 %v808, %v890
      %892 = vmatmul.f32.gmra.mxu0 %v244
      %v893 = vpop.f32.mrf.mxu0
      %v894 = vadd.f32 %v811, %v893
      %895 = vmatmul.f32.gmra.mxu0 %v253
      %v896 = vpop.f32.mrf.mxu0
      %v897 = vadd.f32 %v814, %v896
      %898 = vmatmul.f32.gmra.mxu0 %v262
      %v899 = vpop.f32.mrf.mxu0
      %v900 = vadd.f32 %v817, %v899
      %901 = vmatmul.f32.gmra.mxu0 %v271
      %v902 = vpop.f32.mrf.mxu0
      %v903 = vadd.f32 %v820, %v902
      %904 = vmatmul.f32.gmra.mxu0 %v280
      %v905 = vpop.f32.mrf.mxu0
      %v906 = vadd.f32 %v823, %v905
      %907 = vmatmul.f32.gmra.mxu0 %v289
      %v908 = vpop.f32.mrf.mxu0
      %v909 = vadd.f32 %v826, %v908
      %910 = vmatmul.f32.gmra.mxu0 %v298
      %v911 = vpop.f32.mrf.mxu0
      %v912 = vadd.f32 %v829, %v911
      %913 = vmatmul.f32.gmra.mxu0 %v307
      %v914 = vpop.f32.mrf.mxu0
      %v915 = vadd.f32 %v832, %v914
      %916 = vmatmul.f32.gmra.mxu0 %v316
      %v917 = vpop.f32.mrf.mxu0
      %v918 = vadd.f32 %v835, %v917
      %919 = vmatmul.f32.gmra.mxu0 %v325
      %v920 = vpop.f32.mrf.mxu0
      %v921 = vadd.f32 %v838, %v920
      %922 = vmatmul.f32.gmra.mxu0 %v334
      %v923 = vpop.f32.mrf.mxu0
      %v924 = vadd.f32 %v841, %v923
      %925 = vmatmul.f32.gmra.mxu0 %v343
      %v926 = vpop.f32.mrf.mxu0
      %v927 = vadd.f32 %v844, %v926
      %928 = vmatmul.f32.gmra.mxu0 %v352
      %v929 = vpop.f32.mrf.mxu0
      %v930 = vadd.f32 %v847, %v929
      %931 = vmatmul.f32.gmra.mxu0 %v361
      %v932 = vpop.f32.mrf.mxu0
      %v933 = vadd.f32 %v850, %v932
      %934 = vmatmul.f32.gmra.mxu0 %v370
      %v935 = vpop.f32.mrf.mxu0
      %v936 = vadd.f32 %v853, %v935
      %937 = vdwg.mxu0
      %938 = vmatpush.msra.mxu0 %v470
      %939 = vmatpush.msra.mxu0 %v469
      %940 = vmatpush.msra.mxu0 %v468
      %941 = vmatpush.msra.mxu0 %v467
      %942 = vmatpush.msra.mxu0 %v466
      %943 = vmatpush.msra.mxu0 %v465
      %944 = vmatpush.msra.mxu0 %v464
      %945 = vmatpush.msra.mxu0 %v463
      %946 = vmatpush.msra.mxu0 %v462
      %947 = vmatpush.msra.mxu0 %v461
      %948 = vmatpush.msra.mxu0 %v460
      %949 = vmatpush.msra.mxu0 %v459
      %950 = vmatpush.msra.mxu0 %v458
      %951 = vmatpush.msra.mxu0 %v457
      %952 = vmatpush.msra.mxu0 %v456
      %953 = vmatpush.msra.mxu0 %v455
      %954 = vmatmul.f32.gmra.mxu0 %v182
      %v955 = vpop.f32.mrf.mxu0
      %v956 = vadd.f32 %v873, %v955
      %957 = vmatmul.f32.gmra.mxu0 %v191
      %v958 = vpop.f32.mrf.mxu0
      %v959 = vadd.f32 %v876, %v958
      %960 = vmatmul.f32.gmra.mxu0 %v200
      %v961 = vpop.f32.mrf.mxu0
      %v962 = vadd.f32 %v879, %v961
      %963 = vmatmul.f32.gmra.mxu0 %v209
      %v964 = vpop.f32.mrf.mxu0
      %v965 = vadd.f32 %v882, %v964
      %966 = vmatmul.f32.gmra.mxu0 %v218
      %v967 = vpop.f32.mrf.mxu0
      %v968 = vadd.f32 %v885, %v967
      %969 = vmatmul.f32.gmra.mxu0 %v227
      %v970 = vpop.f32.mrf.mxu0
      %v971 = vadd.f32 %v888, %v970
      %972 = vmatmul.f32.gmra.mxu0 %v236
      %v973 = vpop.f32.mrf.mxu0
      %v974 = vadd.f32 %v891, %v973
      %975 = vmatmul.f32.gmra.mxu0 %v245
      %v976 = vpop.f32.mrf.mxu0
      %v977 = vadd.f32 %v894, %v976
      %978 = vmatmul.f32.gmra.mxu0 %v254
      %v979 = vpop.f32.mrf.mxu0
      %v980 = vadd.f32 %v897, %v979
      %981 = vmatmul.f32.gmra.mxu0 %v263
      %v982 = vpop.f32.mrf.mxu0
      %v983 = vadd.f32 %v900, %v982
      %984 = vmatmul.f32.gmra.mxu0 %v272
      %v985 = vpop.f32.mrf.mxu0
      %v986 = vadd.f32 %v903, %v985
      %987 = vmatmul.f32.gmra.mxu0 %v281
      %v988 = vpop.f32.mrf.mxu0
      %v989 = vadd.f32 %v906, %v988
      %990 = vmatmul.f32.gmra.mxu0 %v290
      %v991 = vpop.f32.mrf.mxu0
      %v992 = vadd.f32 %v909, %v991
      %993 = vmatmul.f32.gmra.mxu0 %v299
      %v994 = vpop.f32.mrf.mxu0
      %v995 = vadd.f32 %v912, %v994
      %996 = vmatmul.f32.gmra.mxu0 %v308
      %v997 = vpop.f32.mrf.mxu0
      %v998 = vadd.f32 %v915, %v997
      %999 = vmatmul.f32.gmra.mxu0 %v317
      %v1000 = vpop.f32.mrf.mxu0
      %v1001 = vadd.f32 %v918, %v1000
      %1002 = vmatmul.f32.gmra.mxu0 %v326
      %v1003 = vpop.f32.mrf.mxu0
      %v1004 = vadd.f32 %v921, %v1003
      %1005 = vmatmul.f32.gmra.mxu0 %v335
      %v1006 = vpop.f32.mrf.mxu0
      %v1007 = vadd.f32 %v924, %v1006
      %1008 = vmatmul.f32.gmra.mxu0 %v344
      %v1009 = vpop.f32.mrf.mxu0
      %v1010 = vadd.f32 %v927, %v1009
      %1011 = vmatmul.f32.gmra.mxu0 %v353
      %v1012 = vpop.f32.mrf.mxu0
      %v1013 = vadd.f32 %v930, %v1012
      %1014 = vmatmul.f32.gmra.mxu0 %v362
      %v1015 = vpop.f32.mrf.mxu0
      %v1016 = vadd.f32 %v933, %v1015
      %1017 = vmatmul.f32.gmra.mxu0 %v371
      %v1018 = vpop.f32.mrf.mxu0
      %v1019 = vadd.f32 %v936, %v1018
      %1020 = vdwg.mxu0
      %1021 = vmatpush.msra.mxu0 %v486
      %1022 = vmatpush.msra.mxu0 %v485
      %1023 = vmatpush.msra.mxu0 %v484
      %1024 = vmatpush.msra.mxu0 %v483
      %1025 = vmatpush.msra.mxu0 %v482
      %1026 = vmatpush.msra.mxu0 %v481
      %1027 = vmatpush.msra.mxu0 %v480
      %1028 = vmatpush.msra.mxu0 %v479
      %1029 = vmatpush.msra.mxu0 %v478
      %1030 = vmatpush.msra.mxu0 %v477
      %1031 = vmatpush.msra.mxu0 %v476
      %1032 = vmatpush.msra.mxu0 %v475
      %1033 = vmatpush.msra.mxu0 %v474
      %1034 = vmatpush.msra.mxu0 %v473
      %1035 = vmatpush.msra.mxu0 %v472
      %1036 = vmatpush.msra.mxu0 %v471
      %1037 = vmatmul.f32.gmra.mxu0 %v183
      %v1038 = vpop.f32.mrf.mxu0
      %v1039 = vadd.f32 %v956, %v1038
      %1040 = vmatmul.f32.gmra.mxu0 %v192
      %v1041 = vpop.f32.mrf.mxu0
      %v1042 = vadd.f32 %v959, %v1041
      %1043 = vmatmul.f32.gmra.mxu0 %v201
      %v1044 = vpop.f32.mrf.mxu0
      %v1045 = vadd.f32 %v962, %v1044
      %1046 = vmatmul.f32.gmra.mxu0 %v210
      %v1047 = vpop.f32.mrf.mxu0
      %v1048 = vadd.f32 %v965, %v1047
      %1049 = vmatmul.f32.gmra.mxu0 %v219
      %v1050 = vpop.f32.mrf.mxu0
      %v1051 = vadd.f32 %v968, %v1050
      %1052 = vmatmul.f32.gmra.mxu0 %v228
      %v1053 = vpop.f32.mrf.mxu0
      %v1054 = vadd.f32 %v971, %v1053
      %1055 = vmatmul.f32.gmra.mxu0 %v237
      %v1056 = vpop.f32.mrf.mxu0
      %v1057 = vadd.f32 %v974, %v1056
      %1058 = vmatmul.f32.gmra.mxu0 %v246
      %v1059 = vpop.f32.mrf.mxu0
      %v1060 = vadd.f32 %v977, %v1059
      %1061 = vmatmul.f32.gmra.mxu0 %v255
      %v1062 = vpop.f32.mrf.mxu0
      %v1063 = vadd.f32 %v980, %v1062
      %1064 = vmatmul.f32.gmra.mxu0 %v264
      %v1065 = vpop.f32.mrf.mxu0
      %v1066 = vadd.f32 %v983, %v1065
      %1067 = vmatmul.f32.gmra.mxu0 %v273
      %v1068 = vpop.f32.mrf.mxu0
      %v1069 = vadd.f32 %v986, %v1068
      %1070 = vmatmul.f32.gmra.mxu0 %v282
      %v1071 = vpop.f32.mrf.mxu0
      %v1072 = vadd.f32 %v989, %v1071
      %1073 = vmatmul.f32.gmra.mxu0 %v291
      %v1074 = vpop.f32.mrf.mxu0
      %v1075 = vadd.f32 %v992, %v1074
      %1076 = vmatmul.f32.gmra.mxu0 %v300
      %v1077 = vpop.f32.mrf.mxu0
      %v1078 = vadd.f32 %v995, %v1077
      %1079 = vmatmul.f32.gmra.mxu0 %v309
      %v1080 = vpop.f32.mrf.mxu0
      %v1081 = vadd.f32 %v998, %v1080
      %1082 = vmatmul.f32.gmra.mxu0 %v318
      %v1083 = vpop.f32.mrf.mxu0
      %v1084 = vadd.f32 %v1001, %v1083
      %1085 = vmatmul.f32.gmra.mxu0 %v327
      %v1086 = vpop.f32.mrf.mxu0
      %v1087 = vadd.f32 %v1004, %v1086
      %1088 = vmatmul.f32.gmra.mxu0 %v336
      %v1089 = vpop.f32.mrf.mxu0
      %v1090 = vadd.f32 %v1007, %v1089
      %1091 = vmatmul.f32.gmra.mxu0 %v345
      %v1092 = vpop.f32.mrf.mxu0
      %v1093 = vadd.f32 %v1010, %v1092
      %1094 = vmatmul.f32.gmra.mxu0 %v354
      %v1095 = vpop.f32.mrf.mxu0
      %v1096 = vadd.f32 %v1013, %v1095
      %1097 = vmatmul.f32.gmra.mxu0 %v363
      %v1098 = vpop.f32.mrf.mxu0
      %v1099 = vadd.f32 %v1016, %v1098
      %1100 = vmatmul.f32.gmra.mxu0 %v372
      %v1101 = vpop.f32.mrf.mxu0
      %v1102 = vadd.f32 %v1019, %v1101
      %1103 = vdwg.mxu0
      %1104 = vmatpush.msra.mxu0 %v502
      %1105 = vmatpush.msra.mxu0 %v501
      %1106 = vmatpush.msra.mxu0 %v500
      %1107 = vmatpush.msra.mxu0 %v499
      %1108 = vmatpush.msra.mxu0 %v498
      %1109 = vmatpush.msra.mxu0 %v497
      %1110 = vmatpush.msra.mxu0 %v496
      %1111 = vmatpush.msra.mxu0 %v495
      %1112 = vmatpush.msra.mxu0 %v494
      %1113 = vmatpush.msra.mxu0 %v493
      %1114 = vmatpush.msra.mxu0 %v492
      %1115 = vmatpush.msra.mxu0 %v491
      %1116 = vmatpush.msra.mxu0 %v490
      %1117 = vmatpush.msra.mxu0 %v489
      %1118 = vmatpush.msra.mxu0 %v488
      %1119 = vmatpush.msra.mxu0 %v487
      %1120 = vmatmul.f32.gmra.mxu0 %v184
      %v1121 = vpop.f32.mrf.mxu0
      %v1122 = vadd.f32 %v1039, %v1121
      %1123 = vmatmul.f32.gmra.mxu0 %v193
      %v1124 = vpop.f32.mrf.mxu0
      %v1125 = vadd.f32 %v1042, %v1124
      %1126 = vmatmul.f32.gmra.mxu0 %v202
      %v1127 = vpop.f32.mrf.mxu0
      %v1128 = vadd.f32 %v1045, %v1127
      %1129 = vmatmul.f32.gmra.mxu0 %v211
      %v1130 = vpop.f32.mrf.mxu0
      %v1131 = vadd.f32 %v1048, %v1130
      %1132 = vmatmul.f32.gmra.mxu0 %v220
      %v1133 = vpop.f32.mrf.mxu0
      %v1134 = vadd.f32 %v1051, %v1133
      %1135 = vmatmul.f32.gmra.mxu0 %v229
      %v1136 = vpop.f32.mrf.mxu0
      %v1137 = vadd.f32 %v1054, %v1136
      %1138 = vmatmul.f32.gmra.mxu0 %v238
      %v1139 = vpop.f32.mrf.mxu0
      %v1140 = vadd.f32 %v1057, %v1139
      %1141 = vmatmul.f32.gmra.mxu0 %v247
      %v1142 = vpop.f32.mrf.mxu0
      %v1143 = vadd.f32 %v1060, %v1142
      %1144 = vmatmul.f32.gmra.mxu0 %v256
      %v1145 = vpop.f32.mrf.mxu0
      %v1146 = vadd.f32 %v1063, %v1145
      %1147 = vmatmul.f32.gmra.mxu0 %v265
      %v1148 = vpop.f32.mrf.mxu0
      %v1149 = vadd.f32 %v1066, %v1148
      %1150 = vmatmul.f32.gmra.mxu0 %v274
      %v1151 = vpop.f32.mrf.mxu0
      %v1152 = vadd.f32 %v1069, %v1151
      %1153 = vmatmul.f32.gmra.mxu0 %v283
      %v1154 = vpop.f32.mrf.mxu0
      %v1155 = vadd.f32 %v1072, %v1154
      %1156 = vmatmul.f32.gmra.mxu0 %v292
      %v1157 = vpop.f32.mrf.mxu0
      %v1158 = vadd.f32 %v1075, %v1157
      %1159 = vmatmul.f32.gmra.mxu0 %v301
      %v1160 = vpop.f32.mrf.mxu0
      %v1161 = vadd.f32 %v1078, %v1160
      %1162 = vmatmul.f32.gmra.mxu0 %v310
      %v1163 = vpop.f32.mrf.mxu0
      %v1164 = vadd.f32 %v1081, %v1163
      %1165 = vmatmul.f32.gmra.mxu0 %v319
      %v1166 = vpop.f32.mrf.mxu0
      %v1167 = vadd.f32 %v1084, %v1166
      %1168 = vmatmul.f32.gmra.mxu0 %v328
      %v1169 = vpop.f32.mrf.mxu0
      %v1170 = vadd.f32 %v1087, %v1169
      %1171 = vmatmul.f32.gmra.mxu0 %v337
      %v1172 = vpop.f32.mrf.mxu0
      %v1173 = vadd.f32 %v1090, %v1172
      %1174 = vmatmul.f32.gmra.mxu0 %v346
      %v1175 = vpop.f32.mrf.mxu0
      %v1176 = vadd.f32 %v1093, %v1175
      %1177 = vmatmul.f32.gmra.mxu0 %v355
      %v1178 = vpop.f32.mrf.mxu0
      %v1179 = vadd.f32 %v1096, %v1178
      %1180 = vmatmul.f32.gmra.mxu0 %v364
      %v1181 = vpop.f32.mrf.mxu0
      %v1182 = vadd.f32 %v1099, %v1181
      %1183 = vmatmul.f32.gmra.mxu0 %v373
      %v1184 = vpop.f32.mrf.mxu0
      %v1185 = vadd.f32 %v1102, %v1184
      %1186 = vdwg.mxu0
      %1187 = vmatpush.msra.mxu0 %v518
      %1188 = vmatpush.msra.mxu0 %v517
      %1189 = vmatpush.msra.mxu0 %v516
      %1190 = vmatpush.msra.mxu0 %v515
      %1191 = vmatpush.msra.mxu0 %v514
      %1192 = vmatpush.msra.mxu0 %v513
      %1193 = vmatpush.msra.mxu0 %v512
      %1194 = vmatpush.msra.mxu0 %v511
      %1195 = vmatpush.msra.mxu0 %v510
      %1196 = vmatpush.msra.mxu0 %v509
      %1197 = vmatpush.msra.mxu0 %v508
      %1198 = vmatpush.msra.mxu0 %v507
      %1199 = vmatpush.msra.mxu0 %v506
      %1200 = vmatpush.msra.mxu0 %v505
      %1201 = vmatpush.msra.mxu0 %v504
      %1202 = vmatpush.msra.mxu0 %v503
      %1203 = vmatmul.f32.gmra.mxu0 %v185
      %v1204 = vpop.f32.mrf.mxu0
      %v1205 = vadd.f32 %v1122, %v1204
      %1206 = vmatmul.f32.gmra.mxu0 %v194
      %v1207 = vpop.f32.mrf.mxu0
      %v1208 = vadd.f32 %v1125, %v1207
      %1209 = vmatmul.f32.gmra.mxu0 %v203
      %v1210 = vpop.f32.mrf.mxu0
      %v1211 = vadd.f32 %v1128, %v1210
      %1212 = vmatmul.f32.gmra.mxu0 %v212
      %v1213 = vpop.f32.mrf.mxu0
      %v1214 = vadd.f32 %v1131, %v1213
      %1215 = vmatmul.f32.gmra.mxu0 %v221
      %v1216 = vpop.f32.mrf.mxu0
      %v1217 = vadd.f32 %v1134, %v1216
      %1218 = vmatmul.f32.gmra.mxu0 %v230
      %v1219 = vpop.f32.mrf.mxu0
      %v1220 = vadd.f32 %v1137, %v1219
      %1221 = vmatmul.f32.gmra.mxu0 %v239
      %v1222 = vpop.f32.mrf.mxu0
      %v1223 = vadd.f32 %v1140, %v1222
      %1224 = vmatmul.f32.gmra.mxu0 %v248
      %v1225 = vpop.f32.mrf.mxu0
      %v1226 = vadd.f32 %v1143, %v1225
      %1227 = vmatmul.f32.gmra.mxu0 %v257
      %v1228 = vpop.f32.mrf.mxu0
      %v1229 = vadd.f32 %v1146, %v1228
      %1230 = vmatmul.f32.gmra.mxu0 %v266
      %v1231 = vpop.f32.mrf.mxu0
      %v1232 = vadd.f32 %v1149, %v1231
      %1233 = vmatmul.f32.gmra.mxu0 %v275
      %v1234 = vpop.f32.mrf.mxu0
      %v1235 = vadd.f32 %v1152, %v1234
      %1236 = vmatmul.f32.gmra.mxu0 %v284
      %v1237 = vpop.f32.mrf.mxu0
      %v1238 = vadd.f32 %v1155, %v1237
      %1239 = vmatmul.f32.gmra.mxu0 %v293
      %v1240 = vpop.f32.mrf.mxu0
      %v1241 = vadd.f32 %v1158, %v1240
      %1242 = vmatmul.f32.gmra.mxu0 %v302
      %v1243 = vpop.f32.mrf.mxu0
      %v1244 = vadd.f32 %v1161, %v1243
      %1245 = vmatmul.f32.gmra.mxu0 %v311
      %v1246 = vpop.f32.mrf.mxu0
      %v1247 = vadd.f32 %v1164, %v1246
      %1248 = vmatmul.f32.gmra.mxu0 %v320
      %v1249 = vpop.f32.mrf.mxu0
      %v1250 = vadd.f32 %v1167, %v1249
      %1251 = vmatmul.f32.gmra.mxu0 %v329
      %v1252 = vpop.f32.mrf.mxu0
      %v1253 = vadd.f32 %v1170, %v1252
      %1254 = vmatmul.f32.gmra.mxu0 %v338
      %v1255 = vpop.f32.mrf.mxu0
      %v1256 = vadd.f32 %v1173, %v1255
      %1257 = vmatmul.f32.gmra.mxu0 %v347
      %v1258 = vpop.f32.mrf.mxu0
      %v1259 = vadd.f32 %v1176, %v1258
      %1260 = vmatmul.f32.gmra.mxu0 %v356
      %v1261 = vpop.f32.mrf.mxu0
      %v1262 = vadd.f32 %v1179, %v1261
      %1263 = vmatmul.f32.gmra.mxu0 %v365
      %v1264 = vpop.f32.mrf.mxu0
      %v1265 = vadd.f32 %v1182, %v1264
      %1266 = vmatmul.f32.gmra.mxu0 %v374
      %v1267 = vpop.f32.mrf.mxu0
      %v1268 = vadd.f32 %v1185, %v1267
      %1269 = vdwg.mxu0
      %v1270 = vmax.f32 %v1205, 0.0
      %v1271 = vmax.f32 %v1208, 0.0
      %v1272 = vmax.f32 %v1211, 0.0
      %v1273 = vmax.f32 %v1214, 0.0
      %v1274 = vmax.f32 %v1217, 0.0
      %v1275 = vmax.f32 %v1220, 0.0
      %v1276 = vmax.f32 %v1223, 0.0
      %v1277 = vmax.f32 %v1226, 0.0
      %v1278 = vmax.f32 %v1229, 0.0
      %v1279 = vmax.f32 %v1232, 0.0
      %v1280 = vmax.f32 %v1235, 0.0
      %v1281 = vmax.f32 %v1238, 0.0
      %v1282 = vmax.f32 %v1241, 0.0
      %v1283 = vmax.f32 %v1244, 0.0
      %v1284 = vmax.f32 %v1247, 0.0
      %v1285 = vmax.f32 %v1250, 0.0
      %v1286 = vmax.f32 %v1253, 0.0
      %v1287 = vmax.f32 %v1256, 0.0
      %v1288 = vmax.f32 %v1259, 0.0
      %v1289 = vmax.f32 %v1262, 0.0
      %v1290 = vmax.f32 %v1265, 0.0
      %v1291 = vmax.f32 %v1268, 0.0
      %1292 = vst [vmem:[%s175] sm:$0xff] %v1270
      %1293 = vst [vmem:[%s175 + $0x8] sm:$0xff] %v1271
      %1294 = vst [vmem:[%s175 + $0x10] sm:$0xff] %v1272
      %1295 = vst [vmem:[%s175 + $0x18] sm:$0xff] %v1273
      %1296 = vst [vmem:[%s175 + $0x20] sm:$0xff] %v1274
      %1297 = vst [vmem:[%s175 + $0x28] sm:$0xff] %v1275
      %1298 = vst [vmem:[%s175 + $0x30] sm:$0xff] %v1276
      %1299 = vst [vmem:[%s175 + $0x38] sm:$0xff] %v1277
      %1300 = vst [vmem:[%s175 + $0x40] sm:$0xff] %v1278
      %1301 = vst [vmem:[%s175 + $0x48] sm:$0xff] %v1279
      %1302 = vst [vmem:[%s175 + $0x50] sm:$0xff] %v1280
      %1303 = vst [vmem:[%s175 + $0x58] sm:$0xff] %v1281
      %1304 = vst [vmem:[%s175 + $0x60] sm:$0xff] %v1282
      %1305 = vst [vmem:[%s175 + $0x68] sm:$0xff] %v1283
      %1306 = vst [vmem:[%s175 + $0x70] sm:$0xff] %v1284
      %1307 = vst [vmem:[%s175 + $0x78] sm:$0xff] %v1285
      %1308 = vst [vmem:[%s175 + $0x80] sm:$0xff] %v1286
      %1309 = vst [vmem:[%s175 + $0x88] sm:$0xff] %v1287
      %1310 = vst [vmem:[%s175 + $0x90] sm:$0xff] %v1288
      %1311 = vst [vmem:[%s175 + $0x98] sm:$0xff] %v1289
      %1312 = vst [vmem:[%s175 + $0xa0] sm:$0xff] %v1290
      %1313 = vst [vmem:[%s175 + $0xa8] sm:$0xff] %v1291
      %s1314 = smul.u32 22, %s14
      %p1315 = scmp.lt.s32.totalorder %s1314, 43
      %s1316 = scalar_select %p1315, %s1314, 43
      %s1317 = smul.addr %s1316, 8
      %s1318 = scalar_lea.vmem %s3, %s1317
      // Predicated region
      $region33: #{cnn_cifar_forward.8} parent=31 // pred_check
        %p1319 = pneg %p100
      $region34: #{cnn_cifar_forward.8} parent=31 // pred_check_branch
        %1321 = sbr.rel (%p1319) target = $region36
      $region35: #{cnn_cifar_forward.8} parent=31 // pred_region
        %s1322 = smul.u32 22, %s14
      $region36: #{cnn_cifar_forward.8} parent=31 // pred_fallthru
        _
    $region32: #{cnn_cifar_forward.8} parent=5 // pred_fallthru
      _
    %p1323 = scmp.le.s32.totalorder 2, %s9
    // Predicated region
    $region37: #{cnn_cifar_forward.8} parent=5 // pred_check
      %p1324 = pneg %p1323
    $region38: #{cnn_cifar_forward.8} parent=5 // pred_check_branch
      %1326 = sbr.rel (%p1324) target = $region40
    $region39: #{cnn_cifar_forward.8} parent=5 // pred_region
      %s1327 = ssub.s32 %s9, 2
      // Predicated region
      $region41: #{cnn_cifar_forward.8} parent=39 // pred_check
        %p1328 = pneg %p106
      $region42: #{cnn_cifar_forward.8} parent=39 // pred_check_branch
        %1330 = sbr.rel (%p1328) target = $region44
      $region43: #{cnn_cifar_forward.8} parent=39 // pred_region
        %s1331 = smul.u32 22, %s15
        %p1332 = scmp.lt.s32.totalorder %s1331, 43
        %s1333 = scalar_select %p1332, %s1331, 43
        %s1334 = smul.addr %s1333, 8
        %s1335 = scalar_lea.vmem %s3, %s1334
      $region44: #{cnn_cifar_forward.8} parent=39 // pred_fallthru
        _
    $region40: #{cnn_cifar_forward.8} parent=5 // pred_fallthru
      _
  $region6: #{cnn_cifar_forward.8} parent=0 // loop_footer
    %s13 = sadd.s32 1, %s9
  $region7: #{cnn_cifar_forward.8} parent=0 // loop_footer_branch
    %8 = sbr.rel target = $region3
  $region8: #{cnn_cifar_forward.8} parent=0 // loop_exit
    _

// kernel: cnn_cifar_forward.9
$region0: #{cnn_cifar_forward.9}
  #allocation0 [shape = 'u32[]', space=smem, size = 0x4, offset = 0x4, fixed_abs, tag = 'smem constant byte address 0x4 - core index']
  #allocation1 [shape = 'u32[72,128]{1,0:T(1,128)}', space=vmem, size = 0x9000, scoped, tag = 'internal scratch']
  %s0 = inlined_call_operand.vmem [shape: f32[2,6,2,6,256], index: 0, kind: input, shape index: {}]
  %s1 = inlined_call_operand.vmem [shape: f32[2,6,6,128], index: 1, kind: output, shape index: {}]
  %s2 = sld [smem:[#allocation0]]
  $region37: #{cnn_cifar_forward.9} parent=0
    _
  %s4 = ssub.s32 1, %s2
  %s5 = scalar_select 0, %s4, %s2
  loop: start=0, step=1, limit=4
  $region2: #{cnn_cifar_forward.9} parent=0 // loop_pre_header
    _
  $region3: #{cnn_cifar_forward.9} parent=0 // loop_header
    %s7 = sphi 0, %s11
    %p8 = scmp.ge.s32.totalorder %s7, 4
    %s17 = sphi 0, %s19
    %s20 = sphi 0, %s17
    %s21 = sphi 0, %s20
    %s37 = sphi 0, %s21
    %s43 = sphi 0, %s45
    %s46 = sphi 0, %s43
    %s47 = sphi 0, %s46
    %s63 = sphi 0, %s47
  $region4: #{cnn_cifar_forward.9} parent=0 // loop_header_branch
    %10 = sbr.rel (%p8) target = $region8
  $region5: #{cnn_cifar_forward.9} parent=0 // loop_body
    %s12 = ssub.s32 %s7, 1
    %s13 = ssub.s32 %s7, 2
    %s14 = sadd.s32 %s7, 1
    %s15 = ssub.s32 %s7, %s14
    %p16 = scmp.eq.s32.totalorder %s15, 0
    %s18 = sadd.s32 %s17, 1
    %s19 = scalar_select %p16, %s17, %s18
    %p22 = pneg %p16
    %p23 = scmp.eq.s32.totalorder %s7, 1
    %p24 = por %p22, %p23
    %p25 = scmp.ne.s32.totalorder %s17, %s20
    %p26 = scmp.eq.s32.totalorder %s7, 0
    %p27 = por %p25, %p26
    %p28 = scmp.ne.s32.totalorder %s17, %s20
    %p29 = scmp.eq.s32.totalorder %s12, 1
    %p30 = por %p28, %p29
    %p31 = scmp.ne.s32.totalorder %s20, %s21
    %p32 = scmp.eq.s32.totalorder %s12, 0
    %p33 = por %p31, %p32
    %p34 = scmp.ne.s32.totalorder %s20, %s21
    %p35 = scmp.eq.s32.totalorder %s13, 1
    %p36 = por %p34, %p35
    %p38 = scmp.ne.s32.totalorder %s21, %s37
    %p39 = scmp.eq.s32.totalorder %s13, 0
    %p40 = por %p38, %p39
    %s41 = ssub.s32 %s7, %s14
    %p42 = scmp.eq.s32.totalorder %s41, 0
    %s44 = sadd.s32 %s43, 1
    %s45 = scalar_select %p42, %s43, %s44
    %p48 = pneg %p42
    %p49 = scmp.eq.s32.totalorder %s7, 1
    %p50 = por %p48, %p49
    %p51 = scmp.ne.s32.totalorder %s43, %s46
    %p52 = scmp.eq.s32.totalorder %s7, 0
    %p53 = por %p51, %p52
    %p54 = scmp.ne.s32.totalorder %s43, %s46
    %p55 = scmp.eq.s32.totalorder %s12, 1
    %p56 = por %p54, %p55
    %p57 = scmp.ne.s32.totalorder %s46, %s47
    %p58 = scmp.eq.s32.totalorder %s12, 0
    %p59 = por %p57, %p58
    %p60 = scmp.ne.s32.totalorder %s46, %s47
    %p61 = scmp.eq.s32.totalorder %s13, 1
    %p62 = por %p60, %p61
    %p64 = scmp.ne.s32.totalorder %s47, %s63
    %p65 = scmp.eq.s32.totalorder %s13, 0
    %p66 = por %p64, %p65
    %p67 = scmp.le.s32.totalorder 1, %s7
    %p68 = scmp.lt.s32.totalorder %s7, 3
    %p69 = pnand %p67, %p68
    %p70 = pneg %p69
    // Predicated region
    $region9: #{cnn_cifar_forward.9} parent=5 // pred_check
      _
    $region10: #{cnn_cifar_forward.9} parent=5 // pred_check_branch
      %72 = sbr.rel (%p69) target = $region12
    $region11: #{cnn_cifar_forward.9} parent=5 // pred_region
      %s73 = ssub.s32 %s7, 1
    $region12: #{cnn_cifar_forward.9} parent=5 // pred_fallthru
      _
    %p74 = scmp.lt.s32.totalorder %s7, 2
    // Predicated region
    $region13: #{cnn_cifar_forward.9} parent=5 // pred_check
      %p75 = pneg %p74
    $region14: #{cnn_cifar_forward.9} parent=5 // pred_check_branch
      %77 = sbr.rel (%p75) target = $region16
    $region15: #{cnn_cifar_forward.9} parent=5 // pred_region
      // Predicated region
      $region17: #{cnn_cifar_forward.9} parent=15 // pred_check
        %p78 = pneg %p27
      $region18: #{cnn_cifar_forward.9} parent=15 // pred_check_branch
        %80 = sbr.rel (%p78) target = $region20
      $region19: #{cnn_cifar_forward.9} parent=15 // pred_region
        %p81 = scmp.lt.s32.totalorder %s7, 1
        %s82 = scalar_select %p81, %s7, 1
        %s83 = smul.addr %s82, 24
        %s84 = smul.addr %s83, 8
        %s85 = scalar_lea.vmem %s0, %s84
      $region20: #{cnn_cifar_forward.9} parent=15 // pred_fallthru
        _
    $region16: #{cnn_cifar_forward.9} parent=5 // pred_fallthru
      _
    %p86 = scmp.le.s32.totalorder 1, %s7
    %p87 = scmp.lt.s32.totalorder %s7, 3
    %p88 = pnand %p86, %p87
    %p89 = pneg %p88
    // Predicated region
    $region21: #{cnn_cifar_forward.9} parent=5 // pred_check
      _
    $region22: #{cnn_cifar_forward.9} parent=5 // pred_check_branch
      %91 = sbr.rel (%p88) target = $region24
    $region23: #{cnn_cifar_forward.9} parent=5 // pred_region
      %s92 = ssub.s32 %s7, 1
      %p93 = scmp.lt.s32.totalorder %s12, 1
      %s94 = scalar_select %p93, %s12, 1
      %s95 = smul.addr %s94, 24
      %s96 = smul.addr %s95, 8
      %s97 = scalar_lea.vmem %s0, %s96
      %p98 = pneg %p33
      %p99 = pneg %p30
      %p100 = pneg %p59
      %p101 = pneg %p56
      %p102 = scmp.lt.s32.totalorder %s12, 1
      %s103 = scalar_select %p102, %s12, 1
      %s104 = smul.addr %s103, 6
      %s105 = smul.addr %s104, 8
      %s106 = scalar_lea.vmem %s1, %s105
      %p107 = scmp.lt.s32.totalorder %s12, 1
      %s108 = scalar_select %p107, %s12, 1
      %s109 = smul.addr %s108, 24
      %s110 = smul.addr %s109, 8
      %s111 = scalar_lea.vmem %s0, %s110
      %p112 = scmp.lt.s32.totalorder %s12, 1
      %s113 = scalar_select %p112, %s12, 1
      %s114 = smul.addr %s113, 6
      %s115 = smul.addr %s114, 8
      %s116 = scalar_lea.vmem %s1, %s115
      %v117 = vld [vmem:[%s111] sm:$0x3f]
      %v118 = vld [vmem:[%s111 + $0x8] sm:$0x3f]
      %v119 = vld [vmem:[%s111 + $0x10] sm:$0x3f]
      %v120 = vld [vmem:[%s111 + $0x18] sm:$0x3f]
      %v121 = vld [vmem:[%s111 + $0x20] sm:$0x3f]
      %v122 = vld [vmem:[%s111 + $0x28] sm:$0x3f]
      %v123 = vld [vmem:[%s111 + $0x30] sm:$0x3f]
      %v124 = vld [vmem:[%s111 + $0x38] sm:$0x3f]
      %v125 = vld [vmem:[%s111 + $0x40] sm:$0x3f]
      %v126 = vld [vmem:[%s111 + $0x48] sm:$0x3f]
      %v127 = vld [vmem:[%s111 + $0x50] sm:$0x3f]
      %v128 = vld [vmem:[%s111 + $0x58] sm:$0x3f]
      %v129 = vld [vmem:[%s111 + $0x60] sm:$0x3f]
      %v130 = vld [vmem:[%s111 + $0x68] sm:$0x3f]
      %v131 = vld [vmem:[%s111 + $0x70] sm:$0x3f]
      %v132 = vld [vmem:[%s111 + $0x78] sm:$0x3f]
      %v133 = vld [vmem:[%s111 + $0x80] sm:$0x3f]
      %v134 = vld [vmem:[%s111 + $0x88] sm:$0x3f]
      %v135 = vld [vmem:[%s111 + $0x90] sm:$0x3f]
      %v136 = vld [vmem:[%s111 + $0x98] sm:$0x3f]
      %v137 = vld [vmem:[%s111 + $0xa0] sm:$0x3f]
      %v138 = vld [vmem:[%s111 + $0xa8] sm:$0x3f]
      %v139 = vld [vmem:[%s111 + $0xb0] sm:$0x3f]
      %v140 = vld [vmem:[%s111 + $0xb8] sm:$0x3f]
      %vm141 = vcmask 1045504
      %v142 = vsel %vm141, %v117, -inf
      %v143 = vsel %vm141, %v119, -inf
      %v144 = vmax.f32 %v142, %v143
      %v145 = vsel %vm141, %v118, -inf
      %v146 = vsel %vm141, %v120, -inf
      %v147 = vmax.f32 %v145, %v146
      %v148 = vsel %vm141, %v121, -inf
      %v149 = vsel %vm141, %v123, -inf
      %v150 = vmax.f32 %v148, %v149
      %v151 = vsel %vm141, %v122, -inf
      %v152 = vsel %vm141, %v124, -inf
      %v153 = vmax.f32 %v151, %v152
      %v154 = vsel %vm141, %v125, -inf
      %v155 = vsel %vm141, %v127, -inf
      %v156 = vmax.f32 %v154, %v155
      %v157 = vsel %vm141, %v126, -inf
      %v158 = vsel %vm141, %v128, -inf
      %v159 = vmax.f32 %v157, %v158
      %v160 = vsel %vm141, %v129, -inf
      %v161 = vsel %vm141, %v131, -inf
      %v162 = vmax.f32 %v160, %v161
      %v163 = vsel %vm141, %v130, -inf
      %v164 = vsel %vm141, %v132, -inf
      %v165 = vmax.f32 %v163, %v164
      %v166 = vsel %vm141, %v133, -inf
      %v167 = vsel %vm141, %v135, -inf
      %v168 = vmax.f32 %v166, %v167
      %v169 = vsel %vm141, %v134, -inf
      %v170 = vsel %vm141, %v136, -inf
      %v171 = vmax.f32 %v169, %v170
      %v172 = vsel %vm141, %v137, -inf
      %v173 = vsel %vm141, %v139, -inf
      %v174 = vmax.f32 %v172, %v173
      %v175 = vsel %vm141, %v138, -inf
      %v176 = vsel %vm141, %v140, -inf
      %v177 = vmax.f32 %v175, %v176
      %v178 = vmax.f32 %v144, %v147
      %v179 = vmax.f32 %v150, %v153
      %v180 = vmax.f32 %v156, %v159
      %v181 = vmax.f32 %v162, %v165
      %v182 = vmax.f32 %v168, %v171
      %v183 = vmax.f32 %v174, %v177
      %184 = vst [vmem:[%s116] sm:$0x3f] %v178
      %185 = vst [vmem:[%s116 + $0x8] sm:$0x3f] %v179
      %186 = vst [vmem:[%s116 + $0x10] sm:$0x3f] %v180
      %187 = vst [vmem:[%s116 + $0x18] sm:$0x3f] %v181
      %188 = vst [vmem:[%s116 + $0x20] sm:$0x3f] %v182
      %189 = vst [vmem:[%s116 + $0x28] sm:$0x3f] %v183
      %p190 = scmp.lt.s32.totalorder %s12, 1
      %s191 = scalar_select %p190, %s12, 1
      %s192 = smul.addr %s191, 6
      %s193 = smul.addr %s192, 8
      %s194 = scalar_lea.vmem %s1, %s193
      // Predicated region
      $region25: #{cnn_cifar_forward.9} parent=23 // pred_check
        %p195 = pneg %p56
      $region26: #{cnn_cifar_forward.9} parent=23 // pred_check_branch
        %197 = sbr.rel (%p195) target = $region28
      $region27: #{cnn_cifar_forward.9} parent=23 // pred_region
        _
      $region28: #{cnn_cifar_forward.9} parent=23 // pred_fallthru
        _
    $region24: #{cnn_cifar_forward.9} parent=5 // pred_fallthru
      _
    %p198 = scmp.le.s32.totalorder 2, %s7
    // Predicated region
    $region29: #{cnn_cifar_forward.9} parent=5 // pred_check
      %p199 = pneg %p198
    $region30: #{cnn_cifar_forward.9} parent=5 // pred_check_branch
      %201 = sbr.rel (%p199) target = $region32
    $region31: #{cnn_cifar_forward.9} parent=5 // pred_region
      %s202 = ssub.s32 %s7, 2
      // Predicated region
      $region33: #{cnn_cifar_forward.9} parent=31 // pred_check
        %p203 = pneg %p62
      $region34: #{cnn_cifar_forward.9} parent=31 // pred_check_branch
        %205 = sbr.rel (%p203) target = $region36
      $region35: #{cnn_cifar_forward.9} parent=31 // pred_region
        %p206 = scmp.lt.s32.totalorder %s13, 1
        %s207 = scalar_select %p206, %s13, 1
        %s208 = smul.addr %s207, 6
        %s209 = smul.addr %s208, 8
        %s210 = scalar_lea.vmem %s1, %s209
      $region36: #{cnn_cifar_forward.9} parent=31 // pred_fallthru
        _
    $region32: #{cnn_cifar_forward.9} parent=5 // pred_fallthru
      _
  $region6: #{cnn_cifar_forward.9} parent=0 // loop_footer
    %s11 = sadd.s32 1, %s7
  $region7: #{cnn_cifar_forward.9} parent=0 // loop_footer_branch
    %6 = sbr.rel target = $region3
  $region8: #{cnn_cifar_forward.9} parent=0 // loop_exit
    _

// kernel: cnn_cifar_forward.10
$region0: #{cnn_cifar_forward.10}
  #allocation0 [shape = 'u32[]', space=smem, size = 0x4, offset = 0x4, fixed_abs, tag = 'smem constant byte address 0x4 - core index']
  #allocation1 [shape = 'u32[72,128]{1,0:T(1,128)}', space=vmem, size = 0x9000, scoped, tag = 'internal scratch']
  %s0 = inlined_call_operand.vmem [shape: f32[32,1152], index: 0, kind: input, shape index: {}]
  %s1 = inlined_call_operand.vmem [shape: f32[1152,128], index: 1, kind: input, shape index: {}]
  %s2 = inlined_call_operand.vmem [shape: f32[1,128], index: 2, kind: input, shape index: {}]
  %s3 = inlined_call_operand.vmem [shape: f32[32,128], index: 3, kind: output, shape index: {}]
  %s4 = sld [smem:[#allocation0]]
  $region45: #{cnn_cifar_forward.10} parent=0
    _
  %s6 = ssub.s32 1, %s4
  %s7 = scalar_select 0, %s6, %s4
  loop: start=0, step=1, limit=4
  $region2: #{cnn_cifar_forward.10} parent=0 // loop_pre_header
    _
  $region3: #{cnn_cifar_forward.10} parent=0 // loop_header
    %s9 = sphi 0, %s13
    %p10 = scmp.ge.s32.totalorder %s9, 4
    %s19 = sphi 0, %s21
    %s22 = sphi 0, %s19
    %s23 = sphi 0, %s22
    %s39 = sphi 0, %s23
    %s43 = sphi 0, %s43
    %s45 = sphi 0, %s43
    %s46 = sphi 0, %s45
    %s60 = sphi 0, %s46
    %s64 = sphi 0, %s64
    %s66 = sphi 0, %s64
    %s67 = sphi 0, %s66
    %s81 = sphi 0, %s67
    %s87 = sphi 0, %s89
    %s90 = sphi 0, %s87
    %s91 = sphi 0, %s90
    %s107 = sphi 0, %s91
  $region4: #{cnn_cifar_forward.10} parent=0 // loop_header_branch
    %12 = sbr.rel (%p10) target = $region8
  $region5: #{cnn_cifar_forward.10} parent=0 // loop_body
    %s14 = ssub.s32 %s9, 1
    %s15 = ssub.s32 %s9, 2
    %s16 = sadd.s32 %s9, 1
    %s17 = ssub.s32 %s9, %s16
    %p18 = scmp.eq.s32.totalorder %s17, 0
    %s20 = sadd.s32 %s19, 1
    %s21 = scalar_select %p18, %s19, %s20
    %p24 = pneg %p18
    %p25 = scmp.eq.s32.totalorder %s9, 1
    %p26 = por %p24, %p25
    %p27 = scmp.ne.s32.totalorder %s19, %s22
    %p28 = scmp.eq.s32.totalorder %s9, 0
    %p29 = por %p27, %p28
    %p30 = scmp.ne.s32.totalorder %s19, %s22
    %p31 = scmp.eq.s32.totalorder %s14, 1
    %p32 = por %p30, %p31
    %p33 = scmp.ne.s32.totalorder %s22, %s23
    %p34 = scmp.eq.s32.totalorder %s14, 0
    %p35 = por %p33, %p34
    %p36 = scmp.ne.s32.totalorder %s22, %s23
    %p37 = scmp.eq.s32.totalorder %s15, 1
    %p38 = por %p36, %p37
    %p40 = scmp.ne.s32.totalorder %s23, %s39
    %p41 = scmp.eq.s32.totalorder %s15, 0
    %p42 = por %p40, %p41
    %s44 = sadd.s32 %s43, 1
    %p47 = scmp.eq.s32.totalorder %s9, 1
    %p48 = scmp.ne.s32.totalorder %s43, %s45
    %p49 = scmp.eq.s32.totalorder %s9, 0
    %p50 = por %p48, %p49
    %p51 = scmp.ne.s32.totalorder %s43, %s45
    %p52 = scmp.eq.s32.totalorder %s14, 1
    %p53 = por %p51, %p52
    %p54 = scmp.ne.s32.totalorder %s45, %s46
    %p55 = scmp.eq.s32.totalorder %s14, 0
    %p56 = por %p54, %p55
    %p57 = scmp.ne.s32.totalorder %s45, %s46
    %p58 = scmp.eq.s32.totalorder %s15, 1
    %p59 = por %p57, %p58
    %p61 = scmp.ne.s32.totalorder %s46, %s60
    %p62 = scmp.eq.s32.totalorder %s15, 0
    %p63 = por %p61, %p62
    %s65 = sadd.s32 %s64, 1
    %p68 = scmp.eq.s32.totalorder %s9, 1
    %p69 = scmp.ne.s32.totalorder %s64, %s66
    %p70 = scmp.eq.s32.totalorder %s9, 0
    %p71 = por %p69, %p70
    %p72 = scmp.ne.s32.totalorder %s64, %s66
    %p73 = scmp.eq.s32.totalorder %s14, 1
    %p74 = por %p72, %p73
    %p75 = scmp.ne.s32.totalorder %s66, %s67
    %p76 = scmp.eq.s32.totalorder %s14, 0
    %p77 = por %p75, %p76
    %p78 = scmp.ne.s32.totalorder %s66, %s67
    %p79 = scmp.eq.s32.totalorder %s15, 1
    %p80 = por %p78, %p79
    %p82 = scmp.ne.s32.totalorder %s67, %s81
    %p83 = scmp.eq.s32.totalorder %s15, 0
    %p84 = por %p82, %p83
    %s85 = ssub.s32 %s9, %s16
    %p86 = scmp.eq.s32.totalorder %s85, 0
    %s88 = sadd.s32 %s87, 1
    %s89 = scalar_select %p86, %s87, %s88
    %p92 = pneg %p86
    %p93 = scmp.eq.s32.totalorder %s9, 1
    %p94 = por %p92, %p93
    %p95 = scmp.ne.s32.totalorder %s87, %s90
    %p96 = scmp.eq.s32.totalorder %s9, 0
    %p97 = por %p95, %p96
    %p98 = scmp.ne.s32.totalorder %s87, %s90
    %p99 = scmp.eq.s32.totalorder %s14, 1
    %p100 = por %p98, %p99
    %p101 = scmp.ne.s32.totalorder %s90, %s91
    %p102 = scmp.eq.s32.totalorder %s14, 0
    %p103 = por %p101, %p102
    %p104 = scmp.ne.s32.totalorder %s90, %s91
    %p105 = scmp.eq.s32.totalorder %s15, 1
    %p106 = por %p104, %p105
    %p108 = scmp.ne.s32.totalorder %s91, %s107
    %p109 = scmp.eq.s32.totalorder %s15, 0
    %p110 = por %p108, %p109
    %p111 = scmp.le.s32.totalorder 1, %s9
    %p112 = scmp.lt.s32.totalorder %s9, 3
    %p113 = pnand %p111, %p112
    %p114 = pneg %p113
    // Predicated region
    $region9: #{cnn_cifar_forward.10} parent=5 // pred_check
      _
    $region10: #{cnn_cifar_forward.10} parent=5 // pred_check_branch
      %116 = sbr.rel (%p113) target = $region12
    $region11: #{cnn_cifar_forward.10} parent=5 // pred_region
      %s117 = ssub.s32 %s9, 1
      // Predicated region
      $region13: #{cnn_cifar_forward.10} parent=11 // pred_check
        %p118 = pneg %p56
      $region14: #{cnn_cifar_forward.10} parent=11 // pred_check_branch
        %120 = sbr.rel (%p118) target = $region16
      $region15: #{cnn_cifar_forward.10} parent=11 // pred_region
        _
      $region16: #{cnn_cifar_forward.10} parent=11 // pred_fallthru
        _
      // Predicated region
      $region17: #{cnn_cifar_forward.10} parent=11 // pred_check
        %p121 = pneg %p77
      $region18: #{cnn_cifar_forward.10} parent=11 // pred_check_branch
        %123 = sbr.rel (%p121) target = $region20
      $region19: #{cnn_cifar_forward.10} parent=11 // pred_region
        _
      $region20: #{cnn_cifar_forward.10} parent=11 // pred_fallthru
        _
    $region12: #{cnn_cifar_forward.10} parent=5 // pred_fallthru
      _
    %p124 = scmp.lt.s32.totalorder %s9, 2
    // Predicated region
    $region21: #{cnn_cifar_forward.10} parent=5 // pred_check
      %p125 = pneg %p124
    $region22: #{cnn_cifar_forward.10} parent=5 // pred_check_branch
      %127 = sbr.rel (%p125) target = $region24
    $region23: #{cnn_cifar_forward.10} parent=5 // pred_region
      // Predicated region
      $region25: #{cnn_cifar_forward.10} parent=23 // pred_check
        %p128 = pneg %p29
      $region26: #{cnn_cifar_forward.10} parent=23 // pred_check_branch
        %130 = sbr.rel (%p128) target = $region28
      $region27: #{cnn_cifar_forward.10} parent=23 // pred_region
        %s131 = smul.u32 2, %s9
        %p132 = scmp.lt.s32.totalorder %s131, 3
        %s133 = scalar_select %p132, %s131, 3
        %s134 = smul.addr %s133, 9
        %s135 = smul.addr %s134, 8
        %s136 = scalar_lea.vmem %s0, %s135
        %s137 = smul.u32 2, %s9
      $region28: #{cnn_cifar_forward.10} parent=23 // pred_fallthru
        _
    $region24: #{cnn_cifar_forward.10} parent=5 // pred_fallthru
      _
    %p138 = scmp.le.s32.totalorder 1, %s9
    %p139 = scmp.lt.s32.totalorder %s9, 3
    %p140 = pnand %p138, %p139
    %p141 = pneg %p140
    // Predicated region
    $region29: #{cnn_cifar_forward.10} parent=5 // pred_check
      _
    $region30: #{cnn_cifar_forward.10} parent=5 // pred_check_branch
      %143 = sbr.rel (%p140) target = $region32
    $region31: #{cnn_cifar_forward.10} parent=5 // pred_region
      %s144 = ssub.s32 %s9, 1
      %s145 = smul.u32 2, %s14
      %p146 = scmp.lt.s32.totalorder %s145, 3
      %s147 = scalar_select %p146, %s145, 3
      %s148 = smul.addr %s147, 9
      %s149 = smul.addr %s148, 8
      %s150 = scalar_lea.vmem %s0, %s149
      %p151 = pneg %p35
      %p152 = pneg %p32
      %p153 = pneg %p56
      %p154 = pneg %p53
      %p155 = pneg %p77
      %p156 = pneg %p74
      %p157 = pneg %p103
      %p158 = pneg %p100
      %s159 = smul.u32 2, %s14
      %p160 = scmp.lt.s32.totalorder %s159, 3
      %s161 = scalar_select %p160, %s159, 3
      %s162 = smul.addr %s161, 8
      %s163 = scalar_lea.vmem %s3, %s162
      %s164 = smul.u32 2, %s14
      %p165 = scmp.lt.s32.totalorder %s164, 3
      %s166 = scalar_select %p165, %s164, 3
      %s167 = smul.addr %s166, 9
      %s168 = smul.addr %s167, 8
      %s169 = scalar_lea.vmem %s0, %s168
      %s170 = smul.u32 2, %s14
      %s171 = smul.u32 2, %s14
      %p172 = scmp.lt.s32.totalorder %s171, 3
      %s173 = scalar_select %p172, %s171, 3
      %s174 = smul.addr %s173, 8
      %s175 = scalar_lea.vmem %s3, %s174
      %s176 = smul.u32 2, %s14
      %v177 = vld [vmem:[%s169] sm:$0xff]
      %v178 = vld [vmem:[%s169 + $0x8] sm:$0xff]
      %v179 = vld [vmem:[%s169 + $0x10] sm:$0xff]
      %v180 = vld [vmem:[%s169 + $0x18] sm:$0xff]
      %v181 = vld [vmem:[%s169 + $0x20] sm:$0xff]
      %v182 = vld [vmem:[%s169 + $0x28] sm:$0xff]
      %v183 = vld [vmem:[%s169 + $0x30] sm:$0xff]
      %v184 = vld [vmem:[%s169 + $0x38] sm:$0xff]
      %v185 = vld [vmem:[%s169 + $0x40] sm:$0xff]
      %v186 = vld [vmem:[%s169 + $0x48] sm:$0xff]
      %v187 = vld [vmem:[%s169 + $0x50] sm:$0xff]
      %v188 = vld [vmem:[%s169 + $0x58] sm:$0xff]
      %v189 = vld [vmem:[%s169 + $0x60] sm:$0xff]
      %v190 = vld [vmem:[%s169 + $0x68] sm:$0xff]
      %v191 = vld [vmem:[%s169 + $0x70] sm:$0xff]
      %v192 = vld [vmem:[%s169 + $0x78] sm:$0xff]
      %v193 = vld [vmem:[%s169 + $0x80] sm:$0xff]
      %v194 = vld [vmem:[%s169 + $0x88] sm:$0xff]
      %v195 = vld [vmem:[%s1] sm:$0xff]
      %v196 = vld [vmem:[%s1 + $0x8] sm:$0xff]
      %v197 = vld [vmem:[%s1 + $0x10] sm:$0xff]
      %v198 = vld [vmem:[%s1 + $0x18] sm:$0xff]
      %v199 = vld [vmem:[%s1 + $0x20] sm:$0xff]
      %v200 = vld [vmem:[%s1 + $0x28] sm:$0xff]
      %v201 = vld [vmem:[%s1 + $0x30] sm:$0xff]
      %v202 = vld [vmem:[%s1 + $0x38] sm:$0xff]
      %v203 = vld [vmem:[%s1 + $0x40] sm:$0xff]
      %v204 = vld [vmem:[%s1 + $0x48] sm:$0xff]
      %v205 = vld [vmem:[%s1 + $0x50] sm:$0xff]
      %v206 = vld [vmem:[%s1 + $0x58] sm:$0xff]
      %v207 = vld [vmem:[%s1 + $0x60] sm:$0xff]
      %v208 = vld [vmem:[%s1 + $0x68] sm:$0xff]
      %v209 = vld [vmem:[%s1 + $0x70] sm:$0xff]
      %v210 = vld [vmem:[%s1 + $0x78] sm:$0xff]
      %v211 = vld [vmem:[%s1 + $0x80] sm:$0xff]
      %v212 = vld [vmem:[%s1 + $0x88] sm:$0xff]
      %v213 = vld [vmem:[%s1 + $0x90] sm:$0xff]
      %v214 = vld [vmem:[%s1 + $0x98] sm:$0xff]
      %v215 = vld [vmem:[%s1 + $0xa0] sm:$0xff]
      %v216 = vld [vmem:[%s1 + $0xa8] sm:$0xff]
      %v217 = vld [vmem:[%s1 + $0xb0] sm:$0xff]
      %v218 = vld [vmem:[%s1 + $0xb8] sm:$0xff]
      %v219 = vld [vmem:[%s1 + $0xc0] sm:$0xff]
      %v220 = vld [vmem:[%s1 + $0xc8] sm:$0xff]
      %v221 = vld [vmem:[%s1 + $0xd0] sm:$0xff]
      %v222 = vld [vmem:[%s1 + $0xd8] sm:$0xff]
      %v223 = vld [vmem:[%s1 + $0xe0] sm:$0xff]
      %v224 = vld [vmem:[%s1 + $0xe8] sm:$0xff]
      %v225 = vld [vmem:[%s1 + $0xf0] sm:$0xff]
      %v226 = vld [vmem:[%s1 + $0xf8] sm:$0xff]
      %v227 = vld [vmem:[%s1 + $0x100] sm:$0xff]
      %v228 = vld [vmem:[%s1 + $0x108] sm:$0xff]
      %v229 = vld [vmem:[%s1 + $0x110] sm:$0xff]
      %v230 = vld [vmem:[%s1 + $0x118] sm:$0xff]
      %v231 = vld [vmem:[%s1 + $0x120] sm:$0xff]
      %v232 = vld [vmem:[%s1 + $0x128] sm:$0xff]
      %v233 = vld [vmem:[%s1 + $0x130] sm:$0xff]
      %v234 = vld [vmem:[%s1 + $0x138] sm:$0xff]
      %v235 = vld [vmem:[%s1 + $0x140] sm:$0xff]
      %v236 = vld [vmem:[%s1 + $0x148] sm:$0xff]
      %v237 = vld [vmem:[%s1 + $0x150] sm:$0xff]
      %v238 = vld [vmem:[%s1 + $0x158] sm:$0xff]
      %v239 = vld [vmem:[%s1 + $0x160] sm:$0xff]
      %v240 = vld [vmem:[%s1 + $0x168] sm:$0xff]
      %v241 = vld [vmem:[%s1 + $0x170] sm:$0xff]
      %v242 = vld [vmem:[%s1 + $0x178] sm:$0xff]
      %v243 = vld [vmem:[%s1 + $0x180] sm:$0xff]
      %v244 = vld [vmem:[%s1 + $0x188] sm:$0xff]
      %v245 = vld [vmem:[%s1 + $0x190] sm:$0xff]
      %v246 = vld [vmem:[%s1 + $0x198] sm:$0xff]
      %v247 = vld [vmem:[%s1 + $0x1a0] sm:$0xff]
      %v248 = vld [vmem:[%s1 + $0x1a8] sm:$0xff]
      %v249 = vld [vmem:[%s1 + $0x1b0] sm:$0xff]
      %v250 = vld [vmem:[%s1 + $0x1b8] sm:$0xff]
      %v251 = vld [vmem:[%s1 + $0x1c0] sm:$0xff]
      %v252 = vld [vmem:[%s1 + $0x1c8] sm:$0xff]
      %v253 = vld [vmem:[%s1 + $0x1d0] sm:$0xff]
      %v254 = vld [vmem:[%s1 + $0x1d8] sm:$0xff]
      %v255 = vld [vmem:[%s1 + $0x1e0] sm:$0xff]
      %v256 = vld [vmem:[%s1 + $0x1e8] sm:$0xff]
      %v257 = vld [vmem:[%s1 + $0x1f0] sm:$0xff]
      %v258 = vld [vmem:[%s1 + $0x1f8] sm:$0xff]
      %v259 = vld [vmem:[%s1 + $0x200] sm:$0xff]
      %v260 = vld [vmem:[%s1 + $0x208] sm:$0xff]
      %v261 = vld [vmem:[%s1 + $0x210] sm:$0xff]
      %v262 = vld [vmem:[%s1 + $0x218] sm:$0xff]
      %v263 = vld [vmem:[%s1 + $0x220] sm:$0xff]
      %v264 = vld [vmem:[%s1 + $0x228] sm:$0xff]
      %v265 = vld [vmem:[%s1 + $0x230] sm:$0xff]
      %v266 = vld [vmem:[%s1 + $0x238] sm:$0xff]
      %v267 = vld [vmem:[%s1 + $0x240] sm:$0xff]
      %v268 = vld [vmem:[%s1 + $0x248] sm:$0xff]
      %v269 = vld [vmem:[%s1 + $0x250] sm:$0xff]
      %v270 = vld [vmem:[%s1 + $0x258] sm:$0xff]
      %v271 = vld [vmem:[%s1 + $0x260] sm:$0xff]
      %v272 = vld [vmem:[%s1 + $0x268] sm:$0xff]
      %v273 = vld [vmem:[%s1 + $0x270] sm:$0xff]
      %v274 = vld [vmem:[%s1 + $0x278] sm:$0xff]
      %v275 = vld [vmem:[%s1 + $0x280] sm:$0xff]
      %v276 = vld [vmem:[%s1 + $0x288] sm:$0xff]
      %v277 = vld [vmem:[%s1 + $0x290] sm:$0xff]
      %v278 = vld [vmem:[%s1 + $0x298] sm:$0xff]
      %v279 = vld [vmem:[%s1 + $0x2a0] sm:$0xff]
      %v280 = vld [vmem:[%s1 + $0x2a8] sm:$0xff]
      %v281 = vld [vmem:[%s1 + $0x2b0] sm:$0xff]
      %v282 = vld [vmem:[%s1 + $0x2b8] sm:$0xff]
      %v283 = vld [vmem:[%s1 + $0x2c0] sm:$0xff]
      %v284 = vld [vmem:[%s1 + $0x2c8] sm:$0xff]
      %v285 = vld [vmem:[%s1 + $0x2d0] sm:$0xff]
      %v286 = vld [vmem:[%s1 + $0x2d8] sm:$0xff]
      %v287 = vld [vmem:[%s1 + $0x2e0] sm:$0xff]
      %v288 = vld [vmem:[%s1 + $0x2e8] sm:$0xff]
      %v289 = vld [vmem:[%s1 + $0x2f0] sm:$0xff]
      %v290 = vld [vmem:[%s1 + $0x2f8] sm:$0xff]
      %v291 = vld [vmem:[%s1 + $0x300] sm:$0xff]
      %v292 = vld [vmem:[%s1 + $0x308] sm:$0xff]
      %v293 = vld [vmem:[%s1 + $0x310] sm:$0xff]
      %v294 = vld [vmem:[%s1 + $0x318] sm:$0xff]
      %v295 = vld [vmem:[%s1 + $0x320] sm:$0xff]
      %v296 = vld [vmem:[%s1 + $0x328] sm:$0xff]
      %v297 = vld [vmem:[%s1 + $0x330] sm:$0xff]
      %v298 = vld [vmem:[%s1 + $0x338] sm:$0xff]
      %v299 = vld [vmem:[%s1 + $0x340] sm:$0xff]
      %v300 = vld [vmem:[%s1 + $0x348] sm:$0xff]
      %v301 = vld [vmem:[%s1 + $0x350] sm:$0xff]
      %v302 = vld [vmem:[%s1 + $0x358] sm:$0xff]
      %v303 = vld [vmem:[%s1 + $0x360] sm:$0xff]
      %v304 = vld [vmem:[%s1 + $0x368] sm:$0xff]
      %v305 = vld [vmem:[%s1 + $0x370] sm:$0xff]
      %v306 = vld [vmem:[%s1 + $0x378] sm:$0xff]
      %v307 = vld [vmem:[%s1 + $0x380] sm:$0xff]
      %v308 = vld [vmem:[%s1 + $0x388] sm:$0xff]
      %v309 = vld [vmem:[%s1 + $0x390] sm:$0xff]
      %v310 = vld [vmem:[%s1 + $0x398] sm:$0xff]
      %v311 = vld [vmem:[%s1 + $0x3a0] sm:$0xff]
      %v312 = vld [vmem:[%s1 + $0x3a8] sm:$0xff]
      %v313 = vld [vmem:[%s1 + $0x3b0] sm:$0xff]
      %v314 = vld [vmem:[%s1 + $0x3b8] sm:$0xff]
      %v315 = vld [vmem:[%s1 + $0x3c0] sm:$0xff]
      %v316 = vld [vmem:[%s1 + $0x3c8] sm:$0xff]
      %v317 = vld [vmem:[%s1 + $0x3d0] sm:$0xff]
      %v318 = vld [vmem:[%s1 + $0x3d8] sm:$0xff]
      %v319 = vld [vmem:[%s1 + $0x3e0] sm:$0xff]
      %v320 = vld [vmem:[%s1 + $0x3e8] sm:$0xff]
      %v321 = vld [vmem:[%s1 + $0x3f0] sm:$0xff]
      %v322 = vld [vmem:[%s1 + $0x3f8] sm:$0xff]
      %v323 = vld [vmem:[%s1 + $0x400] sm:$0xff]
      %v324 = vld [vmem:[%s1 + $0x408] sm:$0xff]
      %v325 = vld [vmem:[%s1 + $0x410] sm:$0xff]
      %v326 = vld [vmem:[%s1 + $0x418] sm:$0xff]
      %v327 = vld [vmem:[%s1 + $0x420] sm:$0xff]
      %v328 = vld [vmem:[%s1 + $0x428] sm:$0xff]
      %v329 = vld [vmem:[%s1 + $0x430] sm:$0xff]
      %v330 = vld [vmem:[%s1 + $0x438] sm:$0xff]
      %v331 = vld [vmem:[%s1 + $0x440] sm:$0xff]
      %v332 = vld [vmem:[%s1 + $0x448] sm:$0xff]
      %v333 = vld [vmem:[%s1 + $0x450] sm:$0xff]
      %v334 = vld [vmem:[%s1 + $0x458] sm:$0xff]
      %v335 = vld [vmem:[%s1 + $0x460] sm:$0xff]
      %v336 = vld [vmem:[%s1 + $0x468] sm:$0xff]
      %v337 = vld [vmem:[%s1 + $0x470] sm:$0xff]
      %v338 = vld [vmem:[%s1 + $0x478] sm:$0xff]
      %v339 = vld [vmem:[%s2] sm:$0x1]
      %v341 = vperm.slane %v339, 0
      %343 = vmatpush.msra.mxu0 %v210
      %344 = vmatpush.msra.mxu0 %v209
      %345 = vmatpush.msra.mxu0 %v208
      %346 = vmatpush.msra.mxu0 %v207
      %347 = vmatpush.msra.mxu0 %v206
      %348 = vmatpush.msra.mxu0 %v205
      %349 = vmatpush.msra.mxu0 %v204
      %350 = vmatpush.msra.mxu0 %v203
      %351 = vmatpush.msra.mxu0 %v202
      %352 = vmatpush.msra.mxu0 %v201
      %353 = vmatpush.msra.mxu0 %v200
      %354 = vmatpush.msra.mxu0 %v199
      %355 = vmatpush.msra.mxu0 %v198
      %356 = vmatpush.msra.mxu0 %v197
      %357 = vmatpush.msra.mxu0 %v196
      %358 = vmatpush.msra.mxu0 %v195
      %359 = vmatmul.f32.gmra.mxu0 %v177
      %v360 = vpop.f32.mrf.mxu0
      %v361 = vadd.f32 %v341, %v360
      %362 = vmatmul.f32.gmra.mxu0 %v186
      %v363 = vpop.f32.mrf.mxu0
      %v364 = vadd.f32 %v341, %v363
      %365 = vdwg.mxu0
      %366 = vmatpush.msra.mxu0 %v226
      %367 = vmatpush.msra.mxu0 %v225
      %368 = vmatpush.msra.mxu0 %v224
      %369 = vmatpush.msra.mxu0 %v223
      %370 = vmatpush.msra.mxu0 %v222
      %371 = vmatpush.msra.mxu0 %v221
      %372 = vmatpush.msra.mxu0 %v220
      %373 = vmatpush.msra.mxu0 %v219
      %374 = vmatpush.msra.mxu0 %v218
      %375 = vmatpush.msra.mxu0 %v217
      %376 = vmatpush.msra.mxu0 %v216
      %377 = vmatpush.msra.mxu0 %v215
      %378 = vmatpush.msra.mxu0 %v214
      %379 = vmatpush.msra.mxu0 %v213
      %380 = vmatpush.msra.mxu0 %v212
      %381 = vmatpush.msra.mxu0 %v211
      %382 = vmatmul.f32.gmra.mxu0 %v178
      %v383 = vpop.f32.mrf.mxu0
      %v384 = vadd.f32 %v361, %v383
      %385 = vmatmul.f32.gmra.mxu0 %v187
      %v386 = vpop.f32.mrf.mxu0
      %v387 = vadd.f32 %v364, %v386
      %388 = vdwg.mxu0
      %389 = vmatpush.msra.mxu0 %v242
      %390 = vmatpush.msra.mxu0 %v241
      %391 = vmatpush.msra.mxu0 %v240
      %392 = vmatpush.msra.mxu0 %v239
      %393 = vmatpush.msra.mxu0 %v238
      %394 = vmatpush.msra.mxu0 %v237
      %395 = vmatpush.msra.mxu0 %v236
      %396 = vmatpush.msra.mxu0 %v235
      %397 = vmatpush.msra.mxu0 %v234
      %398 = vmatpush.msra.mxu0 %v233
      %399 = vmatpush.msra.mxu0 %v232
      %400 = vmatpush.msra.mxu0 %v231
      %401 = vmatpush.msra.mxu0 %v230
      %402 = vmatpush.msra.mxu0 %v229
      %403 = vmatpush.msra.mxu0 %v228
      %404 = vmatpush.msra.mxu0 %v227
      %405 = vmatmul.f32.gmra.mxu0 %v179
      %v406 = vpop.f32.mrf.mxu0
      %v407 = vadd.f32 %v384, %v406
      %408 = vmatmul.f32.gmra.mxu0 %v188
      %v409 = vpop.f32.mrf.mxu0
      %v410 = vadd.f32 %v387, %v409
      %411 = vdwg.mxu0
      %412 = vmatpush.msra.mxu0 %v258
      %413 = vmatpush.msra.mxu0 %v257
      %414 = vmatpush.msra.mxu0 %v256
      %415 = vmatpush.msra.mxu0 %v255
      %416 = vmatpush.msra.mxu0 %v254
      %417 = vmatpush.msra.mxu0 %v253
      %418 = vmatpush.msra.mxu0 %v252
      %419 = vmatpush.msra.mxu0 %v251
      %420 = vmatpush.msra.mxu0 %v250
      %421 = vmatpush.msra.mxu0 %v249
      %422 = vmatpush.msra.mxu0 %v248
      %423 = vmatpush.msra.mxu0 %v247
      %424 = vmatpush.msra.mxu0 %v246
      %425 = vmatpush.msra.mxu0 %v245
      %426 = vmatpush.msra.mxu0 %v244
      %427 = vmatpush.msra.mxu0 %v243
      %428 = vmatmul.f32.gmra.mxu0 %v180
      %v429 = vpop.f32.mrf.mxu0
      %v430 = vadd.f32 %v407, %v429
      %431 = vmatmul.f32.gmra.mxu0 %v189
      %v432 = vpop.f32.mrf.mxu0
      %v433 = vadd.f32 %v410, %v432
      %434 = vdwg.mxu0
      %435 = vmatpush.msra.mxu0 %v274
      %436 = vmatpush.msra.mxu0 %v273
      %437 = vmatpush.msra.mxu0 %v272
      %438 = vmatpush.msra.mxu0 %v271
      %439 = vmatpush.msra.mxu0 %v270
      %440 = vmatpush.msra.mxu0 %v269
      %441 = vmatpush.msra.mxu0 %v268
      %442 = vmatpush.msra.mxu0 %v267
      %443 = vmatpush.msra.mxu0 %v266
      %444 = vmatpush.msra.mxu0 %v265
      %445 = vmatpush.msra.mxu0 %v264
      %446 = vmatpush.msra.mxu0 %v263
      %447 = vmatpush.msra.mxu0 %v262
      %448 = vmatpush.msra.mxu0 %v261
      %449 = vmatpush.msra.mxu0 %v260
      %450 = vmatpush.msra.mxu0 %v259
      %451 = vmatmul.f32.gmra.mxu0 %v181
      %v452 = vpop.f32.mrf.mxu0
      %v453 = vadd.f32 %v430, %v452
      %454 = vmatmul.f32.gmra.mxu0 %v190
      %v455 = vpop.f32.mrf.mxu0
      %v456 = vadd.f32 %v433, %v455
      %457 = vdwg.mxu0
      %458 = vmatpush.msra.mxu0 %v290
      %459 = vmatpush.msra.mxu0 %v289
      %460 = vmatpush.msra.mxu0 %v288
      %461 = vmatpush.msra.mxu0 %v287
      %462 = vmatpush.msra.mxu0 %v286
      %463 = vmatpush.msra.mxu0 %v285
      %464 = vmatpush.msra.mxu0 %v284
      %465 = vmatpush.msra.mxu0 %v283
      %466 = vmatpush.msra.mxu0 %v282
      %467 = vmatpush.msra.mxu0 %v281
      %468 = vmatpush.msra.mxu0 %v280
      %469 = vmatpush.msra.mxu0 %v279
      %470 = vmatpush.msra.mxu0 %v278
      %471 = vmatpush.msra.mxu0 %v277
      %472 = vmatpush.msra.mxu0 %v276
      %473 = vmatpush.msra.mxu0 %v275
      %474 = vmatmul.f32.gmra.mxu0 %v182
      %v475 = vpop.f32.mrf.mxu0
      %v476 = vadd.f32 %v453, %v475
      %477 = vmatmul.f32.gmra.mxu0 %v191
      %v478 = vpop.f32.mrf.mxu0
      %v479 = vadd.f32 %v456, %v478
      %480 = vdwg.mxu0
      %481 = vmatpush.msra.mxu0 %v306
      %482 = vmatpush.msra.mxu0 %v305
      %483 = vmatpush.msra.mxu0 %v304
      %484 = vmatpush.msra.mxu0 %v303
      %485 = vmatpush.msra.mxu0 %v302
      %486 = vmatpush.msra.mxu0 %v301
      %487 = vmatpush.msra.mxu0 %v300
      %488 = vmatpush.msra.mxu0 %v299
      %489 = vmatpush.msra.mxu0 %v298
      %490 = vmatpush.msra.mxu0 %v297
      %491 = vmatpush.msra.mxu0 %v296
      %492 = vmatpush.msra.mxu0 %v295
      %493 = vmatpush.msra.mxu0 %v294
      %494 = vmatpush.msra.mxu0 %v293
      %495 = vmatpush.msra.mxu0 %v292
      %496 = vmatpush.msra.mxu0 %v291
      %497 = vmatmul.f32.gmra.mxu0 %v183
      %v498 = vpop.f32.mrf.mxu0
      %v499 = vadd.f32 %v476, %v498
      %500 = vmatmul.f32.gmra.mxu0 %v192
      %v501 = vpop.f32.mrf.mxu0
      %v502 = vadd.f32 %v479, %v501
      %503 = vdwg.mxu0
      %504 = vmatpush.msra.mxu0 %v322
      %505 = vmatpush.msra.mxu0 %v321
      %506 = vmatpush.msra.mxu0 %v320
      %507 = vmatpush.msra.mxu0 %v319
      %508 = vmatpush.msra.mxu0 %v318
      %509 = vmatpush.msra.mxu0 %v317
      %510 = vmatpush.msra.mxu0 %v316
      %511 = vmatpush.msra.mxu0 %v315
      %512 = vmatpush.msra.mxu0 %v314
      %513 = vmatpush.msra.mxu0 %v313
      %514 = vmatpush.msra.mxu0 %v312
      %515 = vmatpush.msra.mxu0 %v311
      %516 = vmatpush.msra.mxu0 %v310
      %517 = vmatpush.msra.mxu0 %v309
      %518 = vmatpush.msra.mxu0 %v308
      %519 = vmatpush.msra.mxu0 %v307
      %520 = vmatmul.f32.gmra.mxu0 %v184
      %v521 = vpop.f32.mrf.mxu0
      %v522 = vadd.f32 %v499, %v521
      %523 = vmatmul.f32.gmra.mxu0 %v193
      %v524 = vpop.f32.mrf.mxu0
      %v525 = vadd.f32 %v502, %v524
      %526 = vdwg.mxu0
      %527 = vmatpush.msra.mxu0 %v338
      %528 = vmatpush.msra.mxu0 %v337
      %529 = vmatpush.msra.mxu0 %v336
      %530 = vmatpush.msra.mxu0 %v335
      %531 = vmatpush.msra.mxu0 %v334
      %532 = vmatpush.msra.mxu0 %v333
      %533 = vmatpush.msra.mxu0 %v332
      %534 = vmatpush.msra.mxu0 %v331
      %535 = vmatpush.msra.mxu0 %v330
      %536 = vmatpush.msra.mxu0 %v329
      %537 = vmatpush.msra.mxu0 %v328
      %538 = vmatpush.msra.mxu0 %v327
      %539 = vmatpush.msra.mxu0 %v326
      %540 = vmatpush.msra.mxu0 %v325
      %541 = vmatpush.msra.mxu0 %v324
      %542 = vmatpush.msra.mxu0 %v323
      %543 = vmatmul.f32.gmra.mxu0 %v185
      %v544 = vpop.f32.mrf.mxu0
      %v545 = vadd.f32 %v522, %v544
      %546 = vmatmul.f32.gmra.mxu0 %v194
      %v547 = vpop.f32.mrf.mxu0
      %v548 = vadd.f32 %v525, %v547
      %549 = vdwg.mxu0
      %v550 = vmax.f32 %v545, 0.0
      %v551 = vmax.f32 %v548, 0.0
      %552 = vst [vmem:[%s175] sm:$0xff] %v550
      %553 = vst [vmem:[%s175 + $0x8] sm:$0xff] %v551
      %s554 = smul.u32 2, %s14
      %p555 = scmp.lt.s32.totalorder %s554, 3
      %s556 = scalar_select %p555, %s554, 3
      %s557 = smul.addr %s556, 8
      %s558 = scalar_lea.vmem %s3, %s557
      // Predicated region
      $region33: #{cnn_cifar_forward.10} parent=31 // pred_check
        %p559 = pneg %p100
      $region34: #{cnn_cifar_forward.10} parent=31 // pred_check_branch
        %561 = sbr.rel (%p559) target = $region36
      $region35: #{cnn_cifar_forward.10} parent=31 // pred_region
        %s562 = smul.u32 2, %s14
      $region36: #{cnn_cifar_forward.10} parent=31 // pred_fallthru
        _
    $region32: #{cnn_cifar_forward.10} parent=5 // pred_fallthru
      _
    %p563 = scmp.le.s32.totalorder 2, %s9
    // Predicated region
    $region37: #{cnn_cifar_forward.10} parent=5 // pred_check
      %p564 = pneg %p563
    $region38: #{cnn_cifar_forward.10} parent=5 // pred_check_branch
      %566 = sbr.rel (%p564) target = $region40
    $region39: #{cnn_cifar_forward.10} parent=5 // pred_region
      %s567 = ssub.s32 %s9, 2
      // Predicated region
      $region41: #{cnn_cifar_forward.10} parent=39 // pred_check
        %p568 = pneg %p106
      $region42: #{cnn_cifar_forward.10} parent=39 // pred_check_branch
        %570 = sbr.rel (%p568) target = $region44
      $region43: #{cnn_cifar_forward.10} parent=39 // pred_region
        %s571 = smul.u32 2, %s15
        %p572 = scmp.lt.s32.totalorder %s571, 3
        %s573 = scalar_select %p572, %s571, 3
        %s574 = smul.addr %s573, 8
        %s575 = scalar_lea.vmem %s3, %s574
      $region44: #{cnn_cifar_forward.10} parent=39 // pred_fallthru
        _
    $region40: #{cnn_cifar_forward.10} parent=5 // pred_fallthru
      _
  $region6: #{cnn_cifar_forward.10} parent=0 // loop_footer
    %s13 = sadd.s32 1, %s9
  $region7: #{cnn_cifar_forward.10} parent=0 // loop_footer_branch
    %8 = sbr.rel target = $region3
  $region8: #{cnn_cifar_forward.10} parent=0 // loop_exit
    _

// kernel: cnn_cifar_forward.11
$region0: #{cnn_cifar_forward.11}
  #allocation0 [shape = 'u32[]', space=smem, size = 0x4, offset = 0x4, fixed_abs, tag = 'smem constant byte address 0x4 - core index']
  #allocation1 [shape = 'u32[72,128]{1,0:T(1,128)}', space=vmem, size = 0x9000, scoped, tag = 'internal scratch']
  %s0 = inlined_call_operand.vmem [shape: f32[8,2048], index: 0, kind: input, shape index: {}]
  %s1 = inlined_call_operand.vmem [shape: f32[2048,128], index: 1, kind: input, shape index: {}]
  %s2 = inlined_call_operand.vmem [shape: f32[1,128], index: 2, kind: input, shape index: {}]
  %s3 = inlined_call_operand.vmem [shape: f32[8,128], index: 3, kind: output, shape index: {}]
  %s4 = sld [smem:[#allocation0]]
  $region22: #{cnn_cifar_forward.11} parent=0
    _
  %s6 = ssub.s32 1, %s4
  %s7 = scalar_select 0, %s6, %s4
  // Predicated region
  $region2: #{cnn_cifar_forward.11} parent=0 // pred_check
    _
  $region3: #{cnn_cifar_forward.11} parent=0 // pred_check_branch
    %9 = sbr.rel (0) target = $region5
  $region4: #{cnn_cifar_forward.11} parent=0 // pred_region
    _
  $region5: #{cnn_cifar_forward.11} parent=0 // pred_fallthru
    _
  // Predicated region
  $region6: #{cnn_cifar_forward.11} parent=0 // pred_check
    _
  $region7: #{cnn_cifar_forward.11} parent=0 // pred_check_branch
    %11 = sbr.rel (0) target = $region9
  $region8: #{cnn_cifar_forward.11} parent=0 // pred_region
    _
  $region9: #{cnn_cifar_forward.11} parent=0 // pred_fallthru
    _
  // Predicated region
  $region10: #{cnn_cifar_forward.11} parent=0 // pred_check
    _
  $region11: #{cnn_cifar_forward.11} parent=0 // pred_check_branch
    %13 = sbr.rel (0) target = $region13
  $region12: #{cnn_cifar_forward.11} parent=0 // pred_region
    _
  $region13: #{cnn_cifar_forward.11} parent=0 // pred_fallthru
    _
  %v14 = vld [vmem:[%s0] sm:$0xff]
  %v15 = vld [vmem:[%s0 + $0x8] sm:$0xff]
  %v16 = vld [vmem:[%s0 + $0x10] sm:$0xff]
  %v17 = vld [vmem:[%s0 + $0x18] sm:$0xff]
  %v18 = vld [vmem:[%s0 + $0x20] sm:$0xff]
  %v19 = vld [vmem:[%s0 + $0x28] sm:$0xff]
  %v20 = vld [vmem:[%s0 + $0x30] sm:$0xff]
  %v21 = vld [vmem:[%s0 + $0x38] sm:$0xff]
  %v22 = vld [vmem:[%s0 + $0x40] sm:$0xff]
  %v23 = vld [vmem:[%s0 + $0x48] sm:$0xff]
  %v24 = vld [vmem:[%s0 + $0x50] sm:$0xff]
  %v25 = vld [vmem:[%s0 + $0x58] sm:$0xff]
  %v26 = vld [vmem:[%s0 + $0x60] sm:$0xff]
  %v27 = vld [vmem:[%s0 + $0x68] sm:$0xff]
  %v28 = vld [vmem:[%s0 + $0x70] sm:$0xff]
  %v29 = vld [vmem:[%s0 + $0x78] sm:$0xff]
  %v30 = vld [vmem:[%s1] sm:$0xff]
  %v31 = vld [vmem:[%s1 + $0x8] sm:$0xff]
  %v32 = vld [vmem:[%s1 + $0x10] sm:$0xff]
  %v33 = vld [vmem:[%s1 + $0x18] sm:$0xff]
  %v34 = vld [vmem:[%s1 + $0x20] sm:$0xff]
  %v35 = vld [vmem:[%s1 + $0x28] sm:$0xff]
  %v36 = vld [vmem:[%s1 + $0x30] sm:$0xff]
  %v37 = vld [vmem:[%s1 + $0x38] sm:$0xff]
  %v38 = vld [vmem:[%s1 + $0x40] sm:$0xff]
  %v39 = vld [vmem:[%s1 + $0x48] sm:$0xff]
  %v40 = vld [vmem:[%s1 + $0x50] sm:$0xff]
  %v41 = vld [vmem:[%s1 + $0x58] sm:$0xff]
  %v42 = vld [vmem:[%s1 + $0x60] sm:$0xff]
  %v43 = vld [vmem:[%s1 + $0x68] sm:$0xff]
  %v44 = vld [vmem:[%s1 + $0x70] sm:$0xff]
  %v45 = vld [vmem:[%s1 + $0x78] sm:$0xff]
  %v46 = vld [vmem:[%s1 + $0x80] sm:$0xff]
  %v47 = vld [vmem:[%s1 + $0x88] sm:$0xff]
  %v48 = vld [vmem:[%s1 + $0x90] sm:$0xff]
  %v49 = vld [vmem:[%s1 + $0x98] sm:$0xff]
  %v50 = vld [vmem:[%s1 + $0xa0] sm:$0xff]
  %v51 = vld [vmem:[%s1 + $0xa8] sm:$0xff]
  %v52 = vld [vmem:[%s1 + $0xb0] sm:$0xff]
  %v53 = vld [vmem:[%s1 + $0xb8] sm:$0xff]
  %v54 = vld [vmem:[%s1 + $0xc0] sm:$0xff]
  %v55 = vld [vmem:[%s1 + $0xc8] sm:$0xff]
  %v56 = vld [vmem:[%s1 + $0xd0] sm:$0xff]
  %v57 = vld [vmem:[%s1 + $0xd8] sm:$0xff]
  %v58 = vld [vmem:[%s1 + $0xe0] sm:$0xff]
  %v59 = vld [vmem:[%s1 + $0xe8] sm:$0xff]
  %v60 = vld [vmem:[%s1 + $0xf0] sm:$0xff]
  %v61 = vld [vmem:[%s1 + $0xf8] sm:$0xff]
  %v62 = vld [vmem:[%s1 + $0x100] sm:$0xff]
  %v63 = vld [vmem:[%s1 + $0x108] sm:$0xff]
  %v64 = vld [vmem:[%s1 + $0x110] sm:$0xff]
  %v65 = vld [vmem:[%s1 + $0x118] sm:$0xff]
  %v66 = vld [vmem:[%s1 + $0x120] sm:$0xff]
  %v67 = vld [vmem:[%s1 + $0x128] sm:$0xff]
  %v68 = vld [vmem:[%s1 + $0x130] sm:$0xff]
  %v69 = vld [vmem:[%s1 + $0x138] sm:$0xff]
  %v70 = vld [vmem:[%s1 + $0x140] sm:$0xff]
  %v71 = vld [vmem:[%s1 + $0x148] sm:$0xff]
  %v72 = vld [vmem:[%s1 + $0x150] sm:$0xff]
  %v73 = vld [vmem:[%s1 + $0x158] sm:$0xff]
  %v74 = vld [vmem:[%s1 + $0x160] sm:$0xff]
  %v75 = vld [vmem:[%s1 + $0x168] sm:$0xff]
  %v76 = vld [vmem:[%s1 + $0x170] sm:$0xff]
  %v77 = vld [vmem:[%s1 + $0x178] sm:$0xff]
  %v78 = vld [vmem:[%s1 + $0x180] sm:$0xff]
  %v79 = vld [vmem:[%s1 + $0x188] sm:$0xff]
  %v80 = vld [vmem:[%s1 + $0x190] sm:$0xff]
  %v81 = vld [vmem:[%s1 + $0x198] sm:$0xff]
  %v82 = vld [vmem:[%s1 + $0x1a0] sm:$0xff]
  %v83 = vld [vmem:[%s1 + $0x1a8] sm:$0xff]
  %v84 = vld [vmem:[%s1 + $0x1b0] sm:$0xff]
  %v85 = vld [vmem:[%s1 + $0x1b8] sm:$0xff]
  %v86 = vld [vmem:[%s1 + $0x1c0] sm:$0xff]
  %v87 = vld [vmem:[%s1 + $0x1c8] sm:$0xff]
  %v88 = vld [vmem:[%s1 + $0x1d0] sm:$0xff]
  %v89 = vld [vmem:[%s1 + $0x1d8] sm:$0xff]
  %v90 = vld [vmem:[%s1 + $0x1e0] sm:$0xff]
  %v91 = vld [vmem:[%s1 + $0x1e8] sm:$0xff]
  %v92 = vld [vmem:[%s1 + $0x1f0] sm:$0xff]
  %v93 = vld [vmem:[%s1 + $0x1f8] sm:$0xff]
  %v94 = vld [vmem:[%s1 + $0x200] sm:$0xff]
  %v95 = vld [vmem:[%s1 + $0x208] sm:$0xff]
  %v96 = vld [vmem:[%s1 + $0x210] sm:$0xff]
  %v97 = vld [vmem:[%s1 + $0x218] sm:$0xff]
  %v98 = vld [vmem:[%s1 + $0x220] sm:$0xff]
  %v99 = vld [vmem:[%s1 + $0x228] sm:$0xff]
  %v100 = vld [vmem:[%s1 + $0x230] sm:$0xff]
  %v101 = vld [vmem:[%s1 + $0x238] sm:$0xff]
  %v102 = vld [vmem:[%s1 + $0x240] sm:$0xff]
  %v103 = vld [vmem:[%s1 + $0x248] sm:$0xff]
  %v104 = vld [vmem:[%s1 + $0x250] sm:$0xff]
  %v105 = vld [vmem:[%s1 + $0x258] sm:$0xff]
  %v106 = vld [vmem:[%s1 + $0x260] sm:$0xff]
  %v107 = vld [vmem:[%s1 + $0x268] sm:$0xff]
  %v108 = vld [vmem:[%s1 + $0x270] sm:$0xff]
  %v109 = vld [vmem:[%s1 + $0x278] sm:$0xff]
  %v110 = vld [vmem:[%s1 + $0x280] sm:$0xff]
  %v111 = vld [vmem:[%s1 + $0x288] sm:$0xff]
  %v112 = vld [vmem:[%s1 + $0x290] sm:$0xff]
  %v113 = vld [vmem:[%s1 + $0x298] sm:$0xff]
  %v114 = vld [vmem:[%s1 + $0x2a0] sm:$0xff]
  %v115 = vld [vmem:[%s1 + $0x2a8] sm:$0xff]
  %v116 = vld [vmem:[%s1 + $0x2b0] sm:$0xff]
  %v117 = vld [vmem:[%s1 + $0x2b8] sm:$0xff]
  %v118 = vld [vmem:[%s1 + $0x2c0] sm:$0xff]
  %v119 = vld [vmem:[%s1 + $0x2c8] sm:$0xff]
  %v120 = vld [vmem:[%s1 + $0x2d0] sm:$0xff]
  %v121 = vld [vmem:[%s1 + $0x2d8] sm:$0xff]
  %v122 = vld [vmem:[%s1 + $0x2e0] sm:$0xff]
  %v123 = vld [vmem:[%s1 + $0x2e8] sm:$0xff]
  %v124 = vld [vmem:[%s1 + $0x2f0] sm:$0xff]
  %v125 = vld [vmem:[%s1 + $0x2f8] sm:$0xff]
  %v126 = vld [vmem:[%s1 + $0x300] sm:$0xff]
  %v127 = vld [vmem:[%s1 + $0x308] sm:$0xff]
  %v128 = vld [vmem:[%s1 + $0x310] sm:$0xff]
  %v129 = vld [vmem:[%s1 + $0x318] sm:$0xff]
  %v130 = vld [vmem:[%s1 + $0x320] sm:$0xff]
  %v131 = vld [vmem:[%s1 + $0x328] sm:$0xff]
  %v132 = vld [vmem:[%s1 + $0x330] sm:$0xff]
  %v133 = vld [vmem:[%s1 + $0x338] sm:$0xff]
  %v134 = vld [vmem:[%s1 + $0x340] sm:$0xff]
  %v135 = vld [vmem:[%s1 + $0x348] sm:$0xff]
  %v136 = vld [vmem:[%s1 + $0x350] sm:$0xff]
  %v137 = vld [vmem:[%s1 + $0x358] sm:$0xff]
  %v138 = vld [vmem:[%s1 + $0x360] sm:$0xff]
  %v139 = vld [vmem:[%s1 + $0x368] sm:$0xff]
  %v140 = vld [vmem:[%s1 + $0x370] sm:$0xff]
  %v141 = vld [vmem:[%s1 + $0x378] sm:$0xff]
  %v142 = vld [vmem:[%s1 + $0x380] sm:$0xff]
  %v143 = vld [vmem:[%s1 + $0x388] sm:$0xff]
  %v144 = vld [vmem:[%s1 + $0x390] sm:$0xff]
  %v145 = vld [vmem:[%s1 + $0x398] sm:$0xff]
  %v146 = vld [vmem:[%s1 + $0x3a0] sm:$0xff]
  %v147 = vld [vmem:[%s1 + $0x3a8] sm:$0xff]
  %v148 = vld [vmem:[%s1 + $0x3b0] sm:$0xff]
  %v149 = vld [vmem:[%s1 + $0x3b8] sm:$0xff]
  %v150 = vld [vmem:[%s1 + $0x3c0] sm:$0xff]
  %v151 = vld [vmem:[%s1 + $0x3c8] sm:$0xff]
  %v152 = vld [vmem:[%s1 + $0x3d0] sm:$0xff]
  %v153 = vld [vmem:[%s1 + $0x3d8] sm:$0xff]
  %v154 = vld [vmem:[%s1 + $0x3e0] sm:$0xff]
  %v155 = vld [vmem:[%s1 + $0x3e8] sm:$0xff]
  %v156 = vld [vmem:[%s1 + $0x3f0] sm:$0xff]
  %v157 = vld [vmem:[%s1 + $0x3f8] sm:$0xff]
  %v158 = vld [vmem:[%s1 + $0x400] sm:$0xff]
  %v159 = vld [vmem:[%s1 + $0x408] sm:$0xff]
  %v160 = vld [vmem:[%s1 + $0x410] sm:$0xff]
  %v161 = vld [vmem:[%s1 + $0x418] sm:$0xff]
  %v162 = vld [vmem:[%s1 + $0x420] sm:$0xff]
  %v163 = vld [vmem:[%s1 + $0x428] sm:$0xff]
  %v164 = vld [vmem:[%s1 + $0x430] sm:$0xff]
  %v165 = vld [vmem:[%s1 + $0x438] sm:$0xff]
  %v166 = vld [vmem:[%s1 + $0x440] sm:$0xff]
  %v167 = vld [vmem:[%s1 + $0x448] sm:$0xff]
  %v168 = vld [vmem:[%s1 + $0x450] sm:$0xff]
  %v169 = vld [vmem:[%s1 + $0x458] sm:$0xff]
  %v170 = vld [vmem:[%s1 + $0x460] sm:$0xff]
  %v171 = vld [vmem:[%s1 + $0x468] sm:$0xff]
  %v172 = vld [vmem:[%s1 + $0x470] sm:$0xff]
  %v173 = vld [vmem:[%s1 + $0x478] sm:$0xff]
  %v174 = vld [vmem:[%s1 + $0x480] sm:$0xff]
  %v175 = vld [vmem:[%s1 + $0x488] sm:$0xff]
  %v176 = vld [vmem:[%s1 + $0x490] sm:$0xff]
  %v177 = vld [vmem:[%s1 + $0x498] sm:$0xff]
  %v178 = vld [vmem:[%s1 + $0x4a0] sm:$0xff]
  %v179 = vld [vmem:[%s1 + $0x4a8] sm:$0xff]
  %v180 = vld [vmem:[%s1 + $0x4b0] sm:$0xff]
  %v181 = vld [vmem:[%s1 + $0x4b8] sm:$0xff]
  %v182 = vld [vmem:[%s1 + $0x4c0] sm:$0xff]
  %v183 = vld [vmem:[%s1 + $0x4c8] sm:$0xff]
  %v184 = vld [vmem:[%s1 + $0x4d0] sm:$0xff]
  %v185 = vld [vmem:[%s1 + $0x4d8] sm:$0xff]
  %v186 = vld [vmem:[%s1 + $0x4e0] sm:$0xff]
  %v187 = vld [vmem:[%s1 + $0x4e8] sm:$0xff]
  %v188 = vld [vmem:[%s1 + $0x4f0] sm:$0xff]
  %v189 = vld [vmem:[%s1 + $0x4f8] sm:$0xff]
  %v190 = vld [vmem:[%s1 + $0x500] sm:$0xff]
  %v191 = vld [vmem:[%s1 + $0x508] sm:$0xff]
  %v192 = vld [vmem:[%s1 + $0x510] sm:$0xff]
  %v193 = vld [vmem:[%s1 + $0x518] sm:$0xff]
  %v194 = vld [vmem:[%s1 + $0x520] sm:$0xff]
  %v195 = vld [vmem:[%s1 + $0x528] sm:$0xff]
  %v196 = vld [vmem:[%s1 + $0x530] sm:$0xff]
  %v197 = vld [vmem:[%s1 + $0x538] sm:$0xff]
  %v198 = vld [vmem:[%s1 + $0x540] sm:$0xff]
  %v199 = vld [vmem:[%s1 + $0x548] sm:$0xff]
  %v200 = vld [vmem:[%s1 + $0x550] sm:$0xff]
  %v201 = vld [vmem:[%s1 + $0x558] sm:$0xff]
  %v202 = vld [vmem:[%s1 + $0x560] sm:$0xff]
  %v203 = vld [vmem:[%s1 + $0x568] sm:$0xff]
  %v204 = vld [vmem:[%s1 + $0x570] sm:$0xff]
  %v205 = vld [vmem:[%s1 + $0x578] sm:$0xff]
  %v206 = vld [vmem:[%s1 + $0x580] sm:$0xff]
  %v207 = vld [vmem:[%s1 + $0x588] sm:$0xff]
  %v208 = vld [vmem:[%s1 + $0x590] sm:$0xff]
  %v209 = vld [vmem:[%s1 + $0x598] sm:$0xff]
  %v210 = vld [vmem:[%s1 + $0x5a0] sm:$0xff]
  %v211 = vld [vmem:[%s1 + $0x5a8] sm:$0xff]
  %v212 = vld [vmem:[%s1 + $0x5b0] sm:$0xff]
  %v213 = vld [vmem:[%s1 + $0x5b8] sm:$0xff]
  %v214 = vld [vmem:[%s1 + $0x5c0] sm:$0xff]
  %v215 = vld [vmem:[%s1 + $0x5c8] sm:$0xff]
  %v216 = vld [vmem:[%s1 + $0x5d0] sm:$0xff]
  %v217 = vld [vmem:[%s1 + $0x5d8] sm:$0xff]
  %v218 = vld [vmem:[%s1 + $0x5e0] sm:$0xff]
  %v219 = vld [vmem:[%s1 + $0x5e8] sm:$0xff]
  %v220 = vld [vmem:[%s1 + $0x5f0] sm:$0xff]
  %v221 = vld [vmem:[%s1 + $0x5f8] sm:$0xff]
  %v222 = vld [vmem:[%s1 + $0x600] sm:$0xff]
  %v223 = vld [vmem:[%s1 + $0x608] sm:$0xff]
  %v224 = vld [vmem:[%s1 + $0x610] sm:$0xff]
  %v225 = vld [vmem:[%s1 + $0x618] sm:$0xff]
  %v226 = vld [vmem:[%s1 + $0x620] sm:$0xff]
  %v227 = vld [vmem:[%s1 + $0x628] sm:$0xff]
  %v228 = vld [vmem:[%s1 + $0x630] sm:$0xff]
  %v229 = vld [vmem:[%s1 + $0x638] sm:$0xff]
  %v230 = vld [vmem:[%s1 + $0x640] sm:$0xff]
  %v231 = vld [vmem:[%s1 + $0x648] sm:$0xff]
  %v232 = vld [vmem:[%s1 + $0x650] sm:$0xff]
  %v233 = vld [vmem:[%s1 + $0x658] sm:$0xff]
  %v234 = vld [vmem:[%s1 + $0x660] sm:$0xff]
  %v235 = vld [vmem:[%s1 + $0x668] sm:$0xff]
  %v236 = vld [vmem:[%s1 + $0x670] sm:$0xff]
  %v237 = vld [vmem:[%s1 + $0x678] sm:$0xff]
  %v238 = vld [vmem:[%s1 + $0x680] sm:$0xff]
  %v239 = vld [vmem:[%s1 + $0x688] sm:$0xff]
  %v240 = vld [vmem:[%s1 + $0x690] sm:$0xff]
  %v241 = vld [vmem:[%s1 + $0x698] sm:$0xff]
  %v242 = vld [vmem:[%s1 + $0x6a0] sm:$0xff]
  %v243 = vld [vmem:[%s1 + $0x6a8] sm:$0xff]
  %v244 = vld [vmem:[%s1 + $0x6b0] sm:$0xff]
  %v245 = vld [vmem:[%s1 + $0x6b8] sm:$0xff]
  %v246 = vld [vmem:[%s1 + $0x6c0] sm:$0xff]
  %v247 = vld [vmem:[%s1 + $0x6c8] sm:$0xff]
  %v248 = vld [vmem:[%s1 + $0x6d0] sm:$0xff]
  %v249 = vld [vmem:[%s1 + $0x6d8] sm:$0xff]
  %v250 = vld [vmem:[%s1 + $0x6e0] sm:$0xff]
  %v251 = vld [vmem:[%s1 + $0x6e8] sm:$0xff]
  %v252 = vld [vmem:[%s1 + $0x6f0] sm:$0xff]
  %v253 = vld [vmem:[%s1 + $0x6f8] sm:$0xff]
  %v254 = vld [vmem:[%s1 + $0x700] sm:$0xff]
  %v255 = vld [vmem:[%s1 + $0x708] sm:$0xff]
  %v256 = vld [vmem:[%s1 + $0x710] sm:$0xff]
  %v257 = vld [vmem:[%s1 + $0x718] sm:$0xff]
  %v258 = vld [vmem:[%s1 + $0x720] sm:$0xff]
  %v259 = vld [vmem:[%s1 + $0x728] sm:$0xff]
  %v260 = vld [vmem:[%s1 + $0x730] sm:$0xff]
  %v261 = vld [vmem:[%s1 + $0x738] sm:$0xff]
  %v262 = vld [vmem:[%s1 + $0x740] sm:$0xff]
  %v263 = vld [vmem:[%s1 + $0x748] sm:$0xff]
  %v264 = vld [vmem:[%s1 + $0x750] sm:$0xff]
  %v265 = vld [vmem:[%s1 + $0x758] sm:$0xff]
  %v266 = vld [vmem:[%s1 + $0x760] sm:$0xff]
  %v267 = vld [vmem:[%s1 + $0x768] sm:$0xff]
  %v268 = vld [vmem:[%s1 + $0x770] sm:$0xff]
  %v269 = vld [vmem:[%s1 + $0x778] sm:$0xff]
  %v270 = vld [vmem:[%s1 + $0x780] sm:$0xff]
  %v271 = vld [vmem:[%s1 + $0x788] sm:$0xff]
  %v272 = vld [vmem:[%s1 + $0x790] sm:$0xff]
  %v273 = vld [vmem:[%s1 + $0x798] sm:$0xff]
  %v274 = vld [vmem:[%s1 + $0x7a0] sm:$0xff]
  %v275 = vld [vmem:[%s1 + $0x7a8] sm:$0xff]
  %v276 = vld [vmem:[%s1 + $0x7b0] sm:$0xff]
  %v277 = vld [vmem:[%s1 + $0x7b8] sm:$0xff]
  %v278 = vld [vmem:[%s1 + $0x7c0] sm:$0xff]
  %v279 = vld [vmem:[%s1 + $0x7c8] sm:$0xff]
  %v280 = vld [vmem:[%s1 + $0x7d0] sm:$0xff]
  %v281 = vld [vmem:[%s1 + $0x7d8] sm:$0xff]
  %v282 = vld [vmem:[%s1 + $0x7e0] sm:$0xff]
  %v283 = vld [vmem:[%s1 + $0x7e8] sm:$0xff]
  %v284 = vld [vmem:[%s1 + $0x7f0] sm:$0xff]
  %v285 = vld [vmem:[%s1 + $0x7f8] sm:$0xff]
  %v286 = vld [vmem:[%s2] sm:$0x1]
  %v288 = vperm.slane %v286, 0
  %290 = vmatpush.msra.mxu0 %v45
  %291 = vmatpush.msra.mxu0 %v44
  %292 = vmatpush.msra.mxu0 %v43
  %293 = vmatpush.msra.mxu0 %v42
  %294 = vmatpush.msra.mxu0 %v41
  %295 = vmatpush.msra.mxu0 %v40
  %296 = vmatpush.msra.mxu0 %v39
  %297 = vmatpush.msra.mxu0 %v38
  %298 = vmatpush.msra.mxu0 %v37
  %299 = vmatpush.msra.mxu0 %v36
  %300 = vmatpush.msra.mxu0 %v35
  %301 = vmatpush.msra.mxu0 %v34
  %302 = vmatpush.msra.mxu0 %v33
  %303 = vmatpush.msra.mxu0 %v32
  %304 = vmatpush.msra.mxu0 %v31
  %305 = vmatpush.msra.mxu0 %v30
  %306 = vmatmul.f32.gmra.mxu0 %v14
  %v307 = vpop.f32.mrf.mxu0
  %v308 = vadd.f32 %v288, %v307
  %309 = vdwg.mxu0
  %310 = vmatpush.msra.mxu0 %v61
  %311 = vmatpush.msra.mxu0 %v60
  %312 = vmatpush.msra.mxu0 %v59
  %313 = vmatpush.msra.mxu0 %v58
  %314 = vmatpush.msra.mxu0 %v57
  %315 = vmatpush.msra.mxu0 %v56
  %316 = vmatpush.msra.mxu0 %v55
  %317 = vmatpush.msra.mxu0 %v54
  %318 = vmatpush.msra.mxu0 %v53
  %319 = vmatpush.msra.mxu0 %v52
  %320 = vmatpush.msra.mxu0 %v51
  %321 = vmatpush.msra.mxu0 %v50
  %322 = vmatpush.msra.mxu0 %v49
  %323 = vmatpush.msra.mxu0 %v48
  %324 = vmatpush.msra.mxu0 %v47
  %325 = vmatpush.msra.mxu0 %v46
  %326 = vmatmul.f32.gmra.mxu0 %v15
  %v327 = vpop.f32.mrf.mxu0
  %v328 = vadd.f32 %v308, %v327
  %329 = vdwg.mxu0
  %330 = vmatpush.msra.mxu0 %v77
  %331 = vmatpush.msra.mxu0 %v76
  %332 = vmatpush.msra.mxu0 %v75
  %333 = vmatpush.msra.mxu0 %v74
  %334 = vmatpush.msra.mxu0 %v73
  %335 = vmatpush.msra.mxu0 %v72
  %336 = vmatpush.msra.mxu0 %v71
  %337 = vmatpush.msra.mxu0 %v70
  %338 = vmatpush.msra.mxu0 %v69
  %339 = vmatpush.msra.mxu0 %v68
  %340 = vmatpush.msra.mxu0 %v67
  %341 = vmatpush.msra.mxu0 %v66
  %342 = vmatpush.msra.mxu0 %v65
  %343 = vmatpush.msra.mxu0 %v64
  %344 = vmatpush.msra.mxu0 %v63
  %345 = vmatpush.msra.mxu0 %v62
  %346 = vmatmul.f32.gmra.mxu0 %v16
  %v347 = vpop.f32.mrf.mxu0
  %v348 = vadd.f32 %v328, %v347
  %349 = vdwg.mxu0
  %350 = vmatpush.msra.mxu0 %v93
  %351 = vmatpush.msra.mxu0 %v92
  %352 = vmatpush.msra.mxu0 %v91
  %353 = vmatpush.msra.mxu0 %v90
  %354 = vmatpush.msra.mxu0 %v89
  %355 = vmatpush.msra.mxu0 %v88
  %356 = vmatpush.msra.mxu0 %v87
  %357 = vmatpush.msra.mxu0 %v86
  %358 = vmatpush.msra.mxu0 %v85
  %359 = vmatpush.msra.mxu0 %v84
  %360 = vmatpush.msra.mxu0 %v83
  %361 = vmatpush.msra.mxu0 %v82
  %362 = vmatpush.msra.mxu0 %v81
  %363 = vmatpush.msra.mxu0 %v80
  %364 = vmatpush.msra.mxu0 %v79
  %365 = vmatpush.msra.mxu0 %v78
  %366 = vmatmul.f32.gmra.mxu0 %v17
  %v367 = vpop.f32.mrf.mxu0
  %v368 = vadd.f32 %v348, %v367
  %369 = vdwg.mxu0
  %370 = vmatpush.msra.mxu0 %v109
  %371 = vmatpush.msra.mxu0 %v108
  %372 = vmatpush.msra.mxu0 %v107
  %373 = vmatpush.msra.mxu0 %v106
  %374 = vmatpush.msra.mxu0 %v105
  %375 = vmatpush.msra.mxu0 %v104
  %376 = vmatpush.msra.mxu0 %v103
  %377 = vmatpush.msra.mxu0 %v102
  %378 = vmatpush.msra.mxu0 %v101
  %379 = vmatpush.msra.mxu0 %v100
  %380 = vmatpush.msra.mxu0 %v99
  %381 = vmatpush.msra.mxu0 %v98
  %382 = vmatpush.msra.mxu0 %v97
  %383 = vmatpush.msra.mxu0 %v96
  %384 = vmatpush.msra.mxu0 %v95
  %385 = vmatpush.msra.mxu0 %v94
  %386 = vmatmul.f32.gmra.mxu0 %v18
  %v387 = vpop.f32.mrf.mxu0
  %v388 = vadd.f32 %v368, %v387
  %389 = vdwg.mxu0
  %390 = vmatpush.msra.mxu0 %v125
  %391 = vmatpush.msra.mxu0 %v124
  %392 = vmatpush.msra.mxu0 %v123
  %393 = vmatpush.msra.mxu0 %v122
  %394 = vmatpush.msra.mxu0 %v121
  %395 = vmatpush.msra.mxu0 %v120
  %396 = vmatpush.msra.mxu0 %v119
  %397 = vmatpush.msra.mxu0 %v118
  %398 = vmatpush.msra.mxu0 %v117
  %399 = vmatpush.msra.mxu0 %v116
  %400 = vmatpush.msra.mxu0 %v115
  %401 = vmatpush.msra.mxu0 %v114
  %402 = vmatpush.msra.mxu0 %v113
  %403 = vmatpush.msra.mxu0 %v112
  %404 = vmatpush.msra.mxu0 %v111
  %405 = vmatpush.msra.mxu0 %v110
  %406 = vmatmul.f32.gmra.mxu0 %v19
  %v407 = vpop.f32.mrf.mxu0
  %v408 = vadd.f32 %v388, %v407
  %409 = vdwg.mxu0
  %410 = vmatpush.msra.mxu0 %v141
  %411 = vmatpush.msra.mxu0 %v140
  %412 = vmatpush.msra.mxu0 %v139
  %413 = vmatpush.msra.mxu0 %v138
  %414 = vmatpush.msra.mxu0 %v137
  %415 = vmatpush.msra.mxu0 %v136
  %416 = vmatpush.msra.mxu0 %v135
  %417 = vmatpush.msra.mxu0 %v134
  %418 = vmatpush.msra.mxu0 %v133
  %419 = vmatpush.msra.mxu0 %v132
  %420 = vmatpush.msra.mxu0 %v131
  %421 = vmatpush.msra.mxu0 %v130
  %422 = vmatpush.msra.mxu0 %v129
  %423 = vmatpush.msra.mxu0 %v128
  %424 = vmatpush.msra.mxu0 %v127
  %425 = vmatpush.msra.mxu0 %v126
  %426 = vmatmul.f32.gmra.mxu0 %v20
  %v427 = vpop.f32.mrf.mxu0
  %v428 = vadd.f32 %v408, %v427
  %429 = vdwg.mxu0
  %430 = vmatpush.msra.mxu0 %v157
  %431 = vmatpush.msra.mxu0 %v156
  %432 = vmatpush.msra.mxu0 %v155
  %433 = vmatpush.msra.mxu0 %v154
  %434 = vmatpush.msra.mxu0 %v153
  %435 = vmatpush.msra.mxu0 %v152
  %436 = vmatpush.msra.mxu0 %v151
  %437 = vmatpush.msra.mxu0 %v150
  %438 = vmatpush.msra.mxu0 %v149
  %439 = vmatpush.msra.mxu0 %v148
  %440 = vmatpush.msra.mxu0 %v147
  %441 = vmatpush.msra.mxu0 %v146
  %442 = vmatpush.msra.mxu0 %v145
  %443 = vmatpush.msra.mxu0 %v144
  %444 = vmatpush.msra.mxu0 %v143
  %445 = vmatpush.msra.mxu0 %v142
  %446 = vmatmul.f32.gmra.mxu0 %v21
  %v447 = vpop.f32.mrf.mxu0
  %v448 = vadd.f32 %v428, %v447
  %449 = vdwg.mxu0
  %450 = vmatpush.msra.mxu0 %v173
  %451 = vmatpush.msra.mxu0 %v172
  %452 = vmatpush.msra.mxu0 %v171
  %453 = vmatpush.msra.mxu0 %v170
  %454 = vmatpush.msra.mxu0 %v169
  %455 = vmatpush.msra.mxu0 %v168
  %456 = vmatpush.msra.mxu0 %v167
  %457 = vmatpush.msra.mxu0 %v166
  %458 = vmatpush.msra.mxu0 %v165
  %459 = vmatpush.msra.mxu0 %v164
  %460 = vmatpush.msra.mxu0 %v163
  %461 = vmatpush.msra.mxu0 %v162
  %462 = vmatpush.msra.mxu0 %v161
  %463 = vmatpush.msra.mxu0 %v160
  %464 = vmatpush.msra.mxu0 %v159
  %465 = vmatpush.msra.mxu0 %v158
  %466 = vmatmul.f32.gmra.mxu0 %v22
  %v467 = vpop.f32.mrf.mxu0
  %v468 = vadd.f32 %v448, %v467
  %469 = vdwg.mxu0
  %470 = vmatpush.msra.mxu0 %v189
  %471 = vmatpush.msra.mxu0 %v188
  %472 = vmatpush.msra.mxu0 %v187
  %473 = vmatpush.msra.mxu0 %v186
  %474 = vmatpush.msra.mxu0 %v185
  %475 = vmatpush.msra.mxu0 %v184
  %476 = vmatpush.msra.mxu0 %v183
  %477 = vmatpush.msra.mxu0 %v182
  %478 = vmatpush.msra.mxu0 %v181
  %479 = vmatpush.msra.mxu0 %v180
  %480 = vmatpush.msra.mxu0 %v179
  %481 = vmatpush.msra.mxu0 %v178
  %482 = vmatpush.msra.mxu0 %v177
  %483 = vmatpush.msra.mxu0 %v176
  %484 = vmatpush.msra.mxu0 %v175
  %485 = vmatpush.msra.mxu0 %v174
  %486 = vmatmul.f32.gmra.mxu0 %v23
  %v487 = vpop.f32.mrf.mxu0
  %v488 = vadd.f32 %v468, %v487
  %489 = vdwg.mxu0
  %490 = vmatpush.msra.mxu0 %v205
  %491 = vmatpush.msra.mxu0 %v204
  %492 = vmatpush.msra.mxu0 %v203
  %493 = vmatpush.msra.mxu0 %v202
  %494 = vmatpush.msra.mxu0 %v201
  %495 = vmatpush.msra.mxu0 %v200
  %496 = vmatpush.msra.mxu0 %v199
  %497 = vmatpush.msra.mxu0 %v198
  %498 = vmatpush.msra.mxu0 %v197
  %499 = vmatpush.msra.mxu0 %v196
  %500 = vmatpush.msra.mxu0 %v195
  %501 = vmatpush.msra.mxu0 %v194
  %502 = vmatpush.msra.mxu0 %v193
  %503 = vmatpush.msra.mxu0 %v192
  %504 = vmatpush.msra.mxu0 %v191
  %505 = vmatpush.msra.mxu0 %v190
  %506 = vmatmul.f32.gmra.mxu0 %v24
  %v507 = vpop.f32.mrf.mxu0
  %v508 = vadd.f32 %v488, %v507
  %509 = vdwg.mxu0
  %510 = vmatpush.msra.mxu0 %v221
  %511 = vmatpush.msra.mxu0 %v220
  %512 = vmatpush.msra.mxu0 %v219
  %513 = vmatpush.msra.mxu0 %v218
  %514 = vmatpush.msra.mxu0 %v217
  %515 = vmatpush.msra.mxu0 %v216
  %516 = vmatpush.msra.mxu0 %v215
  %517 = vmatpush.msra.mxu0 %v214
  %518 = vmatpush.msra.mxu0 %v213
  %519 = vmatpush.msra.mxu0 %v212
  %520 = vmatpush.msra.mxu0 %v211
  %521 = vmatpush.msra.mxu0 %v210
  %522 = vmatpush.msra.mxu0 %v209
  %523 = vmatpush.msra.mxu0 %v208
  %524 = vmatpush.msra.mxu0 %v207
  %525 = vmatpush.msra.mxu0 %v206
  %526 = vmatmul.f32.gmra.mxu0 %v25
  %v527 = vpop.f32.mrf.mxu0
  %v528 = vadd.f32 %v508, %v527
  %529 = vdwg.mxu0
  %530 = vmatpush.msra.mxu0 %v237
  %531 = vmatpush.msra.mxu0 %v236
  %532 = vmatpush.msra.mxu0 %v235
  %533 = vmatpush.msra.mxu0 %v234
  %534 = vmatpush.msra.mxu0 %v233
  %535 = vmatpush.msra.mxu0 %v232
  %536 = vmatpush.msra.mxu0 %v231
  %537 = vmatpush.msra.mxu0 %v230
  %538 = vmatpush.msra.mxu0 %v229
  %539 = vmatpush.msra.mxu0 %v228
  %540 = vmatpush.msra.mxu0 %v227
  %541 = vmatpush.msra.mxu0 %v226
  %542 = vmatpush.msra.mxu0 %v225
  %543 = vmatpush.msra.mxu0 %v224
  %544 = vmatpush.msra.mxu0 %v223
  %545 = vmatpush.msra.mxu0 %v222
  %546 = vmatmul.f32.gmra.mxu0 %v26
  %v547 = vpop.f32.mrf.mxu0
  %v548 = vadd.f32 %v528, %v547
  %549 = vdwg.mxu0
  %550 = vmatpush.msra.mxu0 %v253
  %551 = vmatpush.msra.mxu0 %v252
  %552 = vmatpush.msra.mxu0 %v251
  %553 = vmatpush.msra.mxu0 %v250
  %554 = vmatpush.msra.mxu0 %v249
  %555 = vmatpush.msra.mxu0 %v248
  %556 = vmatpush.msra.mxu0 %v247
  %557 = vmatpush.msra.mxu0 %v246
  %558 = vmatpush.msra.mxu0 %v245
  %559 = vmatpush.msra.mxu0 %v244
  %560 = vmatpush.msra.mxu0 %v243
  %561 = vmatpush.msra.mxu0 %v242
  %562 = vmatpush.msra.mxu0 %v241
  %563 = vmatpush.msra.mxu0 %v240
  %564 = vmatpush.msra.mxu0 %v239
  %565 = vmatpush.msra.mxu0 %v238
  %566 = vmatmul.f32.gmra.mxu0 %v27
  %v567 = vpop.f32.mrf.mxu0
  %v568 = vadd.f32 %v548, %v567
  %569 = vdwg.mxu0
  %570 = vmatpush.msra.mxu0 %v269
  %571 = vmatpush.msra.mxu0 %v268
  %572 = vmatpush.msra.mxu0 %v267
  %573 = vmatpush.msra.mxu0 %v266
  %574 = vmatpush.msra.mxu0 %v265
  %575 = vmatpush.msra.mxu0 %v264
  %576 = vmatpush.msra.mxu0 %v263
  %577 = vmatpush.msra.mxu0 %v262
  %578 = vmatpush.msra.mxu0 %v261
  %579 = vmatpush.msra.mxu0 %v260
  %580 = vmatpush.msra.mxu0 %v259
  %581 = vmatpush.msra.mxu0 %v258
  %582 = vmatpush.msra.mxu0 %v257
  %583 = vmatpush.msra.mxu0 %v256
  %584 = vmatpush.msra.mxu0 %v255
  %585 = vmatpush.msra.mxu0 %v254
  %586 = vmatmul.f32.gmra.mxu0 %v28
  %v587 = vpop.f32.mrf.mxu0
  %v588 = vadd.f32 %v568, %v587
  %589 = vdwg.mxu0
  %590 = vmatpush.msra.mxu0 %v285
  %591 = vmatpush.msra.mxu0 %v284
  %592 = vmatpush.msra.mxu0 %v283
  %593 = vmatpush.msra.mxu0 %v282
  %594 = vmatpush.msra.mxu0 %v281
  %595 = vmatpush.msra.mxu0 %v280
  %596 = vmatpush.msra.mxu0 %v279
  %597 = vmatpush.msra.mxu0 %v278
  %598 = vmatpush.msra.mxu0 %v277
  %599 = vmatpush.msra.mxu0 %v276
  %600 = vmatpush.msra.mxu0 %v275
  %601 = vmatpush.msra.mxu0 %v274
  %602 = vmatpush.msra.mxu0 %v273
  %603 = vmatpush.msra.mxu0 %v272
  %604 = vmatpush.msra.mxu0 %v271
  %605 = vmatpush.msra.mxu0 %v270
  %606 = vmatmul.f32.gmra.mxu0 %v29
  %v607 = vpop.f32.mrf.mxu0
  %v608 = vadd.f32 %v588, %v607
  %609 = vdwg.mxu0
  %610 = vst [vmem:[%s3] sm:$0xff] %v608
  // Predicated region
  $region14: #{cnn_cifar_forward.11} parent=0 // pred_check
    _
  $region15: #{cnn_cifar_forward.11} parent=0 // pred_check_branch
    %612 = sbr.rel (0) target = $region17
  $region16: #{cnn_cifar_forward.11} parent=0 // pred_region
    _
  $region17: #{cnn_cifar_forward.11} parent=0 // pred_fallthru
    _
  // Predicated region
  $region18: #{cnn_cifar_forward.11} parent=0 // pred_check
    _
  $region19: #{cnn_cifar_forward.11} parent=0 // pred_check_branch
    %614 = sbr.rel (0) target = $region21
  $region20: #{cnn_cifar_forward.11} parent=0 // pred_region
    _
  $region21: #{cnn_cifar_forward.11} parent=0 // pred_fallthru
    _

</llo_original>
